<compile_context>
chip_gen: v7x
topology: tpu7x:2x2x1
jax: 0.10.0
libtpu: 0.0.40
codegen_flags: <defaults>
</compile_context>

<pallas_src>
import functools

import numpy as np
import jax
import jax.numpy as jnp
from jax.experimental import pallas as pl
from jax.experimental.pallas import tpu as pltpu

# ---- fixed LeNet geometry implied by the PyTorch module (1x32x32 inputs) -------------
H, W = 32, 32                       # input image
KH, KW = 3, 3                       # conv kernels
C1, OH1, OW1 = 6, 30, 30            # conv1 output
PH1, PW1 = 15, 15                   # after 2x2/2 pool
C2, OH2, OW2 = 16, 13, 13           # conv2 output
PH2, PW2 = 6, 6                     # after 2x2/2 pool
FC1_IN, FC1_OUT = C2 * PH2 * PW2, 120   # 576 -> 120
FC2_OUT, N_CLASSES = 84, 10
FC_PAD = 128                        # lane-padded FC width (unmasked stores / full tiles)
ONE_LANE = 120                      # pad lane carrying a constant 1.0 (bias folding)
NB = 8                              # images per grid step
RS1, RS2 = 32, 16                   # per-image row strides of conv1 / conv2 activations


# ---------------------------------------------------------------------------------------
# Fused kernel: conv1 -> relu -> pool -> conv2 -> relu -> pool -> fc1 -> fc2 -> fc3
# Activation layout: rows = (image, output row) with stride 32/16, lanes = (channel, col).
# ---------------------------------------------------------------------------------------
def _net_kernel(x_ref, w1_ref, b1_ref, r1_ref, w2_ref, b2_ref, r2_ref,
                wfc1_ref, bfc1_ref, wfc2_ref, wfc3_ref, out_ref, *, nb):
    f32, bf16 = jnp.float32, jnp.bfloat16

    def mm(a, b):                                   # bf16 MXU operands, f32 accumulation
        return jnp.dot(a.astype(bf16), b.astype(bf16), preferred_element_type=f32)

    # ---- conv1 (1->6, 3x3 valid) + ReLU: sum of 3 row-shifted MXU matmuls ------------
    # a1[32b + i, oc*30 + j] = relu(conv1)[b, oc, i, j]; rows 32b+{30,31} are unused.
    x = x_ref[...]                                  # (nb*32, 32) f32
    n1 = nb * RS1 - (KH - 1)                        # 254 conv1 output rows
    acc1 = mm(x[0:n1], w1_ref[0])
    acc1 = acc1 + mm(x[1:n1 + 1], w1_ref[1])
    acc1 = acc1 + mm(x[2:n1 + 2], w1_ref[2])
    # Conv biases stay as one broadcast add (folding them would need an extra ones lane
    # appended to the raw image operand).
    a1 = jnp.maximum(acc1 + b1_ref[...], 0.0)       # (254, 180) f32

    # ---- 2x2/2 max pool #1 -----------------------------------------------------------
    # Pairwise maxes on the conv grid; the even-*row* selection is one fixed-size 0/1
    # matmul (r1), the even-*lane* selection is folded into w2's rows.  Pool pairs
    # (2p,2p+1)/(2c,2c+1) never cross an image (stride 32) or channel (stride 30).
    # TODO(synk): the +-1 pair-max shifts could use pltpu.roll (XLU) instead of slices.
    t1 = jnp.maximum(a1[:-1, :], a1[1:, :])         # (253, 180)
    m1 = jnp.maximum(t1[:, :-1], t1[:, 1:])         # (253, 179)
    p1 = mm(r1_ref[...], m1)                        # (nb*16, 179): pooled1, row stride 16

    # ---- conv2 (6->16, 3x3 valid) + ReLU: 3 row-shifted matmuls ----------------------
    n2 = nb * RS2 - (KH - 1)                        # 126 conv2 output rows
    acc2 = mm(p1[0:n2], w2_ref[0])
    acc2 = acc2 + mm(p1[1:n2 + 1], w2_ref[1])
    acc2 = acc2 + mm(p1[2:n2 + 2], w2_ref[2])
    a2 = jnp.maximum(acc2 + b2_ref[...], 0.0)       # (126, 208) f32

    # ---- 2x2/2 max pool #2 + flatten, folded into 1 selector dot + 6 fc1 matmuls -----
    t2 = jnp.maximum(a2[:-1, :], a2[1:, :])         # (125, 208)
    m2 = jnp.maximum(t2[:, :-1], t2[:, 1:])         # (125, 207)
    sel = mm(r2_ref[...], m2)                       # (6*nb, 207): row p*nb+b = pooled2[b,:,p,:]

    acc = mm(sel[0:nb], wfc1_ref[0])
    for p in range(1, PH2):                         # static 6-way unroll (not batch-dep.)
        acc = acc + mm(sel[p * nb:(p + 1) * nb], wfc1_ref[p])
    # bfc1 also injects a constant 1.0 at lane ONE_LANE; wfc2/wfc3 carry the fc2/fc3
    # biases in that row, so no further bias adds are needed.
    h = jnp.maximum(acc + bfc1_ref[...], 0.0)       # (nb, 128)
    h = jnp.maximum(mm(h, wfc2_ref[...]), 0.0)      # (nb, 128), fc2 bias folded
    out_ref[...] = mm(h, wfc3_ref[...])             # (nb, 128), fc3 bias folded


# ---------------------------------------------------------------------------------------
# Wrapper-side parameter lowering (pure layout plumbing, done once at init).
# ---------------------------------------------------------------------------------------
def _lower_conv1_weight(w):          # (6,1,3,3) -> (3, 32, 180): per-ki Toeplitz block
    w = np.asarray(w, np.float32)
    out = np.zeros((KH, W, C1 * OW1), np.float32)
    for k in range(KH):
        for oc in range(C1):
            for j in range(OW1):
                for kj in range(KW):
                    out[k, j + kj, oc * OW1 + j] = w[oc, 0, k, kj]
    return out


def _lower_conv2_weight(w):          # (16,6,3,3) -> (3, 179, 208)
    # Row index is a *lane* of the pooled conv1 activation p1: ic*30 + 2*(j+kj).
    # Only even offsets are populated -> the max-pool column selection is folded in
    # for free (odd "garbage" pool lanes hit zero weight rows).
    w = np.asarray(w, np.float32)
    out = np.zeros((KH, C1 * OW1 - 1, C2 * OW2), np.float32)
    for k in range(KH):
        for oc in range(C2):
            for ic in range(C1):
                for j in range(OW2):
                    for kj in range(KW):
                        out[k, ic * OW1 + 2 * (j + kj), oc * OW2 + j] = w[oc, ic, k, kj]
    return out


def _lower_fc1_weight(w):            # (576,120), torch (c,h,w) flatten -> (6, 207, 128)
    # Block p holds fc1 weights for pooled-row p; row index is a lane of m2
    # (oc2*13 + 2q, pool column selection folded in); 120 outputs zero-padded to 128.
    w = np.asarray(w, np.float32)
    out = np.zeros((PH2, C2 * OW2 - 1, FC_PAD), np.float32)
    for p in range(PH2):
        for oc in range(C2):
            for q in range(PW2):
                out[p, oc * OW2 + 2 * q, :FC1_OUT] = w[oc * (PH2 * PW2) + p * PW2 + q, :]
    return out


def _lower_fc2_weight(w, b):         # (120,84),(84,) -> (128,128); bias in row ONE_LANE
    out = np.zeros((FC_PAD, FC_PAD), np.float32)
    out[:FC1_OUT, :FC2_OUT] = np.asarray(w, np.float32)
    out[ONE_LANE, :FC2_OUT] = np.asarray(b, np.float32)
    out[ONE_LANE, ONE_LANE] = 1.0    # keep the constant-1 lane alive for fc3's bias
    return out


def _lower_fc3_weight(w, b):         # (84,10),(10,) -> (128,128); bias in row ONE_LANE
    out = np.zeros((FC_PAD, FC_PAD), np.float32)
    out[:FC2_OUT, :N_CLASSES] = np.asarray(w, np.float32)
    out[ONE_LANE, :N_CLASSES] = np.asarray(b, np.float32)
    return out


def _make_pool1_row_selector(nb):
    # (nb*16, nb*32-3) 0/1: picks m1 row 32b + 2p (top-left of the 2x2 window) into
    # output row 16b + p; rows 16b + 15 stay zero (padding rows of p1).
    n_in = nb * RS1 - KH
    out = np.zeros((nb * RS2, n_in), np.float32)
    for b in range(nb):
        for p in range(PH1):
            src = b * RS1 + 2 * p
            assert src + 1 < b * RS1 + OH1 and src < n_in   # pool pair stays in-image
            out[b * RS2 + p, src] = 1.0
    return out


def _make_pool2_row_selector(nb):
    # (6*nb, nb*16-3) 0/1: row p*nb + b picks m2 row 16b + 2p (pooled2 row p of image b)
    # so fc1 consumes one aligned nb-row slice per pooled row p.
    n_in = nb * RS2 - KH
    out = np.zeros((PH2 * nb, n_in), np.float32)
    for p in range(PH2):
        for b in range(nb):
            src = b * RS2 + 2 * p
            assert src + 1 < b * RS2 + OH2 and src < n_in   # pool pair stays in valid rows
            out[p * nb + b, src] = 1.0
    return out


def _uniform(key, shape, fan_in):
    bound = 1.0 / np.sqrt(fan_in)
    return jax.random.uniform(key, shape, jnp.float32, -bound, bound)


def init_params(key):
    ks = jax.random.split(key, 10)
    raw = dict(                                           # PyTorch-style raw parameters
        w_conv1=_uniform(ks[0], (C1, 1, KH, KW), 1 * KH * KW),
        b_conv1=_uniform(ks[1], (C1,), 1 * KH * KW),
        w_conv2=_uniform(ks[2], (C2, C1, KH, KW), C1 * KH * KW),
        b_conv2=_uniform(ks[3], (C2,), C1 * KH * KW),
        w_fc1=_uniform(ks[4], (FC1_IN, FC1_OUT), FC1_IN),  # (in, out), torch flatten order
        b_fc1=_uniform(ks[5], (FC1_OUT,), FC1_IN),
        w_fc2=_uniform(ks[6], (FC1_OUT, FC2_OUT), FC1_OUT),
        b_fc2=_uniform(ks[7], (FC2_OUT,), FC1_OUT),
        w_fc3=_uniform(ks[8], (FC2_OUT, N_CLASSES), FC2_OUT),
        b_fc3=_uniform(ks[9], (N_CLASSES,), FC2_OUT),
    )

    bf16 = jnp.bfloat16
    b1_row = np.repeat(np.asarray(raw["b_conv1"], np.float32), OW1)[None, :]
    b2_row = np.repeat(np.asarray(raw["b_conv2"], np.float32), OW2)[None, :]
    bfc1_row = np.zeros((1, FC_PAD), np.float32)
    bfc1_row[0, :FC1_OUT] = np.asarray(raw["b_fc1"], np.float32)
    bfc1_row[0, ONE_LANE] = 1.0        # constant-1 lane -> fc2/fc3 biases fold into weights

    return dict(
        raw=raw,
        # MXU weights pre-cast to bf16 (halves weight VMEM/DMA bytes on all generations).
        w1=jnp.asarray(_lower_conv1_weight(raw["w_conv1"]), bf16),
        b1=jnp.asarray(b1_row),
        w2=jnp.asarray(_lower_conv2_weight(raw["w_conv2"]), bf16),
        b2=jnp.asarray(b2_row),
        wfc1=jnp.asarray(_lower_fc1_weight(raw["w_fc1"]), bf16),
        bfc1=jnp.asarray(bfc1_row),
        wfc2=jnp.asarray(_lower_fc2_weight(raw["w_fc2"], raw["b_fc2"]), bf16),
        wfc3=jnp.asarray(_lower_fc3_weight(raw["w_fc3"], raw["b_fc3"]), bf16),
        r1=jnp.asarray(_make_pool1_row_selector(NB), bf16),   # fixed-size (batch-indep.)
        r2=jnp.asarray(_make_pool2_row_selector(NB), bf16),
    )


def net_forward(x, params, nb=NB):
    n = x.shape[0]
    n_blk = (n + nb - 1) // nb
    n_pad = n_blk * nb

    # Batch padded to a multiple of NB and folded into the sublane axis (row stride 32);
    # pad images produce garbage rows that are sliced away below.
    x2d = jnp.pad(x[:, 0, :, :], ((0, n_pad - n), (0, 0), (0, 0))).reshape(n_pad * H, W)

    p = params
    full = lambda a: pl.BlockSpec(a.shape, lambda i: (0,) * a.ndim)  # whole-array input

    out = pl.pallas_call(
        functools.partial(_net_kernel, nb=nb),
        out_shape=jax.ShapeDtypeStruct((n_pad, FC_PAD), jnp.float32),
        grid=(n_blk,),
        in_specs=[
            pl.BlockSpec((nb * H, W), lambda i: (i, 0)),   # per-step image block
            full(p["w1"]), full(p["b1"]), full(p["r1"]),
            full(p["w2"]), full(p["b2"]), full(p["r2"]),
            full(p["wfc1"]), full(p["bfc1"]), full(p["wfc2"]), full(p["wfc3"]),
        ],
        out_specs=pl.BlockSpec((nb, FC_PAD), lambda i: (i, 0)),
        compiler_params=pltpu.CompilerParams(dimension_semantics=("parallel",)),
    )(x2d, p["w1"], p["b1"], p["r1"], p["w2"], p["b2"], p["r2"],
      p["wfc1"], p["bfc1"], p["wfc2"], p["wfc3"])
    return out[:n, :N_CLASSES]


# ---------------------------------------------------------------------------------------
# Pure-JAX reference (mirrors the PyTorch forward) used only for a correctness check.
# ---------------------------------------------------------------------------------------
def reference_forward(x, raw):
    def conv(z, w, b):
        y = jax.lax.conv_general_dilated(
            z, w, window_strides=(1, 1), padding="VALID",
            dimension_numbers=("NCHW", "OIHW", "NCHW"))
        return y + b[None, :, None, None]

    def pool(z):
        return jax.lax.reduce_window(z, -jnp.inf, jax.lax.max,
                                     (1, 1, 2, 2), (1, 1, 2, 2), "VALID")

    h = pool(jax.nn.relu(conv(x, raw["w_conv1"], raw["b_conv1"])))
    h = pool(jax.nn.relu(conv(h, raw["w_conv2"], raw["b_conv2"])))
    h = h.reshape(h.shape[0], -1)                  # torch .view order (c, h, w)
    h = jax.nn.relu(h @ raw["w_fc1"] + raw["b_fc1"])
    h = jax.nn.relu(h @ raw["w_fc2"] + raw["b_fc2"])
    return h @ raw["w_fc3"] + raw["b_fc3"]


if __name__ == "__main__":
    key = jax.random.PRNGKey(0)
    kx, kp = jax.random.split(key)
    # nn.Conv2d(1,6,3) + fc1(16*6*6) imply 1x32x32 inputs; small batch of 2.
    x = jax.random.normal(kx, (2, 1, H, W), jnp.float32)
    params = init_params(kp)

    fwd = jax.jit(net_forward)
    out = jax.block_until_ready(fwd(x, params))
    assert out.shape == (2, N_CLASSES) and out.dtype == jnp.float32

    ref = jax.block_until_ready(reference_forward(x, params["raw"]))
    max_err = float(jnp.max(jnp.abs(out - ref)))
    # Intentionally loose tolerance: all kernel MXU operands are bf16 (per-layer ~0.2%
    # relative truncation), so the 0/1 pooling-selector dots also select bf16-rounded
    # activations, while the reference runs XLA f32 convs/matmuls.
    assert max_err < 4e-2, f"kernel/reference mismatch: max abs err = {max_err}"
    print("KERNEL_OK")
</pallas_src>

<mosaic_0001>
module attributes {stable_mosaic.version = 11 : i64} {
  func.func @_net_kernel(%arg0: i32, %arg1: memref<256x32xf32, #tpu.memory_space<vmem>>, %arg2: memref<3x32x180xbf16, #tpu.memory_space<vmem>>, %arg3: memref<1x180xf32, #tpu.memory_space<vmem>>, %arg4: memref<128x253xbf16, #tpu.memory_space<vmem>>, %arg5: memref<3x179x208xbf16, #tpu.memory_space<vmem>>, %arg6: memref<1x208xf32, #tpu.memory_space<vmem>>, %arg7: memref<48x125xbf16, #tpu.memory_space<vmem>>, %arg8: memref<6x207x128xbf16, #tpu.memory_space<vmem>>, %arg9: memref<1x128xf32, #tpu.memory_space<vmem>>, %arg10: memref<128x128xbf16, #tpu.memory_space<vmem>>, %arg11: memref<128x128xbf16, #tpu.memory_space<vmem>>, %arg12: memref<8x128xf32, #tpu.memory_space<vmem>>) attributes {dimension_semantics = [#tpu.dimension_semantics<parallel>], iteration_bounds = array<i64: 1>, scalar_prefetch = 0 : i64, scratch_operands = 0 : i64, tpu.core_type = #tpu.core_type<tc>, window_params = [{transform_indices = @transform_0, window_bounds = array<i64: 256, 32>}, {pipeline_mode = #tpu.pipeline_mode<synchronous>, transform_indices = @transform_1, window_bounds = array<i64: 3, 32, 180>}, {pipeline_mode = #tpu.pipeline_mode<synchronous>, transform_indices = @transform_2, window_bounds = array<i64: 1, 180>}, {pipeline_mode = #tpu.pipeline_mode<synchronous>, transform_indices = @transform_3, window_bounds = array<i64: 128, 253>}, {pipeline_mode = #tpu.pipeline_mode<synchronous>, transform_indices = @transform_4, window_bounds = array<i64: 3, 179, 208>}, {pipeline_mode = #tpu.pipeline_mode<synchronous>, transform_indices = @transform_5, window_bounds = array<i64: 1, 208>}, {pipeline_mode = #tpu.pipeline_mode<synchronous>, transform_indices = @transform_6, window_bounds = array<i64: 48, 125>}, {pipeline_mode = #tpu.pipeline_mode<synchronous>, transform_indices = @transform_7, window_bounds = array<i64: 6, 207, 128>}, {pipeline_mode = #tpu.pipeline_mode<synchronous>, transform_indices = @transform_8, window_bounds = array<i64: 1, 128>}, {pipeline_mode = #tpu.pipeline_mode<synchronous>, transform_indices = @transform_9, window_bounds = array<i64: 128, 128>}, {pipeline_mode = #tpu.pipeline_mode<synchronous>, transform_indices = @transform_10, window_bounds = array<i64: 128, 128>}, {transform_indices = @transform_11, window_bounds = array<i64: 8, 128>}]} {
    %c0 = arith.constant 0 : index
    %c0_0 = arith.constant 0 : index
    %0 = vector.load %arg1[%c0, %c0_0] : memref<256x32xf32, #tpu.memory_space<vmem>>, vector<256x32xf32>
    %1 = vector.extract_strided_slice %0 {offsets = [0, 0], sizes = [254, 32], strides = [1, 1]} : vector<256x32xf32> to vector<254x32xf32>
    %c0_1 = arith.constant 0 : index
    %c0_2 = arith.constant 0 : index
    %c0_3 = arith.constant 0 : index
    %2 = vector.load %arg2[%c0_1, %c0_2, %c0_3] : memref<3x32x180xbf16, #tpu.memory_space<vmem>>, vector<1x32x180xbf16>
    %3 = vector.shape_cast %2 : vector<1x32x180xbf16> to vector<32x180xbf16>
    %4 = arith.truncf %1 : vector<254x32xf32> to vector<254x32xbf16>
    %cst = arith.constant dense<0.000000e+00> : vector<254x180xf32>
    %5 = tpu.matmul %4, %3, %cst {dimension_numbers = #tpu.dot_dimension_numbers<[1], [0], [0], [1], [0, 0, 1, 1], [], []>} : vector<254x32xbf16>, vector<32x180xbf16>, vector<254x180xf32> -> vector<254x180xf32>
    %6 = vector.extract_strided_slice %0 {offsets = [1, 0], sizes = [254, 32], strides = [1, 1]} : vector<256x32xf32> to vector<254x32xf32>
    %c1 = arith.constant 1 : index
    %c0_4 = arith.constant 0 : index
    %c0_5 = arith.constant 0 : index
    %7 = vector.load %arg2[%c1, %c0_4, %c0_5] : memref<3x32x180xbf16, #tpu.memory_space<vmem>>, vector<1x32x180xbf16>
    %8 = vector.shape_cast %7 : vector<1x32x180xbf16> to vector<32x180xbf16>
    %9 = arith.truncf %6 : vector<254x32xf32> to vector<254x32xbf16>
    %cst_6 = arith.constant dense<0.000000e+00> : vector<254x180xf32>
    %10 = tpu.matmul %9, %8, %cst_6 {dimension_numbers = #tpu.dot_dimension_numbers<[1], [0], [0], [1], [0, 0, 1, 1], [], []>} : vector<254x32xbf16>, vector<32x180xbf16>, vector<254x180xf32> -> vector<254x180xf32>
    %11 = arith.addf %5, %10 : vector<254x180xf32>
    %12 = vector.extract_strided_slice %0 {offsets = [2, 0], sizes = [254, 32], strides = [1, 1]} : vector<256x32xf32> to vector<254x32xf32>
    %c2 = arith.constant 2 : index
    %c0_7 = arith.constant 0 : index
    %c0_8 = arith.constant 0 : index
    %13 = vector.load %arg2[%c2, %c0_7, %c0_8] : memref<3x32x180xbf16, #tpu.memory_space<vmem>>, vector<1x32x180xbf16>
    %14 = vector.shape_cast %13 : vector<1x32x180xbf16> to vector<32x180xbf16>
    %15 = arith.truncf %12 : vector<254x32xf32> to vector<254x32xbf16>
    %cst_9 = arith.constant dense<0.000000e+00> : vector<254x180xf32>
    %16 = tpu.matmul %15, %14, %cst_9 {dimension_numbers = #tpu.dot_dimension_numbers<[1], [0], [0], [1], [0, 0, 1, 1], [], []>} : vector<254x32xbf16>, vector<32x180xbf16>, vector<254x180xf32> -> vector<254x180xf32>
    %17 = arith.addf %11, %16 : vector<254x180xf32>
    %c0_10 = arith.constant 0 : index
    %c0_11 = arith.constant 0 : index
    %18 = vector.load %arg3[%c0_10, %c0_11] : memref<1x180xf32, #tpu.memory_space<vmem>>, vector<1x180xf32>
    %19 = vector.broadcast %18 : vector<1x180xf32> to vector<254x180xf32>
    %20 = arith.addf %17, %19 : vector<254x180xf32>
    %cst_12 = arith.constant 0.000000e+00 : f32
    %21 = vector.broadcast %cst_12 : f32 to vector<254x180xf32>
    %22 = arith.maximumf %20, %21 : vector<254x180xf32>
    %23 = vector.extract_strided_slice %22 {offsets = [0, 0], sizes = [253, 180], strides = [1, 1]} : vector<254x180xf32> to vector<253x180xf32>
    %24 = vector.extract_strided_slice %22 {offsets = [1, 0], sizes = [253, 180], strides = [1, 1]} : vector<254x180xf32> to vector<253x180xf32>
    %25 = arith.maximumf %23, %24 : vector<253x180xf32>
    %26 = vector.extract_strided_slice %25 {offsets = [0, 0], sizes = [253, 179], strides = [1, 1]} : vector<253x180xf32> to vector<253x179xf32>
    %27 = vector.extract_strided_slice %25 {offsets = [0, 1], sizes = [253, 179], strides = [1, 1]} : vector<253x180xf32> to vector<253x179xf32>
    %28 = arith.maximumf %26, %27 : vector<253x179xf32>
    %c0_13 = arith.constant 0 : index
    %c0_14 = arith.constant 0 : index
    %29 = vector.load %arg4[%c0_13, %c0_14] : memref<128x253xbf16, #tpu.memory_space<vmem>>, vector<128x253xbf16>
    %30 = arith.truncf %28 : vector<253x179xf32> to vector<253x179xbf16>
    %cst_15 = arith.constant dense<0.000000e+00> : vector<128x179xf32>
    %31 = tpu.matmul %29, %30, %cst_15 {dimension_numbers = #tpu.dot_dimension_numbers<[1], [0], [0], [1], [0, 0, 1, 1], [], []>} : vector<128x253xbf16>, vector<253x179xbf16>, vector<128x179xf32> -> vector<128x179xf32>
    %32 = vector.extract_strided_slice %31 {offsets = [0, 0], sizes = [126, 179], strides = [1, 1]} : vector<128x179xf32> to vector<126x179xf32>
    %c0_16 = arith.constant 0 : index
    %c0_17 = arith.constant 0 : index
    %c0_18 = arith.constant 0 : index
    %33 = vector.load %arg5[%c0_16, %c0_17, %c0_18] : memref<3x179x208xbf16, #tpu.memory_space<vmem>>, vector<1x179x208xbf16>
    %34 = vector.shape_cast %33 : vector<1x179x208xbf16> to vector<179x208xbf16>
    %35 = arith.truncf %32 : vector<126x179xf32> to vector<126x179xbf16>
    %cst_19 = arith.constant dense<0.000000e+00> : vector<126x208xf32>
    %36 = tpu.matmul %35, %34, %cst_19 {dimension_numbers = #tpu.dot_dimension_numbers<[1], [0], [0], [1], [0, 0, 1, 1], [], []>} : vector<126x179xbf16>, vector<179x208xbf16>, vector<126x208xf32> -> vector<126x208xf32>
    %37 = vector.extract_strided_slice %31 {offsets = [1, 0], sizes = [126, 179], strides = [1, 1]} : vector<128x179xf32> to vector<126x179xf32>
    %c1_20 = arith.constant 1 : index
    %c0_21 = arith.constant 0 : index
    %c0_22 = arith.constant 0 : index
    %38 = vector.load %arg5[%c1_20, %c0_21, %c0_22] : memref<3x179x208xbf16, #tpu.memory_space<vmem>>, vector<1x179x208xbf16>
    %39 = vector.shape_cast %38 : vector<1x179x208xbf16> to vector<179x208xbf16>
    %40 = arith.truncf %37 : vector<126x179xf32> to vector<126x179xbf16>
    %cst_23 = arith.constant dense<0.000000e+00> : vector<126x208xf32>
    %41 = tpu.matmul %40, %39, %cst_23 {dimension_numbers = #tpu.dot_dimension_numbers<[1], [0], [0], [1], [0, 0, 1, 1], [], []>} : vector<126x179xbf16>, vector<179x208xbf16>, vector<126x208xf32> -> vector<126x208xf32>
    %42 = arith.addf %36, %41 : vector<126x208xf32>
    %43 = vector.extract_strided_slice %31 {offsets = [2, 0], sizes = [126, 179], strides = [1, 1]} : vector<128x179xf32> to vector<126x179xf32>
    %c2_24 = arith.constant 2 : index
    %c0_25 = arith.constant 0 : index
    %c0_26 = arith.constant 0 : index
    %44 = vector.load %arg5[%c2_24, %c0_25, %c0_26] : memref<3x179x208xbf16, #tpu.memory_space<vmem>>, vector<1x179x208xbf16>
    %45 = vector.shape_cast %44 : vector<1x179x208xbf16> to vector<179x208xbf16>
    %46 = arith.truncf %43 : vector<126x179xf32> to vector<126x179xbf16>
    %cst_27 = arith.constant dense<0.000000e+00> : vector<126x208xf32>
    %47 = tpu.matmul %46, %45, %cst_27 {dimension_numbers = #tpu.dot_dimension_numbers<[1], [0], [0], [1], [0, 0, 1, 1], [], []>} : vector<126x179xbf16>, vector<179x208xbf16>, vector<126x208xf32> -> vector<126x208xf32>
    %48 = arith.addf %42, %47 : vector<126x208xf32>
    %c0_28 = arith.constant 0 : index
    %c0_29 = arith.constant 0 : index
    %49 = vector.load %arg6[%c0_28, %c0_29] : memref<1x208xf32, #tpu.memory_space<vmem>>, vector<1x208xf32>
    %50 = vector.broadcast %49 : vector<1x208xf32> to vector<126x208xf32>
    %51 = arith.addf %48, %50 : vector<126x208xf32>
    %cst_30 = arith.constant 0.000000e+00 : f32
    %52 = vector.broadcast %cst_30 : f32 to vector<126x208xf32>
    %53 = arith.maximumf %51, %52 : vector<126x208xf32>
    %54 = vector.extract_strided_slice %53 {offsets = [0, 0], sizes = [125, 208], strides = [1, 1]} : vector<126x208xf32> to vector<125x208xf32>
    %55 = vector.extract_strided_slice %53 {offsets = [1, 0], sizes = [125, 208], strides = [1, 1]} : vector<126x208xf32> to vector<125x208xf32>
    %56 = arith.maximumf %54, %55 : vector<125x208xf32>
    %57 = vector.extract_strided_slice %56 {offsets = [0, 0], sizes = [125, 207], strides = [1, 1]} : vector<125x208xf32> to vector<125x207xf32>
    %58 = vector.extract_strided_slice %56 {offsets = [0, 1], sizes = [125, 207], strides = [1, 1]} : vector<125x208xf32> to vector<125x207xf32>
    %59 = arith.maximumf %57, %58 : vector<125x207xf32>
    %c0_31 = arith.constant 0 : index
    %c0_32 = arith.constant 0 : index
    %60 = vector.load %arg7[%c0_31, %c0_32] : memref<48x125xbf16, #tpu.memory_space<vmem>>, vector<48x125xbf16>
    %61 = arith.truncf %59 : vector<125x207xf32> to vector<125x207xbf16>
    %cst_33 = arith.constant dense<0.000000e+00> : vector<48x207xf32>
    %62 = tpu.matmul %60, %61, %cst_33 {dimension_numbers = #tpu.dot_dimension_numbers<[1], [0], [0], [1], [0, 0, 1, 1], [], []>} : vector<48x125xbf16>, vector<125x207xbf16>, vector<48x207xf32> -> vector<48x207xf32>
    %63 = vector.extract_strided_slice %62 {offsets = [0, 0], sizes = [8, 207], strides = [1, 1]} : vector<48x207xf32> to vector<8x207xf32>
    %c0_34 = arith.constant 0 : index
    %c0_35 = arith.constant 0 : index
    %c0_36 = arith.constant 0 : index
    %64 = vector.load %arg8[%c0_34, %c0_35, %c0_36] : memref<6x207x128xbf16, #tpu.memory_space<vmem>>, vector<1x207x128xbf16>
    %65 = vector.shape_cast %64 : vector<1x207x128xbf16> to vector<207x128xbf16>
    %66 = arith.truncf %63 : vector<8x207xf32> to vector<8x207xbf16>
    %cst_37 = arith.constant dense<0.000000e+00> : vector<8x128xf32>
    %67 = tpu.matmul %66, %65, %cst_37 {dimension_numbers = #tpu.dot_dimension_numbers<[1], [0], [0], [1], [0, 0, 1, 1], [], []>} : vector<8x207xbf16>, vector<207x128xbf16>, vector<8x128xf32> -> vector<8x128xf32>
    %68 = vector.extract_strided_slice %62 {offsets = [8, 0], sizes = [8, 207], strides = [1, 1]} : vector<48x207xf32> to vector<8x207xf32>
    %c1_38 = arith.constant 1 : index
    %c0_39 = arith.constant 0 : index
    %c0_40 = arith.constant 0 : index
    %69 = vector.load %arg8[%c1_38, %c0_39, %c0_40] : memref<6x207x128xbf16, #tpu.memory_space<vmem>>, vector<1x207x128xbf16>
    %70 = vector.shape_cast %69 : vector<1x207x128xbf16> to vector<207x128xbf16>
    %71 = arith.truncf %68 : vector<8x207xf32> to vector<8x207xbf16>
    %cst_41 = arith.constant dense<0.000000e+00> : vector<8x128xf32>
    %72 = tpu.matmul %71, %70, %cst_41 {dimension_numbers = #tpu.dot_dimension_numbers<[1], [0], [0], [1], [0, 0, 1, 1], [], []>} : vector<8x207xbf16>, vector<207x128xbf16>, vector<8x128xf32> -> vector<8x128xf32>
    %73 = arith.addf %67, %72 : vector<8x128xf32>
    %74 = vector.extract_strided_slice %62 {offsets = [16, 0], sizes = [8, 207], strides = [1, 1]} : vector<48x207xf32> to vector<8x207xf32>
    %c2_42 = arith.constant 2 : index
    %c0_43 = arith.constant 0 : index
    %c0_44 = arith.constant 0 : index
    %75 = vector.load %arg8[%c2_42, %c0_43, %c0_44] : memref<6x207x128xbf16, #tpu.memory_space<vmem>>, vector<1x207x128xbf16>
    %76 = vector.shape_cast %75 : vector<1x207x128xbf16> to vector<207x128xbf16>
    %77 = arith.truncf %74 : vector<8x207xf32> to vector<8x207xbf16>
    %cst_45 = arith.constant dense<0.000000e+00> : vector<8x128xf32>
    %78 = tpu.matmul %77, %76, %cst_45 {dimension_numbers = #tpu.dot_dimension_numbers<[1], [0], [0], [1], [0, 0, 1, 1], [], []>} : vector<8x207xbf16>, vector<207x128xbf16>, vector<8x128xf32> -> vector<8x128xf32>
    %79 = arith.addf %73, %78 : vector<8x128xf32>
    %80 = vector.extract_strided_slice %62 {offsets = [24, 0], sizes = [8, 207], strides = [1, 1]} : vector<48x207xf32> to vector<8x207xf32>
    %c3 = arith.constant 3 : index
    %c0_46 = arith.constant 0 : index
    %c0_47 = arith.constant 0 : index
    %81 = vector.load %arg8[%c3, %c0_46, %c0_47] : memref<6x207x128xbf16, #tpu.memory_space<vmem>>, vector<1x207x128xbf16>
    %82 = vector.shape_cast %81 : vector<1x207x128xbf16> to vector<207x128xbf16>
    %83 = arith.truncf %80 : vector<8x207xf32> to vector<8x207xbf16>
    %cst_48 = arith.constant dense<0.000000e+00> : vector<8x128xf32>
    %84 = tpu.matmul %83, %82, %cst_48 {dimension_numbers = #tpu.dot_dimension_numbers<[1], [0], [0], [1], [0, 0, 1, 1], [], []>} : vector<8x207xbf16>, vector<207x128xbf16>, vector<8x128xf32> -> vector<8x128xf32>
    %85 = arith.addf %79, %84 : vector<8x128xf32>
    %86 = vector.extract_strided_slice %62 {offsets = [32, 0], sizes = [8, 207], strides = [1, 1]} : vector<48x207xf32> to vector<8x207xf32>
    %c4 = arith.constant 4 : index
    %c0_49 = arith.constant 0 : index
    %c0_50 = arith.constant 0 : index
    %87 = vector.load %arg8[%c4, %c0_49, %c0_50] : memref<6x207x128xbf16, #tpu.memory_space<vmem>>, vector<1x207x128xbf16>
    %88 = vector.shape_cast %87 : vector<1x207x128xbf16> to vector<207x128xbf16>
    %89 = arith.truncf %86 : vector<8x207xf32> to vector<8x207xbf16>
    %cst_51 = arith.constant dense<0.000000e+00> : vector<8x128xf32>
    %90 = tpu.matmul %89, %88, %cst_51 {dimension_numbers = #tpu.dot_dimension_numbers<[1], [0], [0], [1], [0, 0, 1, 1], [], []>} : vector<8x207xbf16>, vector<207x128xbf16>, vector<8x128xf32> -> vector<8x128xf32>
    %91 = arith.addf %85, %90 : vector<8x128xf32>
    %92 = vector.extract_strided_slice %62 {offsets = [40, 0], sizes = [8, 207], strides = [1, 1]} : vector<48x207xf32> to vector<8x207xf32>
    %c5 = arith.constant 5 : index
    %c0_52 = arith.constant 0 : index
    %c0_53 = arith.constant 0 : index
    %93 = vector.load %arg8[%c5, %c0_52, %c0_53] : memref<6x207x128xbf16, #tpu.memory_space<vmem>>, vector<1x207x128xbf16>
    %94 = vector.shape_cast %93 : vector<1x207x128xbf16> to vector<207x128xbf16>
    %95 = arith.truncf %92 : vector<8x207xf32> to vector<8x207xbf16>
    %cst_54 = arith.constant dense<0.000000e+00> : vector<8x128xf32>
    %96 = tpu.matmul %95, %94, %cst_54 {dimension_numbers = #tpu.dot_dimension_numbers<[1], [0], [0], [1], [0, 0, 1, 1], [], []>} : vector<8x207xbf16>, vector<207x128xbf16>, vector<8x128xf32> -> vector<8x128xf32>
    %97 = arith.addf %91, %96 : vector<8x128xf32>
    %c0_55 = arith.constant 0 : index
    %c0_56 = arith.constant 0 : index
    %98 = vector.load %arg9[%c0_55, %c0_56] : memref<1x128xf32, #tpu.memory_space<vmem>>, vector<1x128xf32>
    %99 = vector.broadcast %98 : vector<1x128xf32> to vector<8x128xf32>
    %100 = arith.addf %97, %99 : vector<8x128xf32>
    %cst_57 = arith.constant 0.000000e+00 : f32
    %101 = vector.broadcast %cst_57 : f32 to vector<8x128xf32>
    %102 = arith.maximumf %100, %101 : vector<8x128xf32>
    %c0_58 = arith.constant 0 : index
    %c0_59 = arith.constant 0 : index
    %103 = vector.load %arg10[%c0_58, %c0_59] : memref<128x128xbf16, #tpu.memory_space<vmem>>, vector<128x128xbf16>
    %104 = arith.truncf %102 : vector<8x128xf32> to vector<8x128xbf16>
    %cst_60 = arith.constant dense<0.000000e+00> : vector<8x128xf32>
    %105 = tpu.matmul %104, %103, %cst_60 {dimension_numbers = #tpu.dot_dimension_numbers<[1], [0], [0], [1], [0, 0, 1, 1], [], []>} : vector<8x128xbf16>, vector<128x128xbf16>, vector<8x128xf32> -> vector<8x128xf32>
    %cst_61 = arith.constant 0.000000e+00 : f32
    %106 = vector.broadcast %cst_61 : f32 to vector<8x128xf32>
    %107 = arith.maximumf %105, %106 : vector<8x128xf32>
    %c0_62 = arith.constant 0 : index
    %c0_63 = arith.constant 0 : index
    %108 = vector.load %arg11[%c0_62, %c0_63] : memref<128x128xbf16, #tpu.memory_space<vmem>>, vector<128x128xbf16>
    %109 = arith.truncf %107 : vector<8x128xf32> to vector<8x128xbf16>
    %cst_64 = arith.constant dense<0.000000e+00> : vector<8x128xf32>
    %110 = tpu.matmul %109, %108, %cst_64 {dimension_numbers = #tpu.dot_dimension_numbers<[1], [0], [0], [1], [0, 0, 1, 1], [], []>} : vector<8x128xbf16>, vector<128x128xbf16>, vector<8x128xf32> -> vector<8x128xf32>
    %c0_65 = arith.constant 0 : index
    %c0_66 = arith.constant 0 : index
    %111 = vector.load %arg12[%c0_65, %c0_66] : memref<8x128xf32, #tpu.memory_space<vmem>>, vector<8x128xf32>
    tpu.vector_store %arg12[%c0_65, %c0_66], %110 {strides = array<i32>} : memref<8x128xf32, #tpu.memory_space<vmem>>, vector<8x128xf32>,
    return
  }
  func.func @transform_0(%arg0: i32) -> (i32, i32) {
    %c0_i32 = arith.constant 0 : i32
    %c0_i32_0 = arith.constant 0 : i32
    return %arg0, %c0_i32 : i32, i32
  }
  func.func @transform_1(%arg0: i32) -> (i32, i32, i32) {
    %c0_i32 = arith.constant 0 : i32
    %c0_i32_0 = arith.constant 0 : i32
    %c0_i32_1 = arith.constant 0 : i32
    %c0_i32_2 = arith.constant 0 : i32
    return %c0_i32, %c0_i32_0, %c0_i32_1 : i32, i32, i32
  }
  func.func @transform_2(%arg0: i32) -> (i32, i32) {
    %c0_i32 = arith.constant 0 : i32
    %c0_i32_0 = arith.constant 0 : i32
    %c0_i32_1 = arith.constant 0 : i32
    return %c0_i32, %c0_i32_0 : i32, i32
  }
  func.func @transform_3(%arg0: i32) -> (i32, i32) {
    %c0_i32 = arith.constant 0 : i32
    %c0_i32_0 = arith.constant 0 : i32
    %c0_i32_1 = arith.constant 0 : i32
    return %c0_i32, %c0_i32_0 : i32, i32
  }
  func.func @transform_4(%arg0: i32) -> (i32, i32, i32) {
    %c0_i32 = arith.constant 0 : i32
    %c0_i32_0 = arith.constant 0 : i32
    %c0_i32_1 = arith.constant 0 : i32
    %c0_i32_2 = arith.constant 0 : i32
    return %c0_i32, %c0_i32_0, %c0_i32_1 : i32, i32, i32
  }
  func.func @transform_5(%arg0: i32) -> (i32, i32) {
    %c0_i32 = arith.constant 0 : i32
    %c0_i32_0 = arith.constant 0 : i32
    %c0_i32_1 = arith.constant 0 : i32
    return %c0_i32, %c0_i32_0 : i32, i32
  }
  func.func @transform_6(%arg0: i32) -> (i32, i32) {
    %c0_i32 = arith.constant 0 : i32
    %c0_i32_0 = arith.constant 0 : i32
    %c0_i32_1 = arith.constant 0 : i32
    return %c0_i32, %c0_i32_0 : i32, i32
  }
  func.func @transform_7(%arg0: i32) -> (i32, i32, i32) {
    %c0_i32 = arith.constant 0 : i32
    %c0_i32_0 = arith.constant 0 : i32
    %c0_i32_1 = arith.constant 0 : i32
    %c0_i32_2 = arith.constant 0 : i32
    return %c0_i32, %c0_i32_0, %c0_i32_1 : i32, i32, i32
  }
  func.func @transform_8(%arg0: i32) -> (i32, i32) {
    %c0_i32 = arith.constant 0 : i32
    %c0_i32_0 = arith.constant 0 : i32
    %c0_i32_1 = arith.constant 0 : i32
    return %c0_i32, %c0_i32_0 : i32, i32
  }
  func.func @transform_9(%arg0: i32) -> (i32, i32) {
    %c0_i32 = arith.constant 0 : i32
    %c0_i32_0 = arith.constant 0 : i32
    %c0_i32_1 = arith.constant 0 : i32
    return %c0_i32, %c0_i32_0 : i32, i32
  }
  func.func @transform_10(%arg0: i32) -> (i32, i32) {
    %c0_i32 = arith.constant 0 : i32
    %c0_i32_0 = arith.constant 0 : i32
    %c0_i32_1 = arith.constant 0 : i32
    return %c0_i32, %c0_i32_0 : i32, i32
  }
  func.func @transform_11(%arg0: i32) -> (i32, i32) {
    %c0_i32 = arith.constant 0 : i32
    %c0_i32_0 = arith.constant 0 : i32
    return %arg0, %c0_i32 : i32, i32
  }
}

</mosaic_0001>

<llo_original>
// kernel: net_forward.1
$region0: #{net_forward.1}
  #allocation0 [shape = 'u32[]', space=smem, size = 0x4, offset = 0x4, fixed_abs, tag = 'smem constant byte address 0x4 - core index']
  #allocation1 [shape = 'u32[144,128]{1,0:T(1,128)}', space=vmem, size = 0x12000, scoped, tag = 'internal scratch']
  %s0 = inlined_call_operand.vmem [shape: f32[256,32], index: 0, kind: input, shape index: {}]
  %s1 = inlined_call_operand.vmem [shape: bf16[3,32,180], index: 1, kind: input, shape index: {}]
  %s2 = inlined_call_operand.vmem [shape: f32[1,180], index: 2, kind: input, shape index: {}]
  %s3 = inlined_call_operand.vmem [shape: bf16[128,253], index: 3, kind: input, shape index: {}]
  %s4 = inlined_call_operand.hbm [shape: bf16[3,179,208], index: 4, kind: input, shape index: {}]
  %s5 = inlined_call_operand.hbm [shape: f32[1,208], index: 5, kind: input, shape index: {}]
  %s6 = inlined_call_operand.hbm [shape: bf16[48,125], index: 6, kind: input, shape index: {}]
  %s7 = inlined_call_operand.hbm [shape: bf16[6,207,128], index: 7, kind: input, shape index: {}]
  %s8 = inlined_call_operand.vmem [shape: f32[1,128], index: 8, kind: input, shape index: {}]
  %s9 = inlined_call_operand.vmem [shape: bf16[128,128], index: 9, kind: input, shape index: {}]
  %s10 = inlined_call_operand.vmem [shape: bf16[128,128], index: 10, kind: input, shape index: {}]
  %s11 = inlined_call_operand.vmem [shape: f32[8,128], index: 11, kind: output, shape index: {}]
  %s12 = sld [smem:[#allocation0]]
  $region70: #{net_forward.1} parent=0
    _
  %s14 = ssub.s32 1, %s12
  %s15 = scalar_select 0, %s14, %s12
  $region1: #{net_forward.1} parent=0
    #allocation2 [shape = 'u8[282624]{0}', space=vmem, size = 0x45000, scoped, tag = 'input window, operand 4, single buffered']
    #allocation3 [shape = 's32[1]{0}', space=sflag, size = 0x4, scoped, tag = 'scoped memory for net_forward.1']
    #allocation4 [shape = 'u8[1024]{0}', space=vmem, size = 0x400, scoped, tag = 'input window, operand 5, single buffered']
    #allocation5 [shape = 's32[1]{0}', space=sflag, size = 0x4, scoped, tag = 'scoped memory for net_forward.1']
    #allocation6 [shape = 'u8[12288]{0}', space=vmem, size = 0x3000, scoped, tag = 'input window, operand 6, single buffered']
    #allocation7 [shape = 'u8[319488]{0}', space=vmem, size = 0x4e000, scoped, tag = 'input window, operand 7, single buffered']
    #allocation8 [shape = 's32[1]{0}', space=sflag, size = 0x4, scoped, tag = 'scoped memory for net_forward.1']
    %16 = vsyncpa [#allocation3], 0
    %17 = vsyncpa [#allocation5], 0
    %18 = vsyncpa [#allocation8], 0
    // Predicated region
    $region2: #{net_forward.1} parent=1 // pred_check
      _
    $region3: #{net_forward.1} parent=1 // pred_check_branch
      %20 = sbr.rel (0) target = $region5
    $region4: #{net_forward.1} parent=1 // pred_region
      _
    $region5: #{net_forward.1} parent=1 // pred_fallthru
      _
    // Predicated region
    $region6: #{net_forward.1} parent=1 // pred_check
      _
    $region7: #{net_forward.1} parent=1 // pred_check_branch
      %22 = sbr.rel (0) target = $region9
    $region8: #{net_forward.1} parent=1 // pred_region
      _
    $region9: #{net_forward.1} parent=1 // pred_fallthru
      _
    // Predicated region
    $region10: #{net_forward.1} parent=1 // pred_check
      _
    $region11: #{net_forward.1} parent=1 // pred_check_branch
      %24 = sbr.rel (0) target = $region13
    $region12: #{net_forward.1} parent=1 // pred_region
      _
    $region13: #{net_forward.1} parent=1 // pred_fallthru
      _
    // Predicated region
    $region14: #{net_forward.1} parent=1 // pred_check
      _
    $region15: #{net_forward.1} parent=1 // pred_check_branch
      %26 = sbr.rel (0) target = $region17
    $region16: #{net_forward.1} parent=1 // pred_region
      _
    $region17: #{net_forward.1} parent=1 // pred_fallthru
      _
    // Predicated region
    $region18: #{net_forward.1} parent=1 // pred_check
      _
    $region19: #{net_forward.1} parent=1 // pred_check_branch
      %28 = sbr.rel (0) target = $region21
    $region20: #{net_forward.1} parent=1 // pred_region
      %s30 = ssub.s32 8832, 8832
      %31 = vsyncadd [#allocation3], %s30
      %s32 = sshll.u32 [#allocation2], 4
      %s33 = int_to_ptr.vmem [resolvable:$true] %s32
      %38 = dma.hbm_to_vmem [thread:$0]  %s4, 8832, %s33, [#allocation3], 128, 128, 8
    $region21: #{net_forward.1} parent=1 // pred_fallthru
      _
    // Predicated region
    $region22: #{net_forward.1} parent=1 // pred_check
      _
    $region23: #{net_forward.1} parent=1 // pred_check_branch
      %40 = sbr.rel (0) target = $region25
    $region24: #{net_forward.1} parent=1 // pred_region
      %s42 = ssub.s32 32, 32
      %43 = vsyncadd [#allocation5], %s42
      %s45 = sshll.u32 [#allocation4], 4
      %s46 = int_to_ptr.vmem [resolvable:$true] %s45
      %48 = dma.hbm_to_vmem [thread:$0]  %s5, 32, %s46, [#allocation5]
    $region25: #{net_forward.1} parent=1 // pred_fallthru
      _
    // Predicated region
    $region26: #{net_forward.1} parent=1 // pred_check
      _
    $region27: #{net_forward.1} parent=1 // pred_check_branch
      %50 = sbr.rel (0) target = $region29
    $region28: #{net_forward.1} parent=1 // pred_region
      %s52 = ssub.s32 384, 384
      %53 = vsyncadd [#allocation5], %s52
      %s54 = sshll.u32 [#allocation6], 4
      %s55 = int_to_ptr.vmem [resolvable:$true] %s54
      %60 = dma.hbm_to_vmem [thread:$0]  %s6, 384, %s55, [#allocation5], 64, 64, 4
    $region29: #{net_forward.1} parent=1 // pred_fallthru
      _
    // Predicated region
    $region30: #{net_forward.1} parent=1 // pred_check
      _
    $region31: #{net_forward.1} parent=1 // pred_check_branch
      %62 = sbr.rel (0) target = $region33
    $region32: #{net_forward.1} parent=1 // pred_region
      %s64 = ssub.s32 9984, 9984
      %65 = vsyncadd [#allocation8], %s64
      %s66 = sshll.u32 [#allocation7], 4
      %s67 = int_to_ptr.vmem [resolvable:$true] %s66
      %72 = dma.hbm_to_vmem [thread:$0]  %s7, 9984, %s67, [#allocation8], 64, 64, 4
    $region33: #{net_forward.1} parent=1 // pred_fallthru
      _
    // Predicated region
    $region34: #{net_forward.1} parent=1 // pred_check
      _
    $region35: #{net_forward.1} parent=1 // pred_check_branch
      %74 = sbr.rel (0) target = $region37
    $region36: #{net_forward.1} parent=1 // pred_region
      _
    $region37: #{net_forward.1} parent=1 // pred_fallthru
      _
    // Predicated region
    $region38: #{net_forward.1} parent=1 // pred_check
      _
    $region39: #{net_forward.1} parent=1 // pred_check_branch
      %76 = sbr.rel (0) target = $region41
    $region40: #{net_forward.1} parent=1 // pred_region
      _
    $region41: #{net_forward.1} parent=1 // pred_fallthru
      _
    // Predicated region
    $region42: #{net_forward.1} parent=1 // pred_check
      _
    $region43: #{net_forward.1} parent=1 // pred_check_branch
      %78 = sbr.rel (0) target = $region45
    $region44: #{net_forward.1} parent=1 // pred_region
      _
    $region45: #{net_forward.1} parent=1 // pred_fallthru
      _
    // Predicated region
    $region46: #{net_forward.1} parent=1 // pred_check
      _
    $region47: #{net_forward.1} parent=1 // pred_check_branch
      %80 = sbr.rel (0) target = $region49
    $region48: #{net_forward.1} parent=1 // pred_region
      %81 = dma.done [#allocation3], 8832
    $region49: #{net_forward.1} parent=1 // pred_fallthru
      _
    // Predicated region
    $region50: #{net_forward.1} parent=1 // pred_check
      _
    $region51: #{net_forward.1} parent=1 // pred_check_branch
      %83 = sbr.rel (0) target = $region53
    $region52: #{net_forward.1} parent=1 // pred_region
      %84 = dma.done [#allocation5], 32
    $region53: #{net_forward.1} parent=1 // pred_fallthru
      _
    // Predicated region
    $region54: #{net_forward.1} parent=1 // pred_check
      _
    $region55: #{net_forward.1} parent=1 // pred_check_branch
      %86 = sbr.rel (0) target = $region57
    $region56: #{net_forward.1} parent=1 // pred_region
      %87 = dma.done [#allocation5], 384
    $region57: #{net_forward.1} parent=1 // pred_fallthru
      _
    // Predicated region
    $region58: #{net_forward.1} parent=1 // pred_check
      _
    $region59: #{net_forward.1} parent=1 // pred_check_branch
      %89 = sbr.rel (0) target = $region61
    $region60: #{net_forward.1} parent=1 // pred_region
      %90 = dma.done [#allocation8], 9984
    $region61: #{net_forward.1} parent=1 // pred_fallthru
      _
    %v92 = vld [vmem:[%s0] sm:$0xff]
    %v93 = vld [vmem:[%s0 + $0x8] sm:$0xff]
    %v94 = vld [vmem:[%s0 + $0x10] sm:$0xff]
    %v95 = vld [vmem:[%s0 + $0x18] sm:$0xff]
    %v96 = vld [vmem:[%s0 + $0x20] sm:$0xff]
    %v97 = vld [vmem:[%s0 + $0x28] sm:$0xff]
    %v98 = vld [vmem:[%s0 + $0x30] sm:$0xff]
    %v99 = vld [vmem:[%s0 + $0x38] sm:$0xff]
    %v100 = vld [vmem:[%s0 + $0x40] sm:$0xff]
    %v101 = vld [vmem:[%s0 + $0x48] sm:$0xff]
    %v102 = vld [vmem:[%s0 + $0x50] sm:$0xff]
    %v103 = vld [vmem:[%s0 + $0x58] sm:$0xff]
    %v104 = vld [vmem:[%s0 + $0x60] sm:$0xff]
    %v105 = vld [vmem:[%s0 + $0x68] sm:$0xff]
    %v106 = vld [vmem:[%s0 + $0x70] sm:$0xff]
    %v107 = vld [vmem:[%s0 + $0x78] sm:$0xff]
    %v108 = vld [vmem:[%s0 + $0x80] sm:$0xff]
    %v109 = vld [vmem:[%s0 + $0x88] sm:$0xff]
    %v110 = vld [vmem:[%s0 + $0x90] sm:$0xff]
    %v111 = vld [vmem:[%s0 + $0x98] sm:$0xff]
    %v112 = vld [vmem:[%s0 + $0xa0] sm:$0xff]
    %v113 = vld [vmem:[%s0 + $0xa8] sm:$0xff]
    %v114 = vld [vmem:[%s0 + $0xb0] sm:$0xff]
    %v115 = vld [vmem:[%s0 + $0xb8] sm:$0xff]
    %v116 = vld [vmem:[%s0 + $0xc0] sm:$0xff]
    %v117 = vld [vmem:[%s0 + $0xc8] sm:$0xff]
    %v118 = vld [vmem:[%s0 + $0xd0] sm:$0xff]
    %v119 = vld [vmem:[%s0 + $0xd8] sm:$0xff]
    %v120 = vld [vmem:[%s0 + $0xe0] sm:$0xff]
    %v121 = vld [vmem:[%s0 + $0xe8] sm:$0xff]
    %v122 = vld [vmem:[%s0 + $0xf0] sm:$0xff]
    %v123 = vld [vmem:[%s0 + $0xf8] sm:$0xff]
    %v124 = vld [vmem:[%s1] sm:$0xff]
    %v125 = vld [vmem:[%s1 + $0x8] sm:$0xff]
    %v126 = vld [vmem:[%s1 + $0x10] sm:$0xff]
    %v127 = vld [vmem:[%s1 + $0x18] sm:$0xff]
    %v128 = vpack.c.bf16 %v93, %v92
    %v129 = vpack.c.bf16 %v95, %v94
    %v130 = vpack.c.bf16 %v97, %v96
    %v131 = vpack.c.bf16 %v99, %v98
    %v132 = vpack.c.bf16 %v101, %v100
    %v133 = vpack.c.bf16 %v103, %v102
    %v134 = vpack.c.bf16 %v105, %v104
    %v135 = vpack.c.bf16 %v107, %v106
    %v136 = vpack.c.bf16 %v109, %v108
    %v137 = vpack.c.bf16 %v111, %v110
    %v138 = vpack.c.bf16 %v113, %v112
    %v139 = vpack.c.bf16 %v115, %v114
    %v140 = vpack.c.bf16 %v117, %v116
    %v141 = vpack.c.bf16 %v119, %v118
    %v142 = vpack.c.bf16 %v121, %v120
    %v143 = vpack.c.bf16 %v123, %v122
    %s144 = scalar_lea.vmem %s1, 32
    %v145 = vld [vmem:[%s144] sm:$0xff]
    %v146 = vld [vmem:[%s144 + $0x8] sm:$0xff]
    %v147 = vld [vmem:[%s144 + $0x10] sm:$0xff]
    %v148 = vld [vmem:[%s144 + $0x18] sm:$0xff]
    %vm149 = vsmask.f32 7424
    %v151 = vshrl.u32 %v128, 16
    %v153 = vshll.u32 %v128, 16
    %v155 = vrot.slane %v153, 1
    %v156 = vor.u32 %v151, %v155
    %v158 = vshll.u32 %v129, 16
    %v160 = vrot.slane %v158, 1
    %v161 = vsel %vm149, %v156, %v160
    %v162 = vshrl.u32 %v129, 16
    %v164 = vor.u32 %v162, %v160
    %v166 = vshll.u32 %v130, 16
    %v168 = vrot.slane %v166, 1
    %v169 = vsel %vm149, %v164, %v168
    %v170 = vshrl.u32 %v130, 16
    %v172 = vor.u32 %v170, %v168
    %v174 = vshll.u32 %v131, 16
    %v176 = vrot.slane %v174, 1
    %v177 = vsel %vm149, %v172, %v176
    %v178 = vshrl.u32 %v131, 16
    %v180 = vor.u32 %v178, %v176
    %v182 = vshll.u32 %v132, 16
    %v184 = vrot.slane %v182, 1
    %v185 = vsel %vm149, %v180, %v184
    %v186 = vshrl.u32 %v132, 16
    %v188 = vor.u32 %v186, %v184
    %v190 = vshll.u32 %v133, 16
    %v192 = vrot.slane %v190, 1
    %v193 = vsel %vm149, %v188, %v192
    %v194 = vshrl.u32 %v133, 16
    %v196 = vor.u32 %v194, %v192
    %v198 = vshll.u32 %v134, 16
    %v200 = vrot.slane %v198, 1
    %v201 = vsel %vm149, %v196, %v200
    %v202 = vshrl.u32 %v134, 16
    %v204 = vor.u32 %v202, %v200
    %v206 = vshll.u32 %v135, 16
    %v208 = vrot.slane %v206, 1
    %v209 = vsel %vm149, %v204, %v208
    %v210 = vshrl.u32 %v135, 16
    %v212 = vor.u32 %v210, %v208
    %v214 = vshll.u32 %v136, 16
    %v216 = vrot.slane %v214, 1
    %v217 = vsel %vm149, %v212, %v216
    %v218 = vshrl.u32 %v136, 16
    %v220 = vor.u32 %v218, %v216
    %v222 = vshll.u32 %v137, 16
    %v224 = vrot.slane %v222, 1
    %v225 = vsel %vm149, %v220, %v224
    %v226 = vshrl.u32 %v137, 16
    %v228 = vor.u32 %v226, %v224
    %v230 = vshll.u32 %v138, 16
    %v232 = vrot.slane %v230, 1
    %v233 = vsel %vm149, %v228, %v232
    %v234 = vshrl.u32 %v138, 16
    %v236 = vor.u32 %v234, %v232
    %v238 = vshll.u32 %v139, 16
    %v240 = vrot.slane %v238, 1
    %v241 = vsel %vm149, %v236, %v240
    %v242 = vshrl.u32 %v139, 16
    %v244 = vor.u32 %v242, %v240
    %v246 = vshll.u32 %v140, 16
    %v248 = vrot.slane %v246, 1
    %v249 = vsel %vm149, %v244, %v248
    %v250 = vshrl.u32 %v140, 16
    %v252 = vor.u32 %v250, %v248
    %v254 = vshll.u32 %v141, 16
    %v256 = vrot.slane %v254, 1
    %v257 = vsel %vm149, %v252, %v256
    %v258 = vshrl.u32 %v141, 16
    %v260 = vor.u32 %v258, %v256
    %v262 = vshll.u32 %v142, 16
    %v264 = vrot.slane %v262, 1
    %v265 = vsel %vm149, %v260, %v264
    %v266 = vshrl.u32 %v142, 16
    %v268 = vor.u32 %v266, %v264
    %v270 = vshll.u32 %v143, 16
    %v272 = vrot.slane %v270, 1
    %v273 = vsel %vm149, %v268, %v272
    %v274 = vshrl.u32 %v143, 16
    %v276 = vor.u32 %v274, %v272
    %v281 = vunpack.c.l.b16 %v145
    %v282 = vunpack.c.h.b16 %v145
    %v283 = vunpack.c.l.b16 %v146
    %v284 = vunpack.c.h.b16 %v146
    %v285 = vunpack.c.l.b16 %v147
    %v286 = vunpack.c.h.b16 %v147
    %v287 = vunpack.c.l.b16 %v148
    %v288 = vunpack.c.h.b16 %v148
    %v289 = vpack.c.b16 %v283, %v281
    %v290 = vpack.c.b16 %v284, %v282
    %v291 = vpack.c.b16 %v287, %v285
    %v292 = vpack.c.b16 %v288, %v286
    %vm297 = vcmask 261120
    %v299 = vsel %vm297, %v161, 0
    %v302 = vsel %vm297, %v169, 0
    %v305 = vsel %vm297, %v177, 0
    %v308 = vsel %vm297, %v185, 0
    %v311 = vsel %vm297, %v193, 0
    %v314 = vsel %vm297, %v201, 0
    %v317 = vsel %vm297, %v209, 0
    %v320 = vsel %vm297, %v217, 0
    %v323 = vsel %vm297, %v225, 0
    %v326 = vsel %vm297, %v233, 0
    %v329 = vsel %vm297, %v241, 0
    %v332 = vsel %vm297, %v249, 0
    %v335 = vsel %vm297, %v257, 0
    %v338 = vsel %vm297, %v265, 0
    %v341 = vsel %vm297, %v273, 0
    %v344 = vsel %vm297, %v276, 0
    %346 = vmatprep.subr.bf16.mxu0 %v290
    %347 = vmatpush1.bf16.msra.mxu0 %v289
    %348 = vmatprep.subr.bf16.mxu0 %v292
    %349 = vmatpush1.bf16.msra.mxu0 %v291
    %350 = vmatprep.subr.bf16.mxu0 0
    %351 = vmatpush1.bf16.msra.mxu0 0
    %352 = vmatprep.subr.bf16.mxu0 0
    %353 = vmatpush1.bf16.msra.mxu0 0
    %354 = vmatprep.subr.bf16.mxu0 0
    %355 = vmatpush1.bf16.msra.mxu0 0
    %356 = vmatprep.subr.bf16.mxu0 0
    %357 = vmatpush1.bf16.msra.mxu0 0
    %358 = vmatprep.subr.bf16.mxu0 0
    %359 = vmatpush1.bf16.msra.mxu0 0
    %360 = vmatprep.subr.bf16.mxu0 0
    %361 = vmatpush1.bf16.msra.mxu0 0
    %362 = vmatprep.subr.bf16.mxu0 0
    %363 = vmatpush1.bf16.msra.mxu0 0
    %364 = vmatprep.subr.bf16.mxu0 0
    %365 = vmatpush1.bf16.msra.mxu0 0
    %366 = vmatprep.subr.bf16.mxu0 0
    %367 = vmatpush1.bf16.msra.mxu0 0
    %368 = vmatprep.subr.bf16.mxu0 0
    %369 = vmatpush1.bf16.msra.mxu0 0
    %370 = vmatprep.subr.bf16.mxu0 0
    %371 = vmatpush1.bf16.msra.mxu0 0
    %372 = vmatprep.subr.bf16.mxu0 0
    %373 = vmatpush1.bf16.msra.mxu0 0
    %374 = vmatprep.subr.bf16.mxu0 0
    %375 = vmatpush1.bf16.msra.mxu0 0
    %376 = vmatprep.subr.bf16.mxu0 0
    %377 = vmatpush1.bf16.msra.mxu0 0
    %378 = vmatprep.mubr.bf16.mxu0 0
    %379 = vmatmul.mubr.bf16.gmra.mrb[0].mxu0 %v299
    %v380 = vpop.f32.mrb[0].mxu0
    %v381 = vadd.f32 0.0, %v380
    %v382 = vpop.f32.mrb[0].mxu0
    %v383 = vadd.f32 0.0, %v382
    %v384 = vpop.f32.mrb[0].mxu0
    %v385 = vadd.f32 0.0, %v384
    %v386 = vpop.f32.mrb[0].mxu0
    %v387 = vadd.f32 0.0, %v386
    %388 = vmatprep.mubr.bf16.mxu0 0
    %389 = vmatmul.mubr.bf16.gmra.mrb[0].mxu0 %v302
    %v390 = vpop.f32.mrb[0].mxu0
    %v391 = vadd.f32 0.0, %v390
    %v392 = vpop.f32.mrb[0].mxu0
    %v393 = vadd.f32 0.0, %v392
    %v394 = vpop.f32.mrb[0].mxu0
    %v395 = vadd.f32 0.0, %v394
    %v396 = vpop.f32.mrb[0].mxu0
    %v397 = vadd.f32 0.0, %v396
    %398 = vmatprep.mubr.bf16.mxu0 0
    %399 = vmatmul.mubr.bf16.gmra.mrb[0].mxu0 %v305
    %v400 = vpop.f32.mrb[0].mxu0
    %v401 = vadd.f32 0.0, %v400
    %v402 = vpop.f32.mrb[0].mxu0
    %v403 = vadd.f32 0.0, %v402
    %v404 = vpop.f32.mrb[0].mxu0
    %v405 = vadd.f32 0.0, %v404
    %v406 = vpop.f32.mrb[0].mxu0
    %v407 = vadd.f32 0.0, %v406
    %408 = vmatprep.mubr.bf16.mxu0 0
    %409 = vmatmul.mubr.bf16.gmra.mrb[0].mxu0 %v308
    %v410 = vpop.f32.mrb[0].mxu0
    %v411 = vadd.f32 0.0, %v410
    %v412 = vpop.f32.mrb[0].mxu0
    %v413 = vadd.f32 0.0, %v412
    %v414 = vpop.f32.mrb[0].mxu0
    %v415 = vadd.f32 0.0, %v414
    %v416 = vpop.f32.mrb[0].mxu0
    %v417 = vadd.f32 0.0, %v416
    %418 = vmatprep.mubr.bf16.mxu0 0
    %419 = vmatmul.mubr.bf16.gmra.mrb[0].mxu0 %v311
    %v420 = vpop.f32.mrb[0].mxu0
    %v421 = vadd.f32 0.0, %v420
    %v422 = vpop.f32.mrb[0].mxu0
    %v423 = vadd.f32 0.0, %v422
    %v424 = vpop.f32.mrb[0].mxu0
    %v425 = vadd.f32 0.0, %v424
    %v426 = vpop.f32.mrb[0].mxu0
    %v427 = vadd.f32 0.0, %v426
    %428 = vmatprep.mubr.bf16.mxu0 0
    %429 = vmatmul.mubr.bf16.gmra.mrb[0].mxu0 %v314
    %v430 = vpop.f32.mrb[0].mxu0
    %v431 = vadd.f32 0.0, %v430
    %v432 = vpop.f32.mrb[0].mxu0
    %v433 = vadd.f32 0.0, %v432
    %v434 = vpop.f32.mrb[0].mxu0
    %v435 = vadd.f32 0.0, %v434
    %v436 = vpop.f32.mrb[0].mxu0
    %v437 = vadd.f32 0.0, %v436
    %438 = vmatprep.mubr.bf16.mxu0 0
    %439 = vmatmul.mubr.bf16.gmra.mrb[0].mxu0 %v317
    %v440 = vpop.f32.mrb[0].mxu0
    %v441 = vadd.f32 0.0, %v440
    %v442 = vpop.f32.mrb[0].mxu0
    %v443 = vadd.f32 0.0, %v442
    %v444 = vpop.f32.mrb[0].mxu0
    %v445 = vadd.f32 0.0, %v444
    %v446 = vpop.f32.mrb[0].mxu0
    %v447 = vadd.f32 0.0, %v446
    %448 = vmatprep.mubr.bf16.mxu0 0
    %449 = vmatmul.mubr.bf16.gmra.mrb[0].mxu0 %v320
    %v450 = vpop.f32.mrb[0].mxu0
    %v451 = vadd.f32 0.0, %v450
    %v452 = vpop.f32.mrb[0].mxu0
    %v453 = vadd.f32 0.0, %v452
    %v454 = vpop.f32.mrb[0].mxu0
    %v455 = vadd.f32 0.0, %v454
    %v456 = vpop.f32.mrb[0].mxu0
    %v457 = vadd.f32 0.0, %v456
    %458 = vmatprep.mubr.bf16.mxu0 0
    %459 = vmatmul.mubr.bf16.gmra.mrb[0].mxu0 %v323
    %v460 = vpop.f32.mrb[0].mxu0
    %v461 = vadd.f32 0.0, %v460
    %v462 = vpop.f32.mrb[0].mxu0
    %v463 = vadd.f32 0.0, %v462
    %v464 = vpop.f32.mrb[0].mxu0
    %v465 = vadd.f32 0.0, %v464
    %v466 = vpop.f32.mrb[0].mxu0
    %v467 = vadd.f32 0.0, %v466
    %468 = vmatprep.mubr.bf16.mxu0 0
    %469 = vmatmul.mubr.bf16.gmra.mrb[0].mxu0 %v326
    %v470 = vpop.f32.mrb[0].mxu0
    %v471 = vadd.f32 0.0, %v470
    %v472 = vpop.f32.mrb[0].mxu0
    %v473 = vadd.f32 0.0, %v472
    %v474 = vpop.f32.mrb[0].mxu0
    %v475 = vadd.f32 0.0, %v474
    %v476 = vpop.f32.mrb[0].mxu0
    %v477 = vadd.f32 0.0, %v476
    %478 = vmatprep.mubr.bf16.mxu0 0
    %479 = vmatmul.mubr.bf16.gmra.mrb[0].mxu0 %v329
    %v480 = vpop.f32.mrb[0].mxu0
    %v481 = vadd.f32 0.0, %v480
    %v482 = vpop.f32.mrb[0].mxu0
    %v483 = vadd.f32 0.0, %v482
    %v484 = vpop.f32.mrb[0].mxu0
    %v485 = vadd.f32 0.0, %v484
    %v486 = vpop.f32.mrb[0].mxu0
    %v487 = vadd.f32 0.0, %v486
    %488 = vmatprep.mubr.bf16.mxu0 0
    %489 = vmatmul.mubr.bf16.gmra.mrb[0].mxu0 %v332
    %v490 = vpop.f32.mrb[0].mxu0
    %v491 = vadd.f32 0.0, %v490
    %v492 = vpop.f32.mrb[0].mxu0
    %v493 = vadd.f32 0.0, %v492
    %v494 = vpop.f32.mrb[0].mxu0
    %v495 = vadd.f32 0.0, %v494
    %v496 = vpop.f32.mrb[0].mxu0
    %v497 = vadd.f32 0.0, %v496
    %498 = vmatprep.mubr.bf16.mxu0 0
    %499 = vmatmul.mubr.bf16.gmra.mrb[0].mxu0 %v335
    %v500 = vpop.f32.mrb[0].mxu0
    %v501 = vadd.f32 0.0, %v500
    %v502 = vpop.f32.mrb[0].mxu0
    %v503 = vadd.f32 0.0, %v502
    %v504 = vpop.f32.mrb[0].mxu0
    %v505 = vadd.f32 0.0, %v504
    %v506 = vpop.f32.mrb[0].mxu0
    %v507 = vadd.f32 0.0, %v506
    %508 = vmatprep.mubr.bf16.mxu0 0
    %509 = vmatmul.mubr.bf16.gmra.mrb[0].mxu0 %v338
    %v510 = vpop.f32.mrb[0].mxu0
    %v511 = vadd.f32 0.0, %v510
    %v512 = vpop.f32.mrb[0].mxu0
    %v513 = vadd.f32 0.0, %v512
    %v514 = vpop.f32.mrb[0].mxu0
    %v515 = vadd.f32 0.0, %v514
    %v516 = vpop.f32.mrb[0].mxu0
    %v517 = vadd.f32 0.0, %v516
    %518 = vmatprep.mubr.bf16.mxu0 0
    %519 = vmatmul.mubr.bf16.gmra.mrb[0].mxu0 %v341
    %v520 = vpop.f32.mrb[0].mxu0
    %v521 = vadd.f32 0.0, %v520
    %v522 = vpop.f32.mrb[0].mxu0
    %v523 = vadd.f32 0.0, %v522
    %v524 = vpop.f32.mrb[0].mxu0
    %v525 = vadd.f32 0.0, %v524
    %v526 = vpop.f32.mrb[0].mxu0
    %v527 = vadd.f32 0.0, %v526
    %528 = vmatprep.mubr.bf16.mxu0 0
    %529 = vmatmul.mubr.bf16.gmra.mrb[0].mxu0 %v344
    %v530 = vpop.f32.mrb[0].mxu0
    %v531 = vadd.f32 0.0, %v530
    %v532 = vpop.f32.mrb[0].mxu0
    %v533 = vadd.f32 0.0, %v532
    %v534 = vpop.f32.mrb[0].mxu0
    %v535 = vadd.f32 0.0, %v534
    %v536 = vpop.f32.mrb[0].mxu0
    %v537 = vadd.f32 0.0, %v536
    %538 = vdwg.mxu0
    %v543 = vunpack.c.l.b16 %v124
    %v544 = vunpack.c.h.b16 %v124
    %v545 = vunpack.c.l.b16 %v125
    %v546 = vunpack.c.h.b16 %v125
    %v547 = vunpack.c.l.b16 %v126
    %v548 = vunpack.c.h.b16 %v126
    %v549 = vunpack.c.l.b16 %v127
    %v550 = vunpack.c.h.b16 %v127
    %v551 = vpack.c.b16 %v545, %v543
    %v552 = vpack.c.b16 %v546, %v544
    %v553 = vpack.c.b16 %v549, %v547
    %v554 = vpack.c.b16 %v550, %v548
    %v559 = vsel %vm297, %v128, 0
    %v561 = vsel %vm297, %v129, 0
    %v563 = vsel %vm297, %v130, 0
    %v565 = vsel %vm297, %v131, 0
    %v567 = vsel %vm297, %v132, 0
    %v569 = vsel %vm297, %v133, 0
    %v571 = vsel %vm297, %v134, 0
    %v573 = vsel %vm297, %v135, 0
    %v575 = vsel %vm297, %v136, 0
    %v577 = vsel %vm297, %v137, 0
    %v579 = vsel %vm297, %v138, 0
    %v581 = vsel %vm297, %v139, 0
    %v583 = vsel %vm297, %v140, 0
    %v585 = vsel %vm297, %v141, 0
    %v587 = vsel %vm297, %v142, 0
    %v589 = vsel %vm297, %v143, 0
    %591 = vmatprep.subr.bf16.mxu0 %v552
    %592 = vmatpush1.bf16.msra.mxu0 %v551
    %593 = vmatprep.subr.bf16.mxu0 %v554
    %594 = vmatpush1.bf16.msra.mxu0 %v553
    %595 = vmatprep.subr.bf16.mxu0 0
    %596 = vmatpush1.bf16.msra.mxu0 0
    %597 = vmatprep.subr.bf16.mxu0 0
    %598 = vmatpush1.bf16.msra.mxu0 0
    %599 = vmatprep.subr.bf16.mxu0 0
    %600 = vmatpush1.bf16.msra.mxu0 0
    %601 = vmatprep.subr.bf16.mxu0 0
    %602 = vmatpush1.bf16.msra.mxu0 0
    %603 = vmatprep.subr.bf16.mxu0 0
    %604 = vmatpush1.bf16.msra.mxu0 0
    %605 = vmatprep.subr.bf16.mxu0 0
    %606 = vmatpush1.bf16.msra.mxu0 0
    %607 = vmatprep.subr.bf16.mxu0 0
    %608 = vmatpush1.bf16.msra.mxu0 0
    %609 = vmatprep.subr.bf16.mxu0 0
    %610 = vmatpush1.bf16.msra.mxu0 0
    %611 = vmatprep.subr.bf16.mxu0 0
    %612 = vmatpush1.bf16.msra.mxu0 0
    %613 = vmatprep.subr.bf16.mxu0 0
    %614 = vmatpush1.bf16.msra.mxu0 0
    %615 = vmatprep.subr.bf16.mxu0 0
    %616 = vmatpush1.bf16.msra.mxu0 0
    %617 = vmatprep.subr.bf16.mxu0 0
    %618 = vmatpush1.bf16.msra.mxu0 0
    %619 = vmatprep.subr.bf16.mxu0 0
    %620 = vmatpush1.bf16.msra.mxu0 0
    %621 = vmatprep.subr.bf16.mxu0 0
    %622 = vmatpush1.bf16.msra.mxu0 0
    %623 = vmatprep.mubr.bf16.mxu0 0
    %624 = vmatmul.mubr.bf16.gmra.mrb[0].mxu0 %v559
    %v625 = vpop.f32.mrb[0].mxu0
    %v626 = vadd.f32 %v381, %v625
    %v627 = vpop.f32.mrb[0].mxu0
    %v628 = vadd.f32 %v383, %v627
    %v629 = vpop.f32.mrb[0].mxu0
    %v630 = vadd.f32 %v385, %v629
    %v631 = vpop.f32.mrb[0].mxu0
    %v632 = vadd.f32 %v387, %v631
    %633 = vmatprep.mubr.bf16.mxu0 0
    %634 = vmatmul.mubr.bf16.gmra.mrb[0].mxu0 %v561
    %v635 = vpop.f32.mrb[0].mxu0
    %v636 = vadd.f32 %v391, %v635
    %v637 = vpop.f32.mrb[0].mxu0
    %v638 = vadd.f32 %v393, %v637
    %v639 = vpop.f32.mrb[0].mxu0
    %v640 = vadd.f32 %v395, %v639
    %v641 = vpop.f32.mrb[0].mxu0
    %v642 = vadd.f32 %v397, %v641
    %643 = vmatprep.mubr.bf16.mxu0 0
    %644 = vmatmul.mubr.bf16.gmra.mrb[0].mxu0 %v563
    %v645 = vpop.f32.mrb[0].mxu0
    %v646 = vadd.f32 %v401, %v645
    %v647 = vpop.f32.mrb[0].mxu0
    %v648 = vadd.f32 %v403, %v647
    %v649 = vpop.f32.mrb[0].mxu0
    %v650 = vadd.f32 %v405, %v649
    %v651 = vpop.f32.mrb[0].mxu0
    %v652 = vadd.f32 %v407, %v651
    %653 = vmatprep.mubr.bf16.mxu0 0
    %654 = vmatmul.mubr.bf16.gmra.mrb[0].mxu0 %v565
    %v655 = vpop.f32.mrb[0].mxu0
    %v656 = vadd.f32 %v411, %v655
    %v657 = vpop.f32.mrb[0].mxu0
    %v658 = vadd.f32 %v413, %v657
    %v659 = vpop.f32.mrb[0].mxu0
    %v660 = vadd.f32 %v415, %v659
    %v661 = vpop.f32.mrb[0].mxu0
    %v662 = vadd.f32 %v417, %v661
    %663 = vmatprep.mubr.bf16.mxu0 0
    %664 = vmatmul.mubr.bf16.gmra.mrb[0].mxu0 %v567
    %v665 = vpop.f32.mrb[0].mxu0
    %v666 = vadd.f32 %v421, %v665
    %v667 = vpop.f32.mrb[0].mxu0
    %v668 = vadd.f32 %v423, %v667
    %v669 = vpop.f32.mrb[0].mxu0
    %v670 = vadd.f32 %v425, %v669
    %v671 = vpop.f32.mrb[0].mxu0
    %v672 = vadd.f32 %v427, %v671
    %673 = vmatprep.mubr.bf16.mxu0 0
    %674 = vmatmul.mubr.bf16.gmra.mrb[0].mxu0 %v569
    %v675 = vpop.f32.mrb[0].mxu0
    %v676 = vadd.f32 %v431, %v675
    %v677 = vpop.f32.mrb[0].mxu0
    %v678 = vadd.f32 %v433, %v677
    %v679 = vpop.f32.mrb[0].mxu0
    %v680 = vadd.f32 %v435, %v679
    %v681 = vpop.f32.mrb[0].mxu0
    %v682 = vadd.f32 %v437, %v681
    %683 = vmatprep.mubr.bf16.mxu0 0
    %684 = vmatmul.mubr.bf16.gmra.mrb[0].mxu0 %v571
    %v685 = vpop.f32.mrb[0].mxu0
    %v686 = vadd.f32 %v441, %v685
    %v687 = vpop.f32.mrb[0].mxu0
    %v688 = vadd.f32 %v443, %v687
    %v689 = vpop.f32.mrb[0].mxu0
    %v690 = vadd.f32 %v445, %v689
    %v691 = vpop.f32.mrb[0].mxu0
    %v692 = vadd.f32 %v447, %v691
    %693 = vmatprep.mubr.bf16.mxu0 0
    %694 = vmatmul.mubr.bf16.gmra.mrb[0].mxu0 %v573
    %v695 = vpop.f32.mrb[0].mxu0
    %v696 = vadd.f32 %v451, %v695
    %v697 = vpop.f32.mrb[0].mxu0
    %v698 = vadd.f32 %v453, %v697
    %v699 = vpop.f32.mrb[0].mxu0
    %v700 = vadd.f32 %v455, %v699
    %v701 = vpop.f32.mrb[0].mxu0
    %v702 = vadd.f32 %v457, %v701
    %703 = vmatprep.mubr.bf16.mxu0 0
    %704 = vmatmul.mubr.bf16.gmra.mrb[0].mxu0 %v575
    %v705 = vpop.f32.mrb[0].mxu0
    %v706 = vadd.f32 %v461, %v705
    %v707 = vpop.f32.mrb[0].mxu0
    %v708 = vadd.f32 %v463, %v707
    %v709 = vpop.f32.mrb[0].mxu0
    %v710 = vadd.f32 %v465, %v709
    %v711 = vpop.f32.mrb[0].mxu0
    %v712 = vadd.f32 %v467, %v711
    %713 = vmatprep.mubr.bf16.mxu0 0
    %714 = vmatmul.mubr.bf16.gmra.mrb[0].mxu0 %v577
    %v715 = vpop.f32.mrb[0].mxu0
    %v716 = vadd.f32 %v471, %v715
    %v717 = vpop.f32.mrb[0].mxu0
    %v718 = vadd.f32 %v473, %v717
    %v719 = vpop.f32.mrb[0].mxu0
    %v720 = vadd.f32 %v475, %v719
    %v721 = vpop.f32.mrb[0].mxu0
    %v722 = vadd.f32 %v477, %v721
    %723 = vmatprep.mubr.bf16.mxu0 0
    %724 = vmatmul.mubr.bf16.gmra.mrb[0].mxu0 %v579
    %v725 = vpop.f32.mrb[0].mxu0
    %v726 = vadd.f32 %v481, %v725
    %v727 = vpop.f32.mrb[0].mxu0
    %v728 = vadd.f32 %v483, %v727
    %v729 = vpop.f32.mrb[0].mxu0
    %v730 = vadd.f32 %v485, %v729
    %v731 = vpop.f32.mrb[0].mxu0
    %v732 = vadd.f32 %v487, %v731
    %733 = vmatprep.mubr.bf16.mxu0 0
    %734 = vmatmul.mubr.bf16.gmra.mrb[0].mxu0 %v581
    %v735 = vpop.f32.mrb[0].mxu0
    %v736 = vadd.f32 %v491, %v735
    %v737 = vpop.f32.mrb[0].mxu0
    %v738 = vadd.f32 %v493, %v737
    %v739 = vpop.f32.mrb[0].mxu0
    %v740 = vadd.f32 %v495, %v739
    %v741 = vpop.f32.mrb[0].mxu0
    %v742 = vadd.f32 %v497, %v741
    %743 = vmatprep.mubr.bf16.mxu0 0
    %744 = vmatmul.mubr.bf16.gmra.mrb[0].mxu0 %v583
    %v745 = vpop.f32.mrb[0].mxu0
    %v746 = vadd.f32 %v501, %v745
    %v747 = vpop.f32.mrb[0].mxu0
    %v748 = vadd.f32 %v503, %v747
    %v749 = vpop.f32.mrb[0].mxu0
    %v750 = vadd.f32 %v505, %v749
    %v751 = vpop.f32.mrb[0].mxu0
    %v752 = vadd.f32 %v507, %v751
    %753 = vmatprep.mubr.bf16.mxu0 0
    %754 = vmatmul.mubr.bf16.gmra.mrb[0].mxu0 %v585
    %v755 = vpop.f32.mrb[0].mxu0
    %v756 = vadd.f32 %v511, %v755
    %v757 = vpop.f32.mrb[0].mxu0
    %v758 = vadd.f32 %v513, %v757
    %v759 = vpop.f32.mrb[0].mxu0
    %v760 = vadd.f32 %v515, %v759
    %v761 = vpop.f32.mrb[0].mxu0
    %v762 = vadd.f32 %v517, %v761
    %763 = vmatprep.mubr.bf16.mxu0 0
    %764 = vmatmul.mubr.bf16.gmra.mrb[0].mxu0 %v587
    %v765 = vpop.f32.mrb[0].mxu0
    %v766 = vadd.f32 %v521, %v765
    %v767 = vpop.f32.mrb[0].mxu0
    %v768 = vadd.f32 %v523, %v767
    %v769 = vpop.f32.mrb[0].mxu0
    %v770 = vadd.f32 %v525, %v769
    %v771 = vpop.f32.mrb[0].mxu0
    %v772 = vadd.f32 %v527, %v771
    %773 = vmatprep.mubr.bf16.mxu0 0
    %774 = vmatmul.mubr.bf16.gmra.mrb[0].mxu0 %v589
    %v775 = vpop.f32.mrb[0].mxu0
    %v776 = vadd.f32 %v531, %v775
    %v777 = vpop.f32.mrb[0].mxu0
    %v778 = vadd.f32 %v533, %v777
    %v779 = vpop.f32.mrb[0].mxu0
    %v780 = vadd.f32 %v535, %v779
    %v781 = vpop.f32.mrb[0].mxu0
    %v782 = vadd.f32 %v537, %v781
    %783 = vdwg.mxu0
    %s784 = scalar_lea.vmem %s1, 64
    %v785 = vld [vmem:[%s784] sm:$0xff]
    %v786 = vld [vmem:[%s784 + $0x8] sm:$0xff]
    %v787 = vld [vmem:[%s784 + $0x10] sm:$0xff]
    %v788 = vld [vmem:[%s784 + $0x18] sm:$0xff]
    %vm805 = vcmask 1046528
    %v806 = vrot.slane %v128, 1
    %v807 = vrot.slane %v129, 1
    %v808 = vsel %vm805, %v806, %v807
    %v809 = vrot.slane %v130, 1
    %v810 = vsel %vm805, %v807, %v809
    %v811 = vrot.slane %v131, 1
    %v812 = vsel %vm805, %v809, %v811
    %v813 = vrot.slane %v132, 1
    %v814 = vsel %vm805, %v811, %v813
    %v815 = vrot.slane %v133, 1
    %v816 = vsel %vm805, %v813, %v815
    %v817 = vrot.slane %v134, 1
    %v818 = vsel %vm805, %v815, %v817
    %v819 = vrot.slane %v135, 1
    %v820 = vsel %vm805, %v817, %v819
    %v821 = vrot.slane %v136, 1
    %v822 = vsel %vm805, %v819, %v821
    %v823 = vrot.slane %v137, 1
    %v824 = vsel %vm805, %v821, %v823
    %v825 = vrot.slane %v138, 1
    %v826 = vsel %vm805, %v823, %v825
    %v827 = vrot.slane %v139, 1
    %v828 = vsel %vm805, %v825, %v827
    %v829 = vrot.slane %v140, 1
    %v830 = vsel %vm805, %v827, %v829
    %v831 = vrot.slane %v141, 1
    %v832 = vsel %vm805, %v829, %v831
    %v833 = vrot.slane %v142, 1
    %v834 = vsel %vm805, %v831, %v833
    %v835 = vrot.slane %v143, 1
    %v836 = vsel %vm805, %v833, %v835
    %v841 = vunpack.c.l.b16 %v785
    %v842 = vunpack.c.h.b16 %v785
    %v843 = vunpack.c.l.b16 %v786
    %v844 = vunpack.c.h.b16 %v786
    %v845 = vunpack.c.l.b16 %v787
    %v846 = vunpack.c.h.b16 %v787
    %v847 = vunpack.c.l.b16 %v788
    %v848 = vunpack.c.h.b16 %v788
    %v849 = vpack.c.b16 %v843, %v841
    %v850 = vpack.c.b16 %v844, %v842
    %v851 = vpack.c.b16 %v847, %v845
    %v852 = vpack.c.b16 %v848, %v846
    %v858 = vsel %vm297, %v808, 0
    %v861 = vsel %vm297, %v810, 0
    %v864 = vsel %vm297, %v812, 0
    %v867 = vsel %vm297, %v814, 0
    %v870 = vsel %vm297, %v816, 0
    %v873 = vsel %vm297, %v818, 0
    %v876 = vsel %vm297, %v820, 0
    %v879 = vsel %vm297, %v822, 0
    %v882 = vsel %vm297, %v824, 0
    %v885 = vsel %vm297, %v826, 0
    %v888 = vsel %vm297, %v828, 0
    %v891 = vsel %vm297, %v830, 0
    %v894 = vsel %vm297, %v832, 0
    %v897 = vsel %vm297, %v834, 0
    %v900 = vsel %vm297, %v836, 0
    %v903 = vsel %vm297, %v835, 0
    %905 = vmatprep.subr.bf16.mxu0 %v850
    %906 = vmatpush1.bf16.msra.mxu0 %v849
    %907 = vmatprep.subr.bf16.mxu0 %v852
    %908 = vmatpush1.bf16.msra.mxu0 %v851
    %909 = vmatprep.subr.bf16.mxu0 0
    %910 = vmatpush1.bf16.msra.mxu0 0
    %911 = vmatprep.subr.bf16.mxu0 0
    %912 = vmatpush1.bf16.msra.mxu0 0
    %913 = vmatprep.subr.bf16.mxu0 0
    %914 = vmatpush1.bf16.msra.mxu0 0
    %915 = vmatprep.subr.bf16.mxu0 0
    %916 = vmatpush1.bf16.msra.mxu0 0
    %917 = vmatprep.subr.bf16.mxu0 0
    %918 = vmatpush1.bf16.msra.mxu0 0
    %919 = vmatprep.subr.bf16.mxu0 0
    %920 = vmatpush1.bf16.msra.mxu0 0
    %921 = vmatprep.subr.bf16.mxu0 0
    %922 = vmatpush1.bf16.msra.mxu0 0
    %923 = vmatprep.subr.bf16.mxu0 0
    %924 = vmatpush1.bf16.msra.mxu0 0
    %925 = vmatprep.subr.bf16.mxu0 0
    %926 = vmatpush1.bf16.msra.mxu0 0
    %927 = vmatprep.subr.bf16.mxu0 0
    %928 = vmatpush1.bf16.msra.mxu0 0
    %929 = vmatprep.subr.bf16.mxu0 0
    %930 = vmatpush1.bf16.msra.mxu0 0
    %931 = vmatprep.subr.bf16.mxu0 0
    %932 = vmatpush1.bf16.msra.mxu0 0
    %933 = vmatprep.subr.bf16.mxu0 0
    %934 = vmatpush1.bf16.msra.mxu0 0
    %935 = vmatprep.subr.bf16.mxu0 0
    %936 = vmatpush1.bf16.msra.mxu0 0
    %937 = vmatprep.mubr.bf16.mxu0 0
    %938 = vmatmul.mubr.bf16.gmra.mrb[0].mxu0 %v858
    %v939 = vpop.f32.mrb[0].mxu0
    %v940 = vadd.f32 0.0, %v939
    %v941 = vpop.f32.mrb[0].mxu0
    %v942 = vadd.f32 0.0, %v941
    %v943 = vpop.f32.mrb[0].mxu0
    %v944 = vadd.f32 0.0, %v943
    %v945 = vpop.f32.mrb[0].mxu0
    %v946 = vadd.f32 0.0, %v945
    %947 = vmatprep.mubr.bf16.mxu0 0
    %948 = vmatmul.mubr.bf16.gmra.mrb[0].mxu0 %v861
    %v949 = vpop.f32.mrb[0].mxu0
    %v950 = vadd.f32 0.0, %v949
    %v951 = vpop.f32.mrb[0].mxu0
    %v952 = vadd.f32 0.0, %v951
    %v953 = vpop.f32.mrb[0].mxu0
    %v954 = vadd.f32 0.0, %v953
    %v955 = vpop.f32.mrb[0].mxu0
    %v956 = vadd.f32 0.0, %v955
    %957 = vmatprep.mubr.bf16.mxu0 0
    %958 = vmatmul.mubr.bf16.gmra.mrb[0].mxu0 %v864
    %v959 = vpop.f32.mrb[0].mxu0
    %v960 = vadd.f32 0.0, %v959
    %v961 = vpop.f32.mrb[0].mxu0
    %v962 = vadd.f32 0.0, %v961
    %v963 = vpop.f32.mrb[0].mxu0
    %v964 = vadd.f32 0.0, %v963
    %v965 = vpop.f32.mrb[0].mxu0
    %v966 = vadd.f32 0.0, %v965
    %967 = vmatprep.mubr.bf16.mxu0 0
    %968 = vmatmul.mubr.bf16.gmra.mrb[0].mxu0 %v867
    %v969 = vpop.f32.mrb[0].mxu0
    %v970 = vadd.f32 0.0, %v969
    %v971 = vpop.f32.mrb[0].mxu0
    %v972 = vadd.f32 0.0, %v971
    %v973 = vpop.f32.mrb[0].mxu0
    %v974 = vadd.f32 0.0, %v973
    %v975 = vpop.f32.mrb[0].mxu0
    %v976 = vadd.f32 0.0, %v975
    %977 = vmatprep.mubr.bf16.mxu0 0
    %978 = vmatmul.mubr.bf16.gmra.mrb[0].mxu0 %v870
    %v979 = vpop.f32.mrb[0].mxu0
    %v980 = vadd.f32 0.0, %v979
    %v981 = vpop.f32.mrb[0].mxu0
    %v982 = vadd.f32 0.0, %v981
    %v983 = vpop.f32.mrb[0].mxu0
    %v984 = vadd.f32 0.0, %v983
    %v985 = vpop.f32.mrb[0].mxu0
    %v986 = vadd.f32 0.0, %v985
    %987 = vmatprep.mubr.bf16.mxu0 0
    %988 = vmatmul.mubr.bf16.gmra.mrb[0].mxu0 %v873
    %v989 = vpop.f32.mrb[0].mxu0
    %v990 = vadd.f32 0.0, %v989
    %v991 = vpop.f32.mrb[0].mxu0
    %v992 = vadd.f32 0.0, %v991
    %v993 = vpop.f32.mrb[0].mxu0
    %v994 = vadd.f32 0.0, %v993
    %v995 = vpop.f32.mrb[0].mxu0
    %v996 = vadd.f32 0.0, %v995
    %997 = vmatprep.mubr.bf16.mxu0 0
    %998 = vmatmul.mubr.bf16.gmra.mrb[0].mxu0 %v876
    %v999 = vpop.f32.mrb[0].mxu0
    %v1000 = vadd.f32 0.0, %v999
    %v1001 = vpop.f32.mrb[0].mxu0
    %v1002 = vadd.f32 0.0, %v1001
    %v1003 = vpop.f32.mrb[0].mxu0
    %v1004 = vadd.f32 0.0, %v1003
    %v1005 = vpop.f32.mrb[0].mxu0
    %v1006 = vadd.f32 0.0, %v1005
    %1007 = vmatprep.mubr.bf16.mxu0 0
    %1008 = vmatmul.mubr.bf16.gmra.mrb[0].mxu0 %v879
    %v1009 = vpop.f32.mrb[0].mxu0
    %v1010 = vadd.f32 0.0, %v1009
    %v1011 = vpop.f32.mrb[0].mxu0
    %v1012 = vadd.f32 0.0, %v1011
    %v1013 = vpop.f32.mrb[0].mxu0
    %v1014 = vadd.f32 0.0, %v1013
    %v1015 = vpop.f32.mrb[0].mxu0
    %v1016 = vadd.f32 0.0, %v1015
    %1017 = vmatprep.mubr.bf16.mxu0 0
    %1018 = vmatmul.mubr.bf16.gmra.mrb[0].mxu0 %v882
    %v1019 = vpop.f32.mrb[0].mxu0
    %v1020 = vadd.f32 0.0, %v1019
    %v1021 = vpop.f32.mrb[0].mxu0
    %v1022 = vadd.f32 0.0, %v1021
    %v1023 = vpop.f32.mrb[0].mxu0
    %v1024 = vadd.f32 0.0, %v1023
    %v1025 = vpop.f32.mrb[0].mxu0
    %v1026 = vadd.f32 0.0, %v1025
    %1027 = vmatprep.mubr.bf16.mxu0 0
    %1028 = vmatmul.mubr.bf16.gmra.mrb[0].mxu0 %v885
    %v1029 = vpop.f32.mrb[0].mxu0
    %v1030 = vadd.f32 0.0, %v1029
    %v1031 = vpop.f32.mrb[0].mxu0
    %v1032 = vadd.f32 0.0, %v1031
    %v1033 = vpop.f32.mrb[0].mxu0
    %v1034 = vadd.f32 0.0, %v1033
    %v1035 = vpop.f32.mrb[0].mxu0
    %v1036 = vadd.f32 0.0, %v1035
    %1037 = vmatprep.mubr.bf16.mxu0 0
    %1038 = vmatmul.mubr.bf16.gmra.mrb[0].mxu0 %v888
    %v1039 = vpop.f32.mrb[0].mxu0
    %v1040 = vadd.f32 0.0, %v1039
    %v1041 = vpop.f32.mrb[0].mxu0
    %v1042 = vadd.f32 0.0, %v1041
    %v1043 = vpop.f32.mrb[0].mxu0
    %v1044 = vadd.f32 0.0, %v1043
    %v1045 = vpop.f32.mrb[0].mxu0
    %v1046 = vadd.f32 0.0, %v1045
    %1047 = vmatprep.mubr.bf16.mxu0 0
    %1048 = vmatmul.mubr.bf16.gmra.mrb[0].mxu0 %v891
    %v1049 = vpop.f32.mrb[0].mxu0
    %v1050 = vadd.f32 0.0, %v1049
    %v1051 = vpop.f32.mrb[0].mxu0
    %v1052 = vadd.f32 0.0, %v1051
    %v1053 = vpop.f32.mrb[0].mxu0
    %v1054 = vadd.f32 0.0, %v1053
    %v1055 = vpop.f32.mrb[0].mxu0
    %v1056 = vadd.f32 0.0, %v1055
    %1057 = vmatprep.mubr.bf16.mxu0 0
    %1058 = vmatmul.mubr.bf16.gmra.mrb[0].mxu0 %v894
    %v1059 = vpop.f32.mrb[0].mxu0
    %v1060 = vadd.f32 0.0, %v1059
    %v1061 = vpop.f32.mrb[0].mxu0
    %v1062 = vadd.f32 0.0, %v1061
    %v1063 = vpop.f32.mrb[0].mxu0
    %v1064 = vadd.f32 0.0, %v1063
    %v1065 = vpop.f32.mrb[0].mxu0
    %v1066 = vadd.f32 0.0, %v1065
    %1067 = vmatprep.mubr.bf16.mxu0 0
    %1068 = vmatmul.mubr.bf16.gmra.mrb[0].mxu0 %v897
    %v1069 = vpop.f32.mrb[0].mxu0
    %v1070 = vadd.f32 0.0, %v1069
    %v1071 = vpop.f32.mrb[0].mxu0
    %v1072 = vadd.f32 0.0, %v1071
    %v1073 = vpop.f32.mrb[0].mxu0
    %v1074 = vadd.f32 0.0, %v1073
    %v1075 = vpop.f32.mrb[0].mxu0
    %v1076 = vadd.f32 0.0, %v1075
    %1077 = vmatprep.mubr.bf16.mxu0 0
    %1078 = vmatmul.mubr.bf16.gmra.mrb[0].mxu0 %v900
    %v1079 = vpop.f32.mrb[0].mxu0
    %v1080 = vadd.f32 0.0, %v1079
    %v1081 = vpop.f32.mrb[0].mxu0
    %v1082 = vadd.f32 0.0, %v1081
    %v1083 = vpop.f32.mrb[0].mxu0
    %v1084 = vadd.f32 0.0, %v1083
    %v1085 = vpop.f32.mrb[0].mxu0
    %v1086 = vadd.f32 0.0, %v1085
    %1087 = vmatprep.mubr.bf16.mxu0 0
    %1088 = vmatmul.mubr.bf16.gmra.mrb[0].mxu0 %v903
    %v1089 = vpop.f32.mrb[0].mxu0
    %v1090 = vadd.f32 0.0, %v1089
    %v1091 = vpop.f32.mrb[0].mxu0
    %v1092 = vadd.f32 0.0, %v1091
    %v1093 = vpop.f32.mrb[0].mxu0
    %v1094 = vadd.f32 0.0, %v1093
    %v1095 = vpop.f32.mrb[0].mxu0
    %v1096 = vadd.f32 0.0, %v1095
    %1097 = vdwg.mxu0
    %v1098 = vadd.f32 %v626, %v940
    %v1099 = vadd.f32 %v628, %v942
    %v1100 = vadd.f32 %v630, %v944
    %v1101 = vadd.f32 %v632, %v946
    %v1102 = vadd.f32 %v636, %v950
    %v1103 = vadd.f32 %v638, %v952
    %v1104 = vadd.f32 %v640, %v954
    %v1105 = vadd.f32 %v642, %v956
    %v1106 = vadd.f32 %v646, %v960
    %v1107 = vadd.f32 %v648, %v962
    %v1108 = vadd.f32 %v650, %v964
    %v1109 = vadd.f32 %v652, %v966
    %v1110 = vadd.f32 %v656, %v970
    %v1111 = vadd.f32 %v658, %v972
    %v1112 = vadd.f32 %v660, %v974
    %v1113 = vadd.f32 %v662, %v976
    %v1114 = vadd.f32 %v666, %v980
    %v1115 = vadd.f32 %v668, %v982
    %v1116 = vadd.f32 %v670, %v984
    %v1117 = vadd.f32 %v672, %v986
    %v1118 = vadd.f32 %v676, %v990
    %v1119 = vadd.f32 %v678, %v992
    %v1120 = vadd.f32 %v680, %v994
    %v1121 = vadd.f32 %v682, %v996
    %v1122 = vadd.f32 %v686, %v1000
    %v1123 = vadd.f32 %v688, %v1002
    %v1124 = vadd.f32 %v690, %v1004
    %v1125 = vadd.f32 %v692, %v1006
    %v1126 = vadd.f32 %v696, %v1010
    %v1127 = vadd.f32 %v698, %v1012
    %v1128 = vadd.f32 %v700, %v1014
    %v1129 = vadd.f32 %v702, %v1016
    %v1130 = vadd.f32 %v706, %v1020
    %v1131 = vadd.f32 %v708, %v1022
    %v1132 = vadd.f32 %v710, %v1024
    %v1133 = vadd.f32 %v712, %v1026
    %v1134 = vadd.f32 %v716, %v1030
    %v1135 = vadd.f32 %v718, %v1032
    %v1136 = vadd.f32 %v720, %v1034
    %v1137 = vadd.f32 %v722, %v1036
    %v1138 = vadd.f32 %v726, %v1040
    %v1139 = vadd.f32 %v728, %v1042
    %v1140 = vadd.f32 %v730, %v1044
    %v1141 = vadd.f32 %v732, %v1046
    %v1142 = vadd.f32 %v736, %v1050
    %v1143 = vadd.f32 %v738, %v1052
    %v1144 = vadd.f32 %v740, %v1054
    %v1145 = vadd.f32 %v742, %v1056
    %v1146 = vadd.f32 %v746, %v1060
    %v1147 = vadd.f32 %v748, %v1062
    %v1148 = vadd.f32 %v750, %v1064
    %v1149 = vadd.f32 %v752, %v1066
    %v1150 = vadd.f32 %v756, %v1070
    %v1151 = vadd.f32 %v758, %v1072
    %v1152 = vadd.f32 %v760, %v1074
    %v1153 = vadd.f32 %v762, %v1076
    %v1154 = vadd.f32 %v766, %v1080
    %v1155 = vadd.f32 %v768, %v1082
    %v1156 = vadd.f32 %v770, %v1084
    %v1157 = vadd.f32 %v772, %v1086
    %v1158 = vadd.f32 %v776, %v1090
    %v1159 = vadd.f32 %v778, %v1092
    %v1160 = vadd.f32 %v780, %v1094
    %v1161 = vadd.f32 %v782, %v1096
    %v1162 = vld [vmem:[%s2] sm:$0x3]
    %v1164 = vlaneseq
    %v1165 = vshrl.u32 %v1164, 7
    %v1166 = vsub.s32 0, %v1165
    %v1167 = vrot.slane %v1162, %v1166
    %v1168 = vlaneseq
    %v1169 = vshrl.u32 %v1168, 7
    %v1170 = vsub.s32 1, %v1169
    %v1171 = vrot.slane %v1162, %v1170
    %v1174 = vadd.f32 %v1098, %v1167
    %v1175 = vadd.f32 %v1099, %v1171
    %v1176 = vadd.f32 %v1100, %v1167
    %v1177 = vadd.f32 %v1101, %v1171
    %v1178 = vadd.f32 %v1102, %v1167
    %v1179 = vadd.f32 %v1103, %v1171
    %v1180 = vadd.f32 %v1104, %v1167
    %v1181 = vadd.f32 %v1105, %v1171
    %v1182 = vadd.f32 %v1106, %v1167
    %v1183 = vadd.f32 %v1107, %v1171
    %v1184 = vadd.f32 %v1108, %v1167
    %v1185 = vadd.f32 %v1109, %v1171
    %v1186 = vadd.f32 %v1110, %v1167
    %v1187 = vadd.f32 %v1111, %v1171
    %v1188 = vadd.f32 %v1112, %v1167
    %v1189 = vadd.f32 %v1113, %v1171
    %v1190 = vadd.f32 %v1114, %v1167
    %v1191 = vadd.f32 %v1115, %v1171
    %v1192 = vadd.f32 %v1116, %v1167
    %v1193 = vadd.f32 %v1117, %v1171
    %v1194 = vadd.f32 %v1118, %v1167
    %v1195 = vadd.f32 %v1119, %v1171
    %v1196 = vadd.f32 %v1120, %v1167
    %v1197 = vadd.f32 %v1121, %v1171
    %v1198 = vadd.f32 %v1122, %v1167
    %v1199 = vadd.f32 %v1123, %v1171
    %v1200 = vadd.f32 %v1124, %v1167
    %v1201 = vadd.f32 %v1125, %v1171
    %v1202 = vadd.f32 %v1126, %v1167
    %v1203 = vadd.f32 %v1127, %v1171
    %v1204 = vadd.f32 %v1128, %v1167
    %v1205 = vadd.f32 %v1129, %v1171
    %v1206 = vadd.f32 %v1130, %v1167
    %v1207 = vadd.f32 %v1131, %v1171
    %v1208 = vadd.f32 %v1132, %v1167
    %v1209 = vadd.f32 %v1133, %v1171
    %v1210 = vadd.f32 %v1134, %v1167
    %v1211 = vadd.f32 %v1135, %v1171
    %v1212 = vadd.f32 %v1136, %v1167
    %v1213 = vadd.f32 %v1137, %v1171
    %v1214 = vadd.f32 %v1138, %v1167
    %v1215 = vadd.f32 %v1139, %v1171
    %v1216 = vadd.f32 %v1140, %v1167
    %v1217 = vadd.f32 %v1141, %v1171
    %v1218 = vadd.f32 %v1142, %v1167
    %v1219 = vadd.f32 %v1143, %v1171
    %v1220 = vadd.f32 %v1144, %v1167
    %v1221 = vadd.f32 %v1145, %v1171
    %v1222 = vadd.f32 %v1146, %v1167
    %v1223 = vadd.f32 %v1147, %v1171
    %v1224 = vadd.f32 %v1148, %v1167
    %v1225 = vadd.f32 %v1149, %v1171
    %v1226 = vadd.f32 %v1150, %v1167
    %v1227 = vadd.f32 %v1151, %v1171
    %v1228 = vadd.f32 %v1152, %v1167
    %v1229 = vadd.f32 %v1153, %v1171
    %v1230 = vadd.f32 %v1154, %v1167
    %v1231 = vadd.f32 %v1155, %v1171
    %v1232 = vadd.f32 %v1156, %v1167
    %v1233 = vadd.f32 %v1157, %v1171
    %v1234 = vadd.f32 %v1158, %v1167
    %v1235 = vadd.f32 %v1159, %v1171
    %v1236 = vadd.f32 %v1160, %v1167
    %v1237 = vadd.f32 %v1161, %v1171
    %v1238 = vmax.f32 %v1174, 0.0
    %v1239 = vmax.f32 %v1175, 0.0
    %v1240 = vmax.f32 %v1176, 0.0
    %v1241 = vmax.f32 %v1177, 0.0
    %v1242 = vmax.f32 %v1178, 0.0
    %v1243 = vmax.f32 %v1179, 0.0
    %v1244 = vmax.f32 %v1180, 0.0
    %v1245 = vmax.f32 %v1181, 0.0
    %v1246 = vmax.f32 %v1182, 0.0
    %v1247 = vmax.f32 %v1183, 0.0
    %v1248 = vmax.f32 %v1184, 0.0
    %v1249 = vmax.f32 %v1185, 0.0
    %v1250 = vmax.f32 %v1186, 0.0
    %v1251 = vmax.f32 %v1187, 0.0
    %v1252 = vmax.f32 %v1188, 0.0
    %v1253 = vmax.f32 %v1189, 0.0
    %v1254 = vmax.f32 %v1190, 0.0
    %v1255 = vmax.f32 %v1191, 0.0
    %v1256 = vmax.f32 %v1192, 0.0
    %v1257 = vmax.f32 %v1193, 0.0
    %v1258 = vmax.f32 %v1194, 0.0
    %v1259 = vmax.f32 %v1195, 0.0
    %v1260 = vmax.f32 %v1196, 0.0
    %v1261 = vmax.f32 %v1197, 0.0
    %v1262 = vmax.f32 %v1198, 0.0
    %v1263 = vmax.f32 %v1199, 0.0
    %v1264 = vmax.f32 %v1200, 0.0
    %v1265 = vmax.f32 %v1201, 0.0
    %v1266 = vmax.f32 %v1202, 0.0
    %v1267 = vmax.f32 %v1203, 0.0
    %v1268 = vmax.f32 %v1204, 0.0
    %v1269 = vmax.f32 %v1205, 0.0
    %v1270 = vmax.f32 %v1206, 0.0
    %v1271 = vmax.f32 %v1207, 0.0
    %v1272 = vmax.f32 %v1208, 0.0
    %v1273 = vmax.f32 %v1209, 0.0
    %v1274 = vmax.f32 %v1210, 0.0
    %v1275 = vmax.f32 %v1211, 0.0
    %v1276 = vmax.f32 %v1212, 0.0
    %v1277 = vmax.f32 %v1213, 0.0
    %v1278 = vmax.f32 %v1214, 0.0
    %v1279 = vmax.f32 %v1215, 0.0
    %v1280 = vmax.f32 %v1216, 0.0
    %v1281 = vmax.f32 %v1217, 0.0
    %v1282 = vmax.f32 %v1218, 0.0
    %v1283 = vmax.f32 %v1219, 0.0
    %v1284 = vmax.f32 %v1220, 0.0
    %v1285 = vmax.f32 %v1221, 0.0
    %v1286 = vmax.f32 %v1222, 0.0
    %v1287 = vmax.f32 %v1223, 0.0
    %v1288 = vmax.f32 %v1224, 0.0
    %v1289 = vmax.f32 %v1225, 0.0
    %v1290 = vmax.f32 %v1226, 0.0
    %v1291 = vmax.f32 %v1227, 0.0
    %v1292 = vmax.f32 %v1228, 0.0
    %v1293 = vmax.f32 %v1229, 0.0
    %v1294 = vmax.f32 %v1230, 0.0
    %v1295 = vmax.f32 %v1231, 0.0
    %v1296 = vmax.f32 %v1232, 0.0
    %v1297 = vmax.f32 %v1233, 0.0
    %v1298 = vmax.f32 %v1234, 0.0
    %v1299 = vmax.f32 %v1235, 0.0
    %v1300 = vmax.f32 %v1236, 0.0
    %v1301 = vmax.f32 %v1237, 0.0
    %vm1366 = vcmask 1046528
    %v1367 = vrot.slane %v1238, 1
    %v1368 = vrot.slane %v1240, 1
    %v1369 = vsel %vm1366, %v1367, %v1368
    %v1370 = vrot.slane %v1239, 1
    %v1371 = vrot.slane %v1241, 1
    %v1372 = vsel %vm1366, %v1370, %v1371
    %v1373 = vrot.slane %v1242, 1
    %v1374 = vsel %vm1366, %v1368, %v1373
    %v1375 = vrot.slane %v1243, 1
    %v1376 = vsel %vm1366, %v1371, %v1375
    %v1377 = vrot.slane %v1244, 1
    %v1378 = vsel %vm1366, %v1373, %v1377
    %v1379 = vrot.slane %v1245, 1
    %v1380 = vsel %vm1366, %v1375, %v1379
    %v1381 = vrot.slane %v1246, 1
    %v1382 = vsel %vm1366, %v1377, %v1381
    %v1383 = vrot.slane %v1247, 1
    %v1384 = vsel %vm1366, %v1379, %v1383
    %v1385 = vrot.slane %v1248, 1
    %v1386 = vsel %vm1366, %v1381, %v1385
    %v1387 = vrot.slane %v1249, 1
    %v1388 = vsel %vm1366, %v1383, %v1387
    %v1389 = vrot.slane %v1250, 1
    %v1390 = vsel %vm1366, %v1385, %v1389
    %v1391 = vrot.slane %v1251, 1
    %v1392 = vsel %vm1366, %v1387, %v1391
    %v1393 = vrot.slane %v1252, 1
    %v1394 = vsel %vm1366, %v1389, %v1393
    %v1395 = vrot.slane %v1253, 1
    %v1396 = vsel %vm1366, %v1391, %v1395
    %v1397 = vrot.slane %v1254, 1
    %v1398 = vsel %vm1366, %v1393, %v1397
    %v1399 = vrot.slane %v1255, 1
    %v1400 = vsel %vm1366, %v1395, %v1399
    %v1401 = vrot.slane %v1256, 1
    %v1402 = vsel %vm1366, %v1397, %v1401
    %v1403 = vrot.slane %v1257, 1
    %v1404 = vsel %vm1366, %v1399, %v1403
    %v1405 = vrot.slane %v1258, 1
    %v1406 = vsel %vm1366, %v1401, %v1405
    %v1407 = vrot.slane %v1259, 1
    %v1408 = vsel %vm1366, %v1403, %v1407
    %v1409 = vrot.slane %v1260, 1
    %v1410 = vsel %vm1366, %v1405, %v1409
    %v1411 = vrot.slane %v1261, 1
    %v1412 = vsel %vm1366, %v1407, %v1411
    %v1413 = vrot.slane %v1262, 1
    %v1414 = vsel %vm1366, %v1409, %v1413
    %v1415 = vrot.slane %v1263, 1
    %v1416 = vsel %vm1366, %v1411, %v1415
    %v1417 = vrot.slane %v1264, 1
    %v1418 = vsel %vm1366, %v1413, %v1417
    %v1419 = vrot.slane %v1265, 1
    %v1420 = vsel %vm1366, %v1415, %v1419
    %v1421 = vrot.slane %v1266, 1
    %v1422 = vsel %vm1366, %v1417, %v1421
    %v1423 = vrot.slane %v1267, 1
    %v1424 = vsel %vm1366, %v1419, %v1423
    %v1425 = vrot.slane %v1268, 1
    %v1426 = vsel %vm1366, %v1421, %v1425
    %v1427 = vrot.slane %v1269, 1
    %v1428 = vsel %vm1366, %v1423, %v1427
    %v1429 = vrot.slane %v1270, 1
    %v1430 = vsel %vm1366, %v1425, %v1429
    %v1431 = vrot.slane %v1271, 1
    %v1432 = vsel %vm1366, %v1427, %v1431
    %v1433 = vrot.slane %v1272, 1
    %v1434 = vsel %vm1366, %v1429, %v1433
    %v1435 = vrot.slane %v1273, 1
    %v1436 = vsel %vm1366, %v1431, %v1435
    %v1437 = vrot.slane %v1274, 1
    %v1438 = vsel %vm1366, %v1433, %v1437
    %v1439 = vrot.slane %v1275, 1
    %v1440 = vsel %vm1366, %v1435, %v1439
    %v1441 = vrot.slane %v1276, 1
    %v1442 = vsel %vm1366, %v1437, %v1441
    %v1443 = vrot.slane %v1277, 1
    %v1444 = vsel %vm1366, %v1439, %v1443
    %v1445 = vrot.slane %v1278, 1
    %v1446 = vsel %vm1366, %v1441, %v1445
    %v1447 = vrot.slane %v1279, 1
    %v1448 = vsel %vm1366, %v1443, %v1447
    %v1449 = vrot.slane %v1280, 1
    %v1450 = vsel %vm1366, %v1445, %v1449
    %v1451 = vrot.slane %v1281, 1
    %v1452 = vsel %vm1366, %v1447, %v1451
    %v1453 = vrot.slane %v1282, 1
    %v1454 = vsel %vm1366, %v1449, %v1453
    %v1455 = vrot.slane %v1283, 1
    %v1456 = vsel %vm1366, %v1451, %v1455
    %v1457 = vrot.slane %v1284, 1
    %v1458 = vsel %vm1366, %v1453, %v1457
    %v1459 = vrot.slane %v1285, 1
    %v1460 = vsel %vm1366, %v1455, %v1459
    %v1461 = vrot.slane %v1286, 1
    %v1462 = vsel %vm1366, %v1457, %v1461
    %v1463 = vrot.slane %v1287, 1
    %v1464 = vsel %vm1366, %v1459, %v1463
    %v1465 = vrot.slane %v1288, 1
    %v1466 = vsel %vm1366, %v1461, %v1465
    %v1467 = vrot.slane %v1289, 1
    %v1468 = vsel %vm1366, %v1463, %v1467
    %v1469 = vrot.slane %v1290, 1
    %v1470 = vsel %vm1366, %v1465, %v1469
    %v1471 = vrot.slane %v1291, 1
    %v1472 = vsel %vm1366, %v1467, %v1471
    %v1473 = vrot.slane %v1292, 1
    %v1474 = vsel %vm1366, %v1469, %v1473
    %v1475 = vrot.slane %v1293, 1
    %v1476 = vsel %vm1366, %v1471, %v1475
    %v1477 = vrot.slane %v1294, 1
    %v1478 = vsel %vm1366, %v1473, %v1477
    %v1479 = vrot.slane %v1295, 1
    %v1480 = vsel %vm1366, %v1475, %v1479
    %v1481 = vrot.slane %v1296, 1
    %v1482 = vsel %vm1366, %v1477, %v1481
    %v1483 = vrot.slane %v1297, 1
    %v1484 = vsel %vm1366, %v1479, %v1483
    %v1485 = vrot.slane %v1298, 1
    %v1486 = vsel %vm1366, %v1481, %v1485
    %v1487 = vrot.slane %v1299, 1
    %v1488 = vsel %vm1366, %v1483, %v1487
    %v1489 = vrot.slane %v1300, 1
    %v1490 = vsel %vm1366, %v1485, %v1489
    %v1491 = vrot.slane %v1301, 1
    %v1492 = vsel %vm1366, %v1487, %v1491
    %v1557 = vmax.f32 %v1238, %v1369
    %v1558 = vmax.f32 %v1239, %v1372
    %v1559 = vmax.f32 %v1240, %v1374
    %v1560 = vmax.f32 %v1241, %v1376
    %v1561 = vmax.f32 %v1242, %v1378
    %v1562 = vmax.f32 %v1243, %v1380
    %v1563 = vmax.f32 %v1244, %v1382
    %v1564 = vmax.f32 %v1245, %v1384
    %v1565 = vmax.f32 %v1246, %v1386
    %v1566 = vmax.f32 %v1247, %v1388
    %v1567 = vmax.f32 %v1248, %v1390
    %v1568 = vmax.f32 %v1249, %v1392
    %v1569 = vmax.f32 %v1250, %v1394
    %v1570 = vmax.f32 %v1251, %v1396
    %v1571 = vmax.f32 %v1252, %v1398
    %v1572 = vmax.f32 %v1253, %v1400
    %v1573 = vmax.f32 %v1254, %v1402
    %v1574 = vmax.f32 %v1255, %v1404
    %v1575 = vmax.f32 %v1256, %v1406
    %v1576 = vmax.f32 %v1257, %v1408
    %v1577 = vmax.f32 %v1258, %v1410
    %v1578 = vmax.f32 %v1259, %v1412
    %v1579 = vmax.f32 %v1260, %v1414
    %v1580 = vmax.f32 %v1261, %v1416
    %v1581 = vmax.f32 %v1262, %v1418
    %v1582 = vmax.f32 %v1263, %v1420
    %v1583 = vmax.f32 %v1264, %v1422
    %v1584 = vmax.f32 %v1265, %v1424
    %v1585 = vmax.f32 %v1266, %v1426
    %v1586 = vmax.f32 %v1267, %v1428
    %v1587 = vmax.f32 %v1268, %v1430
    %v1588 = vmax.f32 %v1269, %v1432
    %v1589 = vmax.f32 %v1270, %v1434
    %v1590 = vmax.f32 %v1271, %v1436
    %v1591 = vmax.f32 %v1272, %v1438
    %v1592 = vmax.f32 %v1273, %v1440
    %v1593 = vmax.f32 %v1274, %v1442
    %v1594 = vmax.f32 %v1275, %v1444
    %v1595 = vmax.f32 %v1276, %v1446
    %v1596 = vmax.f32 %v1277, %v1448
    %v1597 = vmax.f32 %v1278, %v1450
    %v1598 = vmax.f32 %v1279, %v1452
    %v1599 = vmax.f32 %v1280, %v1454
    %v1600 = vmax.f32 %v1281, %v1456
    %v1601 = vmax.f32 %v1282, %v1458
    %v1602 = vmax.f32 %v1283, %v1460
    %v1603 = vmax.f32 %v1284, %v1462
    %v1604 = vmax.f32 %v1285, %v1464
    %v1605 = vmax.f32 %v1286, %v1466
    %v1606 = vmax.f32 %v1287, %v1468
    %v1607 = vmax.f32 %v1288, %v1470
    %v1608 = vmax.f32 %v1289, %v1472
    %v1609 = vmax.f32 %v1290, %v1474
    %v1610 = vmax.f32 %v1291, %v1476
    %v1611 = vmax.f32 %v1292, %v1478
    %v1612 = vmax.f32 %v1293, %v1480
    %v1613 = vmax.f32 %v1294, %v1482
    %v1614 = vmax.f32 %v1295, %v1484
    %v1615 = vmax.f32 %v1296, %v1486
    %v1616 = vmax.f32 %v1297, %v1488
    %v1617 = vmax.f32 %v1298, %v1490
    %v1618 = vmax.f32 %v1299, %v1492
    %v1619 = vmax.f32 %v1300, %v1489
    %v1620 = vmax.f32 %v1301, %v1491
    %1685 = vrot.lane.b32.xlu0 %v1557, 127
    %v1686 = vpop.permute.xlu0 %1685
    %1687 = vrot.lane.b32.xlu0 %v1558, 127
    %v1688 = vpop.permute.xlu0 %1687
    %1689 = vrot.lane.b32.xlu0 %v1559, 127
    %v1690 = vpop.permute.xlu0 %1689
    %1691 = vrot.lane.b32.xlu0 %v1560, 127
    %v1692 = vpop.permute.xlu0 %1691
    %1693 = vrot.lane.b32.xlu0 %v1561, 127
    %v1694 = vpop.permute.xlu0 %1693
    %1695 = vrot.lane.b32.xlu0 %v1562, 127
    %v1696 = vpop.permute.xlu0 %1695
    %1697 = vrot.lane.b32.xlu0 %v1563, 127
    %v1698 = vpop.permute.xlu0 %1697
    %1699 = vrot.lane.b32.xlu0 %v1564, 127
    %v1700 = vpop.permute.xlu0 %1699
    %1701 = vrot.lane.b32.xlu0 %v1565, 127
    %v1702 = vpop.permute.xlu0 %1701
    %1703 = vrot.lane.b32.xlu0 %v1566, 127
    %v1704 = vpop.permute.xlu0 %1703
    %1705 = vrot.lane.b32.xlu0 %v1567, 127
    %v1706 = vpop.permute.xlu0 %1705
    %1707 = vrot.lane.b32.xlu0 %v1568, 127
    %v1708 = vpop.permute.xlu0 %1707
    %1709 = vrot.lane.b32.xlu0 %v1569, 127
    %v1710 = vpop.permute.xlu0 %1709
    %1711 = vrot.lane.b32.xlu0 %v1570, 127
    %v1712 = vpop.permute.xlu0 %1711
    %1713 = vrot.lane.b32.xlu0 %v1571, 127
    %v1714 = vpop.permute.xlu0 %1713
    %1715 = vrot.lane.b32.xlu0 %v1572, 127
    %v1716 = vpop.permute.xlu0 %1715
    %1717 = vrot.lane.b32.xlu0 %v1573, 127
    %v1718 = vpop.permute.xlu0 %1717
    %1719 = vrot.lane.b32.xlu0 %v1574, 127
    %v1720 = vpop.permute.xlu0 %1719
    %1721 = vrot.lane.b32.xlu0 %v1575, 127
    %v1722 = vpop.permute.xlu0 %1721
    %1723 = vrot.lane.b32.xlu0 %v1576, 127
    %v1724 = vpop.permute.xlu0 %1723
    %1725 = vrot.lane.b32.xlu0 %v1577, 127
    %v1726 = vpop.permute.xlu0 %1725
    %1727 = vrot.lane.b32.xlu0 %v1578, 127
    %v1728 = vpop.permute.xlu0 %1727
    %1729 = vrot.lane.b32.xlu0 %v1579, 127
    %v1730 = vpop.permute.xlu0 %1729
    %1731 = vrot.lane.b32.xlu0 %v1580, 127
    %v1732 = vpop.permute.xlu0 %1731
    %1733 = vrot.lane.b32.xlu0 %v1581, 127
    %v1734 = vpop.permute.xlu0 %1733
    %1735 = vrot.lane.b32.xlu0 %v1582, 127
    %v1736 = vpop.permute.xlu0 %1735
    %1737 = vrot.lane.b32.xlu0 %v1583, 127
    %v1738 = vpop.permute.xlu0 %1737
    %1739 = vrot.lane.b32.xlu0 %v1584, 127
    %v1740 = vpop.permute.xlu0 %1739
    %1741 = vrot.lane.b32.xlu0 %v1585, 127
    %v1742 = vpop.permute.xlu0 %1741
    %1743 = vrot.lane.b32.xlu0 %v1586, 127
    %v1744 = vpop.permute.xlu0 %1743
    %1745 = vrot.lane.b32.xlu0 %v1587, 127
    %v1746 = vpop.permute.xlu0 %1745
    %1747 = vrot.lane.b32.xlu0 %v1588, 127
    %v1748 = vpop.permute.xlu0 %1747
    %1749 = vrot.lane.b32.xlu0 %v1589, 127
    %v1750 = vpop.permute.xlu0 %1749
    %1751 = vrot.lane.b32.xlu0 %v1590, 127
    %v1752 = vpop.permute.xlu0 %1751
    %1753 = vrot.lane.b32.xlu0 %v1591, 127
    %v1754 = vpop.permute.xlu0 %1753
    %1755 = vrot.lane.b32.xlu0 %v1592, 127
    %v1756 = vpop.permute.xlu0 %1755
    %1757 = vrot.lane.b32.xlu0 %v1593, 127
    %v1758 = vpop.permute.xlu0 %1757
    %1759 = vrot.lane.b32.xlu0 %v1594, 127
    %v1760 = vpop.permute.xlu0 %1759
    %1761 = vrot.lane.b32.xlu0 %v1595, 127
    %v1762 = vpop.permute.xlu0 %1761
    %1763 = vrot.lane.b32.xlu0 %v1596, 127
    %v1764 = vpop.permute.xlu0 %1763
    %1765 = vrot.lane.b32.xlu0 %v1597, 127
    %v1766 = vpop.permute.xlu0 %1765
    %1767 = vrot.lane.b32.xlu0 %v1598, 127
    %v1768 = vpop.permute.xlu0 %1767
    %1769 = vrot.lane.b32.xlu0 %v1599, 127
    %v1770 = vpop.permute.xlu0 %1769
    %1771 = vrot.lane.b32.xlu0 %v1600, 127
    %v1772 = vpop.permute.xlu0 %1771
    %1773 = vrot.lane.b32.xlu0 %v1601, 127
    %v1774 = vpop.permute.xlu0 %1773
    %1775 = vrot.lane.b32.xlu0 %v1602, 127
    %v1776 = vpop.permute.xlu0 %1775
    %1777 = vrot.lane.b32.xlu0 %v1603, 127
    %v1778 = vpop.permute.xlu0 %1777
    %1779 = vrot.lane.b32.xlu0 %v1604, 127
    %v1780 = vpop.permute.xlu0 %1779
    %1781 = vrot.lane.b32.xlu0 %v1605, 127
    %v1782 = vpop.permute.xlu0 %1781
    %1783 = vrot.lane.b32.xlu0 %v1606, 127
    %v1784 = vpop.permute.xlu0 %1783
    %1785 = vrot.lane.b32.xlu0 %v1607, 127
    %v1786 = vpop.permute.xlu0 %1785
    %1787 = vrot.lane.b32.xlu0 %v1608, 127
    %v1788 = vpop.permute.xlu0 %1787
    %1789 = vrot.lane.b32.xlu0 %v1609, 127
    %v1790 = vpop.permute.xlu0 %1789
    %1791 = vrot.lane.b32.xlu0 %v1610, 127
    %v1792 = vpop.permute.xlu0 %1791
    %1793 = vrot.lane.b32.xlu0 %v1611, 127
    %v1794 = vpop.permute.xlu0 %1793
    %1795 = vrot.lane.b32.xlu0 %v1612, 127
    %v1796 = vpop.permute.xlu0 %1795
    %1797 = vrot.lane.b32.xlu0 %v1613, 127
    %v1798 = vpop.permute.xlu0 %1797
    %1799 = vrot.lane.b32.xlu0 %v1614, 127
    %v1800 = vpop.permute.xlu0 %1799
    %1801 = vrot.lane.b32.xlu0 %v1615, 127
    %v1802 = vpop.permute.xlu0 %1801
    %1803 = vrot.lane.b32.xlu0 %v1616, 127
    %v1804 = vpop.permute.xlu0 %1803
    %1805 = vrot.lane.b32.xlu0 %v1617, 127
    %v1806 = vpop.permute.xlu0 %1805
    %1807 = vrot.lane.b32.xlu0 %v1618, 127
    %v1808 = vpop.permute.xlu0 %1807
    %1809 = vrot.lane.b32.xlu0 %v1619, 127
    %v1810 = vpop.permute.xlu0 %1809
    %1811 = vrot.lane.b32.xlu0 %v1620, 127
    %v1812 = vpop.permute.xlu0 %1811
    %vm1813 = vcmask 1039360
    %v1814 = vsel %vm1813, %v1686, %v1688
    %v1815 = vsel %vm1813, %v1690, %v1692
    %v1816 = vsel %vm1813, %v1694, %v1696
    %v1817 = vsel %vm1813, %v1698, %v1700
    %v1818 = vsel %vm1813, %v1702, %v1704
    %v1819 = vsel %vm1813, %v1706, %v1708
    %v1820 = vsel %vm1813, %v1710, %v1712
    %v1821 = vsel %vm1813, %v1714, %v1716
    %v1822 = vsel %vm1813, %v1718, %v1720
    %v1823 = vsel %vm1813, %v1722, %v1724
    %v1824 = vsel %vm1813, %v1726, %v1728
    %v1825 = vsel %vm1813, %v1730, %v1732
    %v1826 = vsel %vm1813, %v1734, %v1736
    %v1827 = vsel %vm1813, %v1738, %v1740
    %v1828 = vsel %vm1813, %v1742, %v1744
    %v1829 = vsel %vm1813, %v1746, %v1748
    %v1830 = vsel %vm1813, %v1750, %v1752
    %v1831 = vsel %vm1813, %v1754, %v1756
    %v1832 = vsel %vm1813, %v1758, %v1760
    %v1833 = vsel %vm1813, %v1762, %v1764
    %v1834 = vsel %vm1813, %v1766, %v1768
    %v1835 = vsel %vm1813, %v1770, %v1772
    %v1836 = vsel %vm1813, %v1774, %v1776
    %v1837 = vsel %vm1813, %v1778, %v1780
    %v1838 = vsel %vm1813, %v1782, %v1784
    %v1839 = vsel %vm1813, %v1786, %v1788
    %v1840 = vsel %vm1813, %v1790, %v1792
    %v1841 = vsel %vm1813, %v1794, %v1796
    %v1842 = vsel %vm1813, %v1798, %v1800
    %v1843 = vsel %vm1813, %v1802, %v1804
    %v1844 = vsel %vm1813, %v1806, %v1808
    %v1845 = vsel %vm1813, %v1810, %v1812
    %v1910 = vmax.f32 %v1557, %v1814
    %v1911 = vmax.f32 %v1558, %v1688
    %v1912 = vmax.f32 %v1559, %v1815
    %v1913 = vmax.f32 %v1560, %v1692
    %v1914 = vmax.f32 %v1561, %v1816
    %v1915 = vmax.f32 %v1562, %v1696
    %v1916 = vmax.f32 %v1563, %v1817
    %v1917 = vmax.f32 %v1564, %v1700
    %v1918 = vmax.f32 %v1565, %v1818
    %v1919 = vmax.f32 %v1566, %v1704
    %v1920 = vmax.f32 %v1567, %v1819
    %v1921 = vmax.f32 %v1568, %v1708
    %v1922 = vmax.f32 %v1569, %v1820
    %v1923 = vmax.f32 %v1570, %v1712
    %v1924 = vmax.f32 %v1571, %v1821
    %v1925 = vmax.f32 %v1572, %v1716
    %v1926 = vmax.f32 %v1573, %v1822
    %v1927 = vmax.f32 %v1574, %v1720
    %v1928 = vmax.f32 %v1575, %v1823
    %v1929 = vmax.f32 %v1576, %v1724
    %v1930 = vmax.f32 %v1577, %v1824
    %v1931 = vmax.f32 %v1578, %v1728
    %v1932 = vmax.f32 %v1579, %v1825
    %v1933 = vmax.f32 %v1580, %v1732
    %v1934 = vmax.f32 %v1581, %v1826
    %v1935 = vmax.f32 %v1582, %v1736
    %v1936 = vmax.f32 %v1583, %v1827
    %v1937 = vmax.f32 %v1584, %v1740
    %v1938 = vmax.f32 %v1585, %v1828
    %v1939 = vmax.f32 %v1586, %v1744
    %v1940 = vmax.f32 %v1587, %v1829
    %v1941 = vmax.f32 %v1588, %v1748
    %v1942 = vmax.f32 %v1589, %v1830
    %v1943 = vmax.f32 %v1590, %v1752
    %v1944 = vmax.f32 %v1591, %v1831
    %v1945 = vmax.f32 %v1592, %v1756
    %v1946 = vmax.f32 %v1593, %v1832
    %v1947 = vmax.f32 %v1594, %v1760
    %v1948 = vmax.f32 %v1595, %v1833
    %v1949 = vmax.f32 %v1596, %v1764
    %v1950 = vmax.f32 %v1597, %v1834
    %v1951 = vmax.f32 %v1598, %v1768
    %v1952 = vmax.f32 %v1599, %v1835
    %v1953 = vmax.f32 %v1600, %v1772
    %v1954 = vmax.f32 %v1601, %v1836
    %v1955 = vmax.f32 %v1602, %v1776
    %v1956 = vmax.f32 %v1603, %v1837
    %v1957 = vmax.f32 %v1604, %v1780
    %v1958 = vmax.f32 %v1605, %v1838
    %v1959 = vmax.f32 %v1606, %v1784
    %v1960 = vmax.f32 %v1607, %v1839
    %v1961 = vmax.f32 %v1608, %v1788
    %v1962 = vmax.f32 %v1609, %v1840
    %v1963 = vmax.f32 %v1610, %v1792
    %v1964 = vmax.f32 %v1611, %v1841
    %v1965 = vmax.f32 %v1612, %v1796
    %v1966 = vmax.f32 %v1613, %v1842
    %v1967 = vmax.f32 %v1614, %v1800
    %v1968 = vmax.f32 %v1615, %v1843
    %v1969 = vmax.f32 %v1616, %v1804
    %v1970 = vmax.f32 %v1617, %v1844
    %v1971 = vmax.f32 %v1618, %v1808
    %v1972 = vmax.f32 %v1619, %v1845
    %v1973 = vmax.f32 %v1620, %v1812
    %v1974 = vld [vmem:[%s3] sm:$0xff]
    %v1975 = vld [vmem:[%s3 + $0x8] sm:$0xff]
    %v1976 = vld [vmem:[%s3 + $0x10] sm:$0xff]
    %v1977 = vld [vmem:[%s3 + $0x18] sm:$0xff]
    %v1978 = vld [vmem:[%s3 + $0x20] sm:$0xff]
    %v1979 = vld [vmem:[%s3 + $0x28] sm:$0xff]
    %v1980 = vld [vmem:[%s3 + $0x30] sm:$0xff]
    %v1981 = vld [vmem:[%s3 + $0x38] sm:$0xff]
    %v1982 = vld [vmem:[%s3 + $0x40] sm:$0xff]
    %v1983 = vld [vmem:[%s3 + $0x48] sm:$0xff]
    %v1984 = vld [vmem:[%s3 + $0x50] sm:$0xff]
    %v1985 = vld [vmem:[%s3 + $0x58] sm:$0xff]
    %v1986 = vld [vmem:[%s3 + $0x60] sm:$0xff]
    %v1987 = vld [vmem:[%s3 + $0x68] sm:$0xff]
    %v1988 = vld [vmem:[%s3 + $0x70] sm:$0xff]
    %v1989 = vld [vmem:[%s3 + $0x78] sm:$0xff]
    %v1990 = vpack.c.bf16 %v1912, %v1910
    %v1991 = vpack.c.bf16 %v1913, %v1911
    %v1992 = vpack.c.bf16 %v1916, %v1914
    %v1993 = vpack.c.bf16 %v1917, %v1915
    %v1994 = vpack.c.bf16 %v1920, %v1918
    %v1995 = vpack.c.bf16 %v1921, %v1919
    %v1996 = vpack.c.bf16 %v1924, %v1922
    %v1997 = vpack.c.bf16 %v1925, %v1923
    %v1998 = vpack.c.bf16 %v1928, %v1926
    %v1999 = vpack.c.bf16 %v1929, %v1927
    %v2000 = vpack.c.bf16 %v1932, %v1930
    %v2001 = vpack.c.bf16 %v1933, %v1931
    %v2002 = vpack.c.bf16 %v1936, %v1934
    %v2003 = vpack.c.bf16 %v1937, %v1935
    %v2004 = vpack.c.bf16 %v1940, %v1938
    %v2005 = vpack.c.bf16 %v1941, %v1939
    %v2006 = vpack.c.bf16 %v1944, %v1942
    %v2007 = vpack.c.bf16 %v1945, %v1943
    %v2008 = vpack.c.bf16 %v1948, %v1946
    %v2009 = vpack.c.bf16 %v1949, %v1947
    %v2010 = vpack.c.bf16 %v1952, %v1950
    %v2011 = vpack.c.bf16 %v1953, %v1951
    %v2012 = vpack.c.bf16 %v1956, %v1954
    %v2013 = vpack.c.bf16 %v1957, %v1955
    %v2014 = vpack.c.bf16 %v1960, %v1958
    %v2015 = vpack.c.bf16 %v1961, %v1959
    %v2016 = vpack.c.bf16 %v1964, %v1962
    %v2017 = vpack.c.bf16 %v1965, %v1963
    %v2018 = vpack.c.bf16 %v1968, %v1966
    %v2019 = vpack.c.bf16 %v1969, %v1967
    %v2020 = vpack.c.bf16 %v1972, %v1970
    %v2021 = vpack.c.bf16 %v1973, %v1971
    %v2038 = vunpack.c.l.b16 %v1974
    %v2039 = vunpack.c.h.b16 %v1974
    %v2040 = vunpack.c.l.b16 %v1975
    %v2041 = vunpack.c.h.b16 %v1975
    %v2042 = vunpack.c.l.b16 %v1976
    %v2043 = vunpack.c.h.b16 %v1976
    %v2044 = vunpack.c.l.b16 %v1977
    %v2045 = vunpack.c.h.b16 %v1977
    %v2046 = vunpack.c.l.b16 %v1978
    %v2047 = vunpack.c.h.b16 %v1978
    %v2048 = vunpack.c.l.b16 %v1979
    %v2049 = vunpack.c.h.b16 %v1979
    %v2050 = vunpack.c.l.b16 %v1980
    %v2051 = vunpack.c.h.b16 %v1980
    %v2052 = vunpack.c.l.b16 %v1981
    %v2053 = vunpack.c.h.b16 %v1981
    %v2054 = vunpack.c.l.b16 %v1982
    %v2055 = vunpack.c.h.b16 %v1982
    %v2056 = vunpack.c.l.b16 %v1983
    %v2057 = vunpack.c.h.b16 %v1983
    %v2058 = vunpack.c.l.b16 %v1984
    %v2059 = vunpack.c.h.b16 %v1984
    %v2060 = vunpack.c.l.b16 %v1985
    %v2061 = vunpack.c.h.b16 %v1985
    %v2062 = vunpack.c.l.b16 %v1986
    %v2063 = vunpack.c.h.b16 %v1986
    %v2064 = vunpack.c.l.b16 %v1987
    %v2065 = vunpack.c.h.b16 %v1987
    %v2066 = vunpack.c.l.b16 %v1988
    %v2067 = vunpack.c.h.b16 %v1988
    %v2068 = vunpack.c.l.b16 %v1989
    %v2069 = vunpack.c.h.b16 %v1989
    %v2070 = vpack.c.b16 %v2040, %v2038
    %v2071 = vpack.c.b16 %v2041, %v2039
    %v2072 = vpack.c.b16 %v2044, %v2042
    %v2073 = vpack.c.b16 %v2045, %v2043
    %v2074 = vpack.c.b16 %v2048, %v2046
    %v2075 = vpack.c.b16 %v2049, %v2047
    %v2076 = vpack.c.b16 %v2052, %v2050
    %v2077 = vpack.c.b16 %v2053, %v2051
    %v2078 = vpack.c.b16 %v2056, %v2054
    %v2079 = vpack.c.b16 %v2057, %v2055
    %v2080 = vpack.c.b16 %v2060, %v2058
    %v2081 = vpack.c.b16 %v2061, %v2059
    %v2082 = vpack.c.b16 %v2064, %v2062
    %v2083 = vpack.c.b16 %v2065, %v2063
    %v2084 = vpack.c.b16 %v2068, %v2066
    %v2085 = vpack.c.b16 %v2069, %v2067
    %vm2094 = vcmask 1022976
    %v2096 = vsel %vm2094, %v2071, 0
    %v2099 = vsel %vm2094, %v2073, 0
    %v2102 = vsel %vm2094, %v2075, 0
    %v2105 = vsel %vm2094, %v2077, 0
    %v2108 = vsel %vm2094, %v2079, 0
    %v2111 = vsel %vm2094, %v2081, 0
    %v2114 = vsel %vm2094, %v2083, 0
    %v2117 = vsel %vm2094, %v2085, 0
    %vm2119 = vcmask 1045504
    %v2120 = vsel %vm2119, 4294967295, 65535
    %v2121 = vsel %vm1366, %v2120, 0
    %v2123 = vand.u32 %v2020, %v2121
    %v2126 = vand.u32 %v2021, %v2121
    %2128 = vmatprep.subr.bf16.mxu0 %v1991
    %2129 = vmatpush1.bf16.msra.mxu0 %v1990
    %2130 = vmatprep.subr.bf16.mxu0 %v1993
    %2131 = vmatpush1.bf16.msra.mxu0 %v1992
    %2132 = vmatprep.subr.bf16.mxu0 %v1995
    %2133 = vmatpush1.bf16.msra.mxu0 %v1994
    %2134 = vmatprep.subr.bf16.mxu0 %v1997
    %2135 = vmatpush1.bf16.msra.mxu0 %v1996
    %2136 = vmatprep.subr.bf16.mxu0 %v1999
    %2137 = vmatpush1.bf16.msra.mxu0 %v1998
    %2138 = vmatprep.subr.bf16.mxu0 %v2001
    %2139 = vmatpush1.bf16.msra.mxu0 %v2000
    %2140 = vmatprep.subr.bf16.mxu0 %v2003
    %2141 = vmatpush1.bf16.msra.mxu0 %v2002
    %2142 = vmatprep.subr.bf16.mxu0 %v2005
    %2143 = vmatpush1.bf16.msra.mxu0 %v2004
    %2144 = vmatprep.subr.bf16.mxu0 %v2007
    %2145 = vmatpush1.bf16.msra.mxu0 %v2006
    %2146 = vmatprep.subr.bf16.mxu0 %v2009
    %2147 = vmatpush1.bf16.msra.mxu0 %v2008
    %2148 = vmatprep.subr.bf16.mxu0 %v2011
    %2149 = vmatpush1.bf16.msra.mxu0 %v2010
    %2150 = vmatprep.subr.bf16.mxu0 %v2013
    %2151 = vmatpush1.bf16.msra.mxu0 %v2012
    %2152 = vmatprep.subr.bf16.mxu0 %v2015
    %2153 = vmatpush1.bf16.msra.mxu0 %v2014
    %2154 = vmatprep.subr.bf16.mxu0 %v2017
    %2155 = vmatpush1.bf16.msra.mxu0 %v2016
    %2156 = vmatprep.subr.bf16.mxu0 %v2019
    %2157 = vmatpush1.bf16.msra.mxu0 %v2018
    %2158 = vmatprep.subr.bf16.mxu0 %v2126
    %2159 = vmatpush1.bf16.msra.mxu0 %v2123
    %2160 = vmatprep.mubr.bf16.mxu0 %v2096
    %2161 = vmatmul.mubr.bf16.gmra.mrb[0].mxu0 %v2070
    %v2162 = vpop.f32.mrb[0].mxu0
    %v2163 = vadd.f32 0.0, %v2162
    %v2164 = vpop.f32.mrb[0].mxu0
    %v2165 = vadd.f32 0.0, %v2164
    %v2166 = vpop.f32.mrb[0].mxu0
    %v2167 = vadd.f32 0.0, %v2166
    %v2168 = vpop.f32.mrb[0].mxu0
    %v2169 = vadd.f32 0.0, %v2168
    %2170 = vmatprep.mubr.bf16.mxu0 %v2099
    %2171 = vmatmul.mubr.bf16.gmra.mrb[0].mxu0 %v2072
    %v2172 = vpop.f32.mrb[0].mxu0
    %v2173 = vadd.f32 0.0, %v2172
    %v2174 = vpop.f32.mrb[0].mxu0
    %v2175 = vadd.f32 0.0, %v2174
    %v2176 = vpop.f32.mrb[0].mxu0
    %v2177 = vadd.f32 0.0, %v2176
    %v2178 = vpop.f32.mrb[0].mxu0
    %v2179 = vadd.f32 0.0, %v2178
    %2180 = vmatprep.mubr.bf16.mxu0 %v2102
    %2181 = vmatmul.mubr.bf16.gmra.mrb[0].mxu0 %v2074
    %v2182 = vpop.f32.mrb[0].mxu0
    %v2183 = vadd.f32 0.0, %v2182
    %v2184 = vpop.f32.mrb[0].mxu0
    %v2185 = vadd.f32 0.0, %v2184
    %v2186 = vpop.f32.mrb[0].mxu0
    %v2187 = vadd.f32 0.0, %v2186
    %v2188 = vpop.f32.mrb[0].mxu0
    %v2189 = vadd.f32 0.0, %v2188
    %2190 = vmatprep.mubr.bf16.mxu0 %v2105
    %2191 = vmatmul.mubr.bf16.gmra.mrb[0].mxu0 %v2076
    %v2192 = vpop.f32.mrb[0].mxu0
    %v2193 = vadd.f32 0.0, %v2192
    %v2194 = vpop.f32.mrb[0].mxu0
    %v2195 = vadd.f32 0.0, %v2194
    %v2196 = vpop.f32.mrb[0].mxu0
    %v2197 = vadd.f32 0.0, %v2196
    %v2198 = vpop.f32.mrb[0].mxu0
    %v2199 = vadd.f32 0.0, %v2198
    %2200 = vmatprep.mubr.bf16.mxu0 %v2108
    %2201 = vmatmul.mubr.bf16.gmra.mrb[0].mxu0 %v2078
    %v2202 = vpop.f32.mrb[0].mxu0
    %v2203 = vadd.f32 0.0, %v2202
    %v2204 = vpop.f32.mrb[0].mxu0
    %v2205 = vadd.f32 0.0, %v2204
    %v2206 = vpop.f32.mrb[0].mxu0
    %v2207 = vadd.f32 0.0, %v2206
    %v2208 = vpop.f32.mrb[0].mxu0
    %v2209 = vadd.f32 0.0, %v2208
    %2210 = vmatprep.mubr.bf16.mxu0 %v2111
    %2211 = vmatmul.mubr.bf16.gmra.mrb[0].mxu0 %v2080
    %v2212 = vpop.f32.mrb[0].mxu0
    %v2213 = vadd.f32 0.0, %v2212
    %v2214 = vpop.f32.mrb[0].mxu0
    %v2215 = vadd.f32 0.0, %v2214
    %v2216 = vpop.f32.mrb[0].mxu0
    %v2217 = vadd.f32 0.0, %v2216
    %v2218 = vpop.f32.mrb[0].mxu0
    %v2219 = vadd.f32 0.0, %v2218
    %2220 = vmatprep.mubr.bf16.mxu0 %v2114
    %2221 = vmatmul.mubr.bf16.gmra.mrb[0].mxu0 %v2082
    %v2222 = vpop.f32.mrb[0].mxu0
    %v2223 = vadd.f32 0.0, %v2222
    %v2224 = vpop.f32.mrb[0].mxu0
    %v2225 = vadd.f32 0.0, %v2224
    %v2226 = vpop.f32.mrb[0].mxu0
    %v2227 = vadd.f32 0.0, %v2226
    %v2228 = vpop.f32.mrb[0].mxu0
    %v2229 = vadd.f32 0.0, %v2228
    %2230 = vmatprep.mubr.bf16.mxu0 %v2117
    %2231 = vmatmul.mubr.bf16.gmra.mrb[0].mxu0 %v2084
    %v2232 = vpop.f32.mrb[0].mxu0
    %v2233 = vadd.f32 0.0, %v2232
    %v2234 = vpop.f32.mrb[0].mxu0
    %v2235 = vadd.f32 0.0, %v2234
    %v2236 = vpop.f32.mrb[0].mxu0
    %v2237 = vadd.f32 0.0, %v2236
    %v2238 = vpop.f32.mrb[0].mxu0
    %v2239 = vadd.f32 0.0, %v2238
    %2240 = vdwg.mxu0
    %v2241 = vld [vmem:[#allocation2] sm:$0xff]
    %v2242 = vld [vmem:[#allocation2 + $0x8] sm:$0xff]
    %v2243 = vld [vmem:[#allocation2 + $0x10] sm:$0xff]
    %v2244 = vld [vmem:[#allocation2 + $0x18] sm:$0xff]
    %v2245 = vld [vmem:[#allocation2 + $0x20] sm:$0xff]
    %v2246 = vld [vmem:[#allocation2 + $0x28] sm:$0xff]
    %v2247 = vld [vmem:[#allocation2 + $0x30] sm:$0xff]
    %v2248 = vld [vmem:[#allocation2 + $0x38] sm:$0xff]
    %v2249 = vld [vmem:[#allocation2 + $0x40] sm:$0xff]
    %v2250 = vld [vmem:[#allocation2 + $0x48] sm:$0xff]
    %v2251 = vld [vmem:[#allocation2 + $0x50] sm:$0xff]
    %v2252 = vld [vmem:[#allocation2 + $0x58] sm:$0xff]
    %v2253 = vld [vmem:[#allocation2 + $0x60] sm:$0xff]
    %v2254 = vld [vmem:[#allocation2 + $0x68] sm:$0xff]
    %v2255 = vld [vmem:[#allocation2 + $0x70] sm:$0xff]
    %v2256 = vld [vmem:[#allocation2 + $0x78] sm:$0xff]
    %v2257 = vld [vmem:[#allocation2 + $0x80] sm:$0xff]
    %v2258 = vld [vmem:[#allocation2 + $0x88] sm:$0xff]
    %v2259 = vld [vmem:[#allocation2 + $0x90] sm:$0xff]
    %v2260 = vld [vmem:[#allocation2 + $0x98] sm:$0xff]
    %v2261 = vld [vmem:[#allocation2 + $0xa0] sm:$0xff]
    %v2262 = vld [vmem:[#allocation2 + $0xa8] sm:$0xff]
    %v2263 = vld [vmem:[#allocation2 + $0xb0] sm:$0x33]
    %v2264 = vpack.c.bf16 %v2167, %v2163
    %v2265 = vpack.c.bf16 %v2169, %v2165
    %v2266 = vpack.c.bf16 %v2177, %v2173
    %v2267 = vpack.c.bf16 %v2179, %v2175
    %v2268 = vpack.c.bf16 %v2187, %v2183
    %v2269 = vpack.c.bf16 %v2189, %v2185
    %v2270 = vpack.c.bf16 %v2197, %v2193
    %v2271 = vpack.c.bf16 %v2199, %v2195
    %v2272 = vpack.c.bf16 %v2207, %v2203
    %v2273 = vpack.c.bf16 %v2209, %v2205
    %v2274 = vpack.c.bf16 %v2217, %v2213
    %v2275 = vpack.c.bf16 %v2219, %v2215
    %v2276 = vpack.c.bf16 %v2227, %v2223
    %v2277 = vpack.c.bf16 %v2229, %v2225
    %v2278 = vpack.c.bf16 %v2237, %v2233
    %v2279 = vpack.c.bf16 %v2239, %v2235
    %s2280 = scalar_lea.vmem [#allocation2], 184
    %v2281 = vld [vmem:[%s2280] sm:$0xff]
    %v2282 = vld [vmem:[%s2280 + $0x8] sm:$0xff]
    %v2283 = vld [vmem:[%s2280 + $0x10] sm:$0xff]
    %v2284 = vld [vmem:[%s2280 + $0x18] sm:$0xff]
    %v2285 = vld [vmem:[%s2280 + $0x20] sm:$0xff]
    %v2286 = vld [vmem:[%s2280 + $0x28] sm:$0xff]
    %v2287 = vld [vmem:[%s2280 + $0x30] sm:$0xff]
    %v2288 = vld [vmem:[%s2280 + $0x38] sm:$0xff]
    %v2289 = vld [vmem:[%s2280 + $0x40] sm:$0xff]
    %v2290 = vld [vmem:[%s2280 + $0x48] sm:$0xff]
    %v2291 = vld [vmem:[%s2280 + $0x50] sm:$0xff]
    %v2292 = vld [vmem:[%s2280 + $0x58] sm:$0xff]
    %v2293 = vld [vmem:[%s2280 + $0x60] sm:$0xff]
    %v2294 = vld [vmem:[%s2280 + $0x68] sm:$0xff]
    %v2295 = vld [vmem:[%s2280 + $0x70] sm:$0xff]
    %v2296 = vld [vmem:[%s2280 + $0x78] sm:$0xff]
    %v2297 = vld [vmem:[%s2280 + $0x80] sm:$0xff]
    %v2298 = vld [vmem:[%s2280 + $0x88] sm:$0xff]
    %v2299 = vld [vmem:[%s2280 + $0x90] sm:$0xff]
    %v2300 = vld [vmem:[%s2280 + $0x98] sm:$0xff]
    %v2301 = vld [vmem:[%s2280 + $0xa0] sm:$0xff]
    %v2302 = vld [vmem:[%s2280 + $0xa8] sm:$0xff]
    %v2303 = vld [vmem:[%s2280 + $0xb0] sm:$0x33]
    %v2305 = vshrl.u32 %v2264, 16
    %v2307 = vshll.u32 %v2264, 16
    %v2309 = vrot.slane %v2307, 1
    %v2310 = vor.u32 %v2305, %v2309
    %v2312 = vshll.u32 %v2266, 16
    %v2314 = vrot.slane %v2312, 1
    %v2315 = vsel %vm149, %v2310, %v2314
    %v2317 = vshrl.u32 %v2265, 16
    %v2319 = vshll.u32 %v2265, 16
    %v2321 = vrot.slane %v2319, 1
    %v2322 = vor.u32 %v2317, %v2321
    %v2324 = vshll.u32 %v2267, 16
    %v2326 = vrot.slane %v2324, 1
    %v2327 = vsel %vm149, %v2322, %v2326
    %v2328 = vshrl.u32 %v2266, 16
    %v2330 = vor.u32 %v2328, %v2314
    %v2332 = vshll.u32 %v2268, 16
    %v2334 = vrot.slane %v2332, 1
    %v2335 = vsel %vm149, %v2330, %v2334
    %v2336 = vshrl.u32 %v2267, 16
    %v2338 = vor.u32 %v2336, %v2326
    %v2340 = vshll.u32 %v2269, 16
    %v2342 = vrot.slane %v2340, 1
    %v2343 = vsel %vm149, %v2338, %v2342
    %v2344 = vshrl.u32 %v2268, 16
    %v2346 = vor.u32 %v2344, %v2334
    %v2348 = vshll.u32 %v2270, 16
    %v2350 = vrot.slane %v2348, 1
    %v2351 = vsel %vm149, %v2346, %v2350
    %v2352 = vshrl.u32 %v2269, 16
    %v2354 = vor.u32 %v2352, %v2342
    %v2356 = vshll.u32 %v2271, 16
    %v2358 = vrot.slane %v2356, 1
    %v2359 = vsel %vm149, %v2354, %v2358
    %v2360 = vshrl.u32 %v2270, 16
    %v2362 = vor.u32 %v2360, %v2350
    %v2364 = vshll.u32 %v2272, 16
    %v2366 = vrot.slane %v2364, 1
    %v2367 = vsel %vm149, %v2362, %v2366
    %v2368 = vshrl.u32 %v2271, 16
    %v2370 = vor.u32 %v2368, %v2358
    %v2372 = vshll.u32 %v2273, 16
    %v2374 = vrot.slane %v2372, 1
    %v2375 = vsel %vm149, %v2370, %v2374
    %v2376 = vshrl.u32 %v2272, 16
    %v2378 = vor.u32 %v2376, %v2366
    %v2380 = vshll.u32 %v2274, 16
    %v2382 = vrot.slane %v2380, 1
    %v2383 = vsel %vm149, %v2378, %v2382
    %v2384 = vshrl.u32 %v2273, 16
    %v2386 = vor.u32 %v2384, %v2374
    %v2388 = vshll.u32 %v2275, 16
    %v2390 = vrot.slane %v2388, 1
    %v2391 = vsel %vm149, %v2386, %v2390
    %v2392 = vshrl.u32 %v2274, 16
    %v2394 = vor.u32 %v2392, %v2382
    %v2396 = vshll.u32 %v2276, 16
    %v2398 = vrot.slane %v2396, 1
    %v2399 = vsel %vm149, %v2394, %v2398
    %v2400 = vshrl.u32 %v2275, 16
    %v2402 = vor.u32 %v2400, %v2390
    %v2404 = vshll.u32 %v2277, 16
    %v2406 = vrot.slane %v2404, 1
    %v2407 = vsel %vm149, %v2402, %v2406
    %v2408 = vshrl.u32 %v2276, 16
    %v2410 = vor.u32 %v2408, %v2398
    %v2412 = vshll.u32 %v2278, 16
    %v2414 = vrot.slane %v2412, 1
    %v2415 = vsel %vm149, %v2410, %v2414
    %v2416 = vshrl.u32 %v2277, 16
    %v2418 = vor.u32 %v2416, %v2406
    %v2420 = vshll.u32 %v2279, 16
    %v2422 = vrot.slane %v2420, 1
    %v2423 = vsel %vm149, %v2418, %v2422
    %v2424 = vshrl.u32 %v2278, 16
    %v2426 = vor.u32 %v2424, %v2414
    %v2427 = vshrl.u32 %v2279, 16
    %v2429 = vor.u32 %v2427, %v2422
    %v2461 = vunpack.c.l.b16 %v2281
    %v2462 = vunpack.c.h.b16 %v2281
    %v2463 = vunpack.c.l.b16 %v2282
    %v2464 = vunpack.c.h.b16 %v2282
    %v2465 = vunpack.c.l.b16 %v2283
    %v2466 = vunpack.c.h.b16 %v2283
    %v2467 = vunpack.c.l.b16 %v2284
    %v2468 = vunpack.c.h.b16 %v2284
    %v2469 = vunpack.c.l.b16 %v2285
    %v2470 = vunpack.c.h.b16 %v2285
    %v2471 = vunpack.c.l.b16 %v2286
    %v2472 = vunpack.c.h.b16 %v2286
    %v2473 = vunpack.c.l.b16 %v2287
    %v2474 = vunpack.c.h.b16 %v2287
    %v2475 = vunpack.c.l.b16 %v2288
    %v2476 = vunpack.c.h.b16 %v2288
    %v2477 = vunpack.c.l.b16 %v2289
    %v2478 = vunpack.c.h.b16 %v2289
    %v2479 = vunpack.c.l.b16 %v2290
    %v2480 = vunpack.c.h.b16 %v2290
    %v2481 = vunpack.c.l.b16 %v2291
    %v2482 = vunpack.c.h.b16 %v2291
    %v2483 = vunpack.c.l.b16 %v2292
    %v2484 = vunpack.c.h.b16 %v2292
    %v2485 = vunpack.c.l.b16 %v2293
    %v2486 = vunpack.c.h.b16 %v2293
    %v2487 = vunpack.c.l.b16 %v2294
    %v2488 = vunpack.c.h.b16 %v2294
    %v2489 = vunpack.c.l.b16 %v2295
    %v2490 = vunpack.c.h.b16 %v2295
    %v2491 = vunpack.c.l.b16 %v2296
    %v2492 = vunpack.c.h.b16 %v2296
    %v2493 = vunpack.c.l.b16 %v2297
    %v2494 = vunpack.c.h.b16 %v2297
    %v2495 = vunpack.c.l.b16 %v2298
    %v2496 = vunpack.c.h.b16 %v2298
    %v2497 = vunpack.c.l.b16 %v2299
    %v2498 = vunpack.c.h.b16 %v2299
    %v2499 = vunpack.c.l.b16 %v2300
    %v2500 = vunpack.c.h.b16 %v2300
    %v2501 = vunpack.c.l.b16 %v2301
    %v2502 = vunpack.c.h.b16 %v2301
    %v2503 = vunpack.c.l.b16 %v2302
    %v2504 = vunpack.c.h.b16 %v2302
    %v2505 = vunpack.c.l.b16 %v2303
    %v2506 = vunpack.c.h.b16 %v2303
    %v2507 = vpack.c.b16 %v2463, %v2461
    %v2508 = vpack.c.b16 %v2464, %v2462
    %v2509 = vpack.c.b16 %v2467, %v2465
    %v2510 = vpack.c.b16 %v2468, %v2466
    %v2511 = vpack.c.b16 %v2471, %v2469
    %v2512 = vpack.c.b16 %v2472, %v2470
    %v2513 = vpack.c.b16 %v2475, %v2473
    %v2514 = vpack.c.b16 %v2476, %v2474
    %v2515 = vpack.c.b16 %v2479, %v2477
    %v2516 = vpack.c.b16 %v2480, %v2478
    %v2517 = vpack.c.b16 %v2483, %v2481
    %v2518 = vpack.c.b16 %v2484, %v2482
    %v2519 = vpack.c.b16 %v2487, %v2485
    %v2520 = vpack.c.b16 %v2488, %v2486
    %v2521 = vpack.c.b16 %v2491, %v2489
    %v2522 = vpack.c.b16 %v2492, %v2490
    %v2523 = vpack.c.b16 %v2495, %v2493
    %v2524 = vpack.c.b16 %v2496, %v2494
    %v2525 = vpack.c.b16 %v2499, %v2497
    %v2526 = vpack.c.b16 %v2500, %v2498
    %v2527 = vpack.c.b16 %v2503, %v2501
    %v2528 = vpack.c.b16 %v2504, %v2502
    %v2529 = vpack.c.b16 %v2505, %v2505
    %v2530 = vpack.c.b16 %v2506, %v2506
    %vm2553 = vcmask 416768
    %v2555 = vsel %vm2553, %v2327, 0
    %v2558 = vsel %vm2553, %v2343, 0
    %v2561 = vsel %vm2553, %v2359, 0
    %v2564 = vsel %vm2553, %v2375, 0
    %v2567 = vsel %vm2553, %v2391, 0
    %v2570 = vsel %vm2553, %v2407, 0
    %v2573 = vsel %vm2553, %v2423, 0
    %v2576 = vsel %vm2553, %v2429, 0
    %vm2578 = vcmask 1040384
    %vm2579 = vcmask 1041408
    %v2580 = vsel %vm2578, 4294967295, 65535
    %v2581 = vsel %vm2579, %v2580, 0
    %v2583 = vand.u32 %v2529, %v2581
    %v2586 = vand.u32 %v2530, %v2581
    %2588 = vmatprep.subr.bf16.mxu0 %v2508
    %2589 = vmatpush1.bf16.msra.mxu0 %v2507
    %2590 = vmatprep.subr.bf16.mxu0 %v2510
    %2591 = vmatpush1.bf16.msra.mxu0 %v2509
    %2592 = vmatprep.subr.bf16.mxu0 %v2512
    %2593 = vmatpush1.bf16.msra.mxu0 %v2511
    %2594 = vmatprep.subr.bf16.mxu0 %v2514
    %2595 = vmatpush1.bf16.msra.mxu0 %v2513
    %2596 = vmatprep.subr.bf16.mxu0 %v2516
    %2597 = vmatpush1.bf16.msra.mxu0 %v2515
    %2598 = vmatprep.subr.bf16.mxu0 %v2518
    %2599 = vmatpush1.bf16.msra.mxu0 %v2517
    %2600 = vmatprep.subr.bf16.mxu0 %v2520
    %2601 = vmatpush1.bf16.msra.mxu0 %v2519
    %2602 = vmatprep.subr.bf16.mxu0 %v2522
    %2603 = vmatpush1.bf16.msra.mxu0 %v2521
    %2604 = vmatprep.subr.bf16.mxu0 %v2524
    %2605 = vmatpush1.bf16.msra.mxu0 %v2523
    %2606 = vmatprep.subr.bf16.mxu0 %v2526
    %2607 = vmatpush1.bf16.msra.mxu0 %v2525
    %2608 = vmatprep.subr.bf16.mxu0 %v2528
    %2609 = vmatpush1.bf16.msra.mxu0 %v2527
    %2610 = vmatprep.subr.bf16.mxu0 %v2586
    %2611 = vmatpush1.bf16.msra.mxu0 %v2583
    %2612 = vmatprep.subr.bf16.mxu0 0
    %2613 = vmatpush1.bf16.msra.mxu0 0
    %2614 = vmatprep.subr.bf16.mxu0 0
    %2615 = vmatpush1.bf16.msra.mxu0 0
    %2616 = vmatprep.subr.bf16.mxu0 0
    %2617 = vmatpush1.bf16.msra.mxu0 0
    %2618 = vmatprep.subr.bf16.mxu0 0
    %2619 = vmatpush1.bf16.msra.mxu0 0
    %2620 = vmatprep.mubr.bf16.mxu0 %v2555
    %2621 = vmatmul.mubr.bf16.gmra.mrb[0].mxu0 %v2315
    %v2622 = vpop.f32.mrb[0].mxu0
    %v2623 = vadd.f32 0.0, %v2622
    %v2624 = vpop.f32.mrb[0].mxu0
    %v2625 = vadd.f32 0.0, %v2624
    %v2626 = vpop.f32.mrb[0].mxu0
    %v2627 = vadd.f32 0.0, %v2626
    %v2628 = vpop.f32.mrb[0].mxu0
    %v2629 = vadd.f32 0.0, %v2628
    %2630 = vmatprep.mubr.bf16.mxu0 %v2558
    %2631 = vmatmul.mubr.bf16.gmra.mrb[0].mxu0 %v2335
    %v2632 = vpop.f32.mrb[0].mxu0
    %v2633 = vadd.f32 0.0, %v2632
    %v2634 = vpop.f32.mrb[0].mxu0
    %v2635 = vadd.f32 0.0, %v2634
    %v2636 = vpop.f32.mrb[0].mxu0
    %v2637 = vadd.f32 0.0, %v2636
    %v2638 = vpop.f32.mrb[0].mxu0
    %v2639 = vadd.f32 0.0, %v2638
    %2640 = vmatprep.mubr.bf16.mxu0 %v2561
    %2641 = vmatmul.mubr.bf16.gmra.mrb[0].mxu0 %v2351
    %v2642 = vpop.f32.mrb[0].mxu0
    %v2643 = vadd.f32 0.0, %v2642
    %v2644 = vpop.f32.mrb[0].mxu0
    %v2645 = vadd.f32 0.0, %v2644
    %v2646 = vpop.f32.mrb[0].mxu0
    %v2647 = vadd.f32 0.0, %v2646
    %v2648 = vpop.f32.mrb[0].mxu0
    %v2649 = vadd.f32 0.0, %v2648
    %2650 = vmatprep.mubr.bf16.mxu0 %v2564
    %2651 = vmatmul.mubr.bf16.gmra.mrb[0].mxu0 %v2367
    %v2652 = vpop.f32.mrb[0].mxu0
    %v2653 = vadd.f32 0.0, %v2652
    %v2654 = vpop.f32.mrb[0].mxu0
    %v2655 = vadd.f32 0.0, %v2654
    %v2656 = vpop.f32.mrb[0].mxu0
    %v2657 = vadd.f32 0.0, %v2656
    %v2658 = vpop.f32.mrb[0].mxu0
    %v2659 = vadd.f32 0.0, %v2658
    %2660 = vmatprep.mubr.bf16.mxu0 %v2567
    %2661 = vmatmul.mubr.bf16.gmra.mrb[0].mxu0 %v2383
    %v2662 = vpop.f32.mrb[0].mxu0
    %v2663 = vadd.f32 0.0, %v2662
    %v2664 = vpop.f32.mrb[0].mxu0
    %v2665 = vadd.f32 0.0, %v2664
    %v2666 = vpop.f32.mrb[0].mxu0
    %v2667 = vadd.f32 0.0, %v2666
    %v2668 = vpop.f32.mrb[0].mxu0
    %v2669 = vadd.f32 0.0, %v2668
    %2670 = vmatprep.mubr.bf16.mxu0 %v2570
    %2671 = vmatmul.mubr.bf16.gmra.mrb[0].mxu0 %v2399
    %v2672 = vpop.f32.mrb[0].mxu0
    %v2673 = vadd.f32 0.0, %v2672
    %v2674 = vpop.f32.mrb[0].mxu0
    %v2675 = vadd.f32 0.0, %v2674
    %v2676 = vpop.f32.mrb[0].mxu0
    %v2677 = vadd.f32 0.0, %v2676
    %v2678 = vpop.f32.mrb[0].mxu0
    %v2679 = vadd.f32 0.0, %v2678
    %2680 = vmatprep.mubr.bf16.mxu0 %v2573
    %2681 = vmatmul.mubr.bf16.gmra.mrb[0].mxu0 %v2415
    %v2682 = vpop.f32.mrb[0].mxu0
    %v2683 = vadd.f32 0.0, %v2682
    %v2684 = vpop.f32.mrb[0].mxu0
    %v2685 = vadd.f32 0.0, %v2684
    %v2686 = vpop.f32.mrb[0].mxu0
    %v2687 = vadd.f32 0.0, %v2686
    %v2688 = vpop.f32.mrb[0].mxu0
    %v2689 = vadd.f32 0.0, %v2688
    %2690 = vmatprep.mubr.bf16.mxu0 %v2576
    %2691 = vmatmul.mubr.bf16.gmra.mrb[0].mxu0 %v2426
    %v2692 = vpop.f32.mrb[0].mxu0
    %v2693 = vadd.f32 0.0, %v2692
    %v2694 = vpop.f32.mrb[0].mxu0
    %v2695 = vadd.f32 0.0, %v2694
    %v2696 = vpop.f32.mrb[0].mxu0
    %v2697 = vadd.f32 0.0, %v2696
    %v2698 = vpop.f32.mrb[0].mxu0
    %v2699 = vadd.f32 0.0, %v2698
    %2700 = vdwg.mxu0
    %v2724 = vunpack.c.l.b16 %v2241
    %v2725 = vunpack.c.h.b16 %v2241
    %v2726 = vunpack.c.l.b16 %v2242
    %v2727 = vunpack.c.h.b16 %v2242
    %v2728 = vunpack.c.l.b16 %v2243
    %v2729 = vunpack.c.h.b16 %v2243
    %v2730 = vunpack.c.l.b16 %v2244
    %v2731 = vunpack.c.h.b16 %v2244
    %v2732 = vunpack.c.l.b16 %v2245
    %v2733 = vunpack.c.h.b16 %v2245
    %v2734 = vunpack.c.l.b16 %v2246
    %v2735 = vunpack.c.h.b16 %v2246
    %v2736 = vunpack.c.l.b16 %v2247
    %v2737 = vunpack.c.h.b16 %v2247
    %v2738 = vunpack.c.l.b16 %v2248
    %v2739 = vunpack.c.h.b16 %v2248
    %v2740 = vunpack.c.l.b16 %v2249
    %v2741 = vunpack.c.h.b16 %v2249
    %v2742 = vunpack.c.l.b16 %v2250
    %v2743 = vunpack.c.h.b16 %v2250
    %v2744 = vunpack.c.l.b16 %v2251
    %v2745 = vunpack.c.h.b16 %v2251
    %v2746 = vunpack.c.l.b16 %v2252
    %v2747 = vunpack.c.h.b16 %v2252
    %v2748 = vunpack.c.l.b16 %v2253
    %v2749 = vunpack.c.h.b16 %v2253
    %v2750 = vunpack.c.l.b16 %v2254
    %v2751 = vunpack.c.h.b16 %v2254
    %v2752 = vunpack.c.l.b16 %v2255
    %v2753 = vunpack.c.h.b16 %v2255
    %v2754 = vunpack.c.l.b16 %v2256
    %v2755 = vunpack.c.h.b16 %v2256
    %v2756 = vunpack.c.l.b16 %v2257
    %v2757 = vunpack.c.h.b16 %v2257
    %v2758 = vunpack.c.l.b16 %v2258
    %v2759 = vunpack.c.h.b16 %v2258
    %v2760 = vunpack.c.l.b16 %v2259
    %v2761 = vunpack.c.h.b16 %v2259
    %v2762 = vunpack.c.l.b16 %v2260
    %v2763 = vunpack.c.h.b16 %v2260
    %v2764 = vunpack.c.l.b16 %v2261
    %v2765 = vunpack.c.h.b16 %v2261
    %v2766 = vunpack.c.l.b16 %v2262
    %v2767 = vunpack.c.h.b16 %v2262
    %v2768 = vunpack.c.l.b16 %v2263
    %v2769 = vunpack.c.h.b16 %v2263
    %v2770 = vpack.c.b16 %v2726, %v2724
    %v2771 = vpack.c.b16 %v2727, %v2725
    %v2772 = vpack.c.b16 %v2730, %v2728
    %v2773 = vpack.c.b16 %v2731, %v2729
    %v2774 = vpack.c.b16 %v2734, %v2732
    %v2775 = vpack.c.b16 %v2735, %v2733
    %v2776 = vpack.c.b16 %v2738, %v2736
    %v2777 = vpack.c.b16 %v2739, %v2737
    %v2778 = vpack.c.b16 %v2742, %v2740
    %v2779 = vpack.c.b16 %v2743, %v2741
    %v2780 = vpack.c.b16 %v2746, %v2744
    %v2781 = vpack.c.b16 %v2747, %v2745
    %v2782 = vpack.c.b16 %v2750, %v2748
    %v2783 = vpack.c.b16 %v2751, %v2749
    %v2784 = vpack.c.b16 %v2754, %v2752
    %v2785 = vpack.c.b16 %v2755, %v2753
    %v2786 = vpack.c.b16 %v2758, %v2756
    %v2787 = vpack.c.b16 %v2759, %v2757
    %v2788 = vpack.c.b16 %v2762, %v2760
    %v2789 = vpack.c.b16 %v2763, %v2761
    %v2790 = vpack.c.b16 %v2766, %v2764
    %v2791 = vpack.c.b16 %v2767, %v2765
    %v2792 = vpack.c.b16 %v2768, %v2768
    %v2793 = vpack.c.b16 %v2769, %v2769
    %v2816 = vsel %vm2553, %v2265, 0
    %v2818 = vsel %vm2553, %v2267, 0
    %v2820 = vsel %vm2553, %v2269, 0
    %v2822 = vsel %vm2553, %v2271, 0
    %v2824 = vsel %vm2553, %v2273, 0
    %v2826 = vsel %vm2553, %v2275, 0
    %v2828 = vsel %vm2553, %v2277, 0
    %v2830 = vsel %vm2553, %v2279, 0
    %v2833 = vand.u32 %v2792, %v2581
    %v2836 = vand.u32 %v2793, %v2581
    %2838 = vmatprep.subr.bf16.mxu0 %v2771
    %2839 = vmatpush1.bf16.msra.mxu0 %v2770
    %2840 = vmatprep.subr.bf16.mxu0 %v2773
    %2841 = vmatpush1.bf16.msra.mxu0 %v2772
    %2842 = vmatprep.subr.bf16.mxu0 %v2775
    %2843 = vmatpush1.bf16.msra.mxu0 %v2774
    %2844 = vmatprep.subr.bf16.mxu0 %v2777
    %2845 = vmatpush1.bf16.msra.mxu0 %v2776
    %2846 = vmatprep.subr.bf16.mxu0 %v2779
    %2847 = vmatpush1.bf16.msra.mxu0 %v2778
    %2848 = vmatprep.subr.bf16.mxu0 %v2781
    %2849 = vmatpush1.bf16.msra.mxu0 %v2780
    %2850 = vmatprep.subr.bf16.mxu0 %v2783
    %2851 = vmatpush1.bf16.msra.mxu0 %v2782
    %2852 = vmatprep.subr.bf16.mxu0 %v2785
    %2853 = vmatpush1.bf16.msra.mxu0 %v2784
    %2854 = vmatprep.subr.bf16.mxu0 %v2787
    %2855 = vmatpush1.bf16.msra.mxu0 %v2786
    %2856 = vmatprep.subr.bf16.mxu0 %v2789
    %2857 = vmatpush1.bf16.msra.mxu0 %v2788
    %2858 = vmatprep.subr.bf16.mxu0 %v2791
    %2859 = vmatpush1.bf16.msra.mxu0 %v2790
    %2860 = vmatprep.subr.bf16.mxu0 %v2836
    %2861 = vmatpush1.bf16.msra.mxu0 %v2833
    %2862 = vmatprep.subr.bf16.mxu0 0
    %2863 = vmatpush1.bf16.msra.mxu0 0
    %2864 = vmatprep.subr.bf16.mxu0 0
    %2865 = vmatpush1.bf16.msra.mxu0 0
    %2866 = vmatprep.subr.bf16.mxu0 0
    %2867 = vmatpush1.bf16.msra.mxu0 0
    %2868 = vmatprep.subr.bf16.mxu0 0
    %2869 = vmatpush1.bf16.msra.mxu0 0
    %2870 = vmatprep.mubr.bf16.mxu0 %v2816
    %2871 = vmatmul.mubr.bf16.gmra.mrb[0].mxu0 %v2264
    %v2872 = vpop.f32.mrb[0].mxu0
    %v2873 = vadd.f32 %v2623, %v2872
    %v2874 = vpop.f32.mrb[0].mxu0
    %v2875 = vadd.f32 %v2625, %v2874
    %v2876 = vpop.f32.mrb[0].mxu0
    %v2877 = vadd.f32 %v2627, %v2876
    %v2878 = vpop.f32.mrb[0].mxu0
    %v2879 = vadd.f32 %v2629, %v2878
    %2880 = vmatprep.mubr.bf16.mxu0 %v2818
    %2881 = vmatmul.mubr.bf16.gmra.mrb[0].mxu0 %v2266
    %v2882 = vpop.f32.mrb[0].mxu0
    %v2883 = vadd.f32 %v2633, %v2882
    %v2884 = vpop.f32.mrb[0].mxu0
    %v2885 = vadd.f32 %v2635, %v2884
    %v2886 = vpop.f32.mrb[0].mxu0
    %v2887 = vadd.f32 %v2637, %v2886
    %v2888 = vpop.f32.mrb[0].mxu0
    %v2889 = vadd.f32 %v2639, %v2888
    %2890 = vmatprep.mubr.bf16.mxu0 %v2820
    %2891 = vmatmul.mubr.bf16.gmra.mrb[0].mxu0 %v2268
    %v2892 = vpop.f32.mrb[0].mxu0
    %v2893 = vadd.f32 %v2643, %v2892
    %v2894 = vpop.f32.mrb[0].mxu0
    %v2895 = vadd.f32 %v2645, %v2894
    %v2896 = vpop.f32.mrb[0].mxu0
    %v2897 = vadd.f32 %v2647, %v2896
    %v2898 = vpop.f32.mrb[0].mxu0
    %v2899 = vadd.f32 %v2649, %v2898
    %2900 = vmatprep.mubr.bf16.mxu0 %v2822
    %2901 = vmatmul.mubr.bf16.gmra.mrb[0].mxu0 %v2270
    %v2902 = vpop.f32.mrb[0].mxu0
    %v2903 = vadd.f32 %v2653, %v2902
    %v2904 = vpop.f32.mrb[0].mxu0
    %v2905 = vadd.f32 %v2655, %v2904
    %v2906 = vpop.f32.mrb[0].mxu0
    %v2907 = vadd.f32 %v2657, %v2906
    %v2908 = vpop.f32.mrb[0].mxu0
    %v2909 = vadd.f32 %v2659, %v2908
    %2910 = vmatprep.mubr.bf16.mxu0 %v2824
    %2911 = vmatmul.mubr.bf16.gmra.mrb[0].mxu0 %v2272
    %v2912 = vpop.f32.mrb[0].mxu0
    %v2913 = vadd.f32 %v2663, %v2912
    %v2914 = vpop.f32.mrb[0].mxu0
    %v2915 = vadd.f32 %v2665, %v2914
    %v2916 = vpop.f32.mrb[0].mxu0
    %v2917 = vadd.f32 %v2667, %v2916
    %v2918 = vpop.f32.mrb[0].mxu0
    %v2919 = vadd.f32 %v2669, %v2918
    %2920 = vmatprep.mubr.bf16.mxu0 %v2826
    %2921 = vmatmul.mubr.bf16.gmra.mrb[0].mxu0 %v2274
    %v2922 = vpop.f32.mrb[0].mxu0
    %v2923 = vadd.f32 %v2673, %v2922
    %v2924 = vpop.f32.mrb[0].mxu0
    %v2925 = vadd.f32 %v2675, %v2924
    %v2926 = vpop.f32.mrb[0].mxu0
    %v2927 = vadd.f32 %v2677, %v2926
    %v2928 = vpop.f32.mrb[0].mxu0
    %v2929 = vadd.f32 %v2679, %v2928
    %2930 = vmatprep.mubr.bf16.mxu0 %v2828
    %2931 = vmatmul.mubr.bf16.gmra.mrb[0].mxu0 %v2276
    %v2932 = vpop.f32.mrb[0].mxu0
    %v2933 = vadd.f32 %v2683, %v2932
    %v2934 = vpop.f32.mrb[0].mxu0
    %v2935 = vadd.f32 %v2685, %v2934
    %v2936 = vpop.f32.mrb[0].mxu0
    %v2937 = vadd.f32 %v2687, %v2936
    %v2938 = vpop.f32.mrb[0].mxu0
    %v2939 = vadd.f32 %v2689, %v2938
    %2940 = vmatprep.mubr.bf16.mxu0 %v2830
    %2941 = vmatmul.mubr.bf16.gmra.mrb[0].mxu0 %v2278
    %v2942 = vpop.f32.mrb[0].mxu0
    %v2943 = vadd.f32 %v2693, %v2942
    %v2944 = vpop.f32.mrb[0].mxu0
    %v2945 = vadd.f32 %v2695, %v2944
    %v2946 = vpop.f32.mrb[0].mxu0
    %v2947 = vadd.f32 %v2697, %v2946
    %v2948 = vpop.f32.mrb[0].mxu0
    %v2949 = vadd.f32 %v2699, %v2948
    %2950 = vdwg.mxu0
    %s2951 = scalar_lea.vmem [#allocation2], 368
    %v2952 = vld [vmem:[%s2951] sm:$0xff]
    %v2953 = vld [vmem:[%s2951 + $0x8] sm:$0xff]
    %v2954 = vld [vmem:[%s2951 + $0x10] sm:$0xff]
    %v2955 = vld [vmem:[%s2951 + $0x18] sm:$0xff]
    %v2956 = vld [vmem:[%s2951 + $0x20] sm:$0xff]
    %v2957 = vld [vmem:[%s2951 + $0x28] sm:$0xff]
    %v2958 = vld [vmem:[%s2951 + $0x30] sm:$0xff]
    %v2959 = vld [vmem:[%s2951 + $0x38] sm:$0xff]
    %v2960 = vld [vmem:[%s2951 + $0x40] sm:$0xff]
    %v2961 = vld [vmem:[%s2951 + $0x48] sm:$0xff]
    %v2962 = vld [vmem:[%s2951 + $0x50] sm:$0xff]
    %v2963 = vld [vmem:[%s2951 + $0x58] sm:$0xff]
    %v2964 = vld [vmem:[%s2951 + $0x60] sm:$0xff]
    %v2965 = vld [vmem:[%s2951 + $0x68] sm:$0xff]
    %v2966 = vld [vmem:[%s2951 + $0x70] sm:$0xff]
    %v2967 = vld [vmem:[%s2951 + $0x78] sm:$0xff]
    %v2968 = vld [vmem:[%s2951 + $0x80] sm:$0xff]
    %v2969 = vld [vmem:[%s2951 + $0x88] sm:$0xff]
    %v2970 = vld [vmem:[%s2951 + $0x90] sm:$0xff]
    %v2971 = vld [vmem:[%s2951 + $0x98] sm:$0xff]
    %v2972 = vld [vmem:[%s2951 + $0xa0] sm:$0xff]
    %v2973 = vld [vmem:[%s2951 + $0xa8] sm:$0xff]
    %v2974 = vld [vmem:[%s2951 + $0xb0] sm:$0x33]
    %v2991 = vrot.slane %v2264, 1
    %v2992 = vrot.slane %v2266, 1
    %v2993 = vsel %vm805, %v2991, %v2992
    %v2994 = vrot.slane %v2265, 1
    %v2995 = vrot.slane %v2267, 1
    %v2996 = vsel %vm805, %v2994, %v2995
    %v2997 = vrot.slane %v2268, 1
    %v2998 = vsel %vm805, %v2992, %v2997
    %v2999 = vrot.slane %v2269, 1
    %v3000 = vsel %vm805, %v2995, %v2999
    %v3001 = vrot.slane %v2270, 1
    %v3002 = vsel %vm805, %v2997, %v3001
    %v3003 = vrot.slane %v2271, 1
    %v3004 = vsel %vm805, %v2999, %v3003
    %v3005 = vrot.slane %v2272, 1
    %v3006 = vsel %vm805, %v3001, %v3005
    %v3007 = vrot.slane %v2273, 1
    %v3008 = vsel %vm805, %v3003, %v3007
    %v3009 = vrot.slane %v2274, 1
    %v3010 = vsel %vm805, %v3005, %v3009
    %v3011 = vrot.slane %v2275, 1
    %v3012 = vsel %vm805, %v3007, %v3011
    %v3013 = vrot.slane %v2276, 1
    %v3014 = vsel %vm805, %v3009, %v3013
    %v3015 = vrot.slane %v2277, 1
    %v3016 = vsel %vm805, %v3011, %v3015
    %v3017 = vrot.slane %v2278, 1
    %v3018 = vsel %vm805, %v3013, %v3017
    %v3019 = vrot.slane %v2279, 1
    %v3020 = vsel %vm805, %v3015, %v3019
    %v3052 = vunpack.c.l.b16 %v2952
    %v3053 = vunpack.c.h.b16 %v2952
    %v3054 = vunpack.c.l.b16 %v2953
    %v3055 = vunpack.c.h.b16 %v2953
    %v3056 = vunpack.c.l.b16 %v2954
    %v3057 = vunpack.c.h.b16 %v2954
    %v3058 = vunpack.c.l.b16 %v2955
    %v3059 = vunpack.c.h.b16 %v2955
    %v3060 = vunpack.c.l.b16 %v2956
    %v3061 = vunpack.c.h.b16 %v2956
    %v3062 = vunpack.c.l.b16 %v2957
    %v3063 = vunpack.c.h.b16 %v2957
    %v3064 = vunpack.c.l.b16 %v2958
    %v3065 = vunpack.c.h.b16 %v2958
    %v3066 = vunpack.c.l.b16 %v2959
    %v3067 = vunpack.c.h.b16 %v2959
    %v3068 = vunpack.c.l.b16 %v2960
    %v3069 = vunpack.c.h.b16 %v2960
    %v3070 = vunpack.c.l.b16 %v2961
    %v3071 = vunpack.c.h.b16 %v2961
    %v3072 = vunpack.c.l.b16 %v2962
    %v3073 = vunpack.c.h.b16 %v2962
    %v3074 = vunpack.c.l.b16 %v2963
    %v3075 = vunpack.c.h.b16 %v2963
    %v3076 = vunpack.c.l.b16 %v2964
    %v3077 = vunpack.c.h.b16 %v2964
    %v3078 = vunpack.c.l.b16 %v2965
    %v3079 = vunpack.c.h.b16 %v2965
    %v3080 = vunpack.c.l.b16 %v2966
    %v3081 = vunpack.c.h.b16 %v2966
    %v3082 = vunpack.c.l.b16 %v2967
    %v3083 = vunpack.c.h.b16 %v2967
    %v3084 = vunpack.c.l.b16 %v2968
    %v3085 = vunpack.c.h.b16 %v2968
    %v3086 = vunpack.c.l.b16 %v2969
    %v3087 = vunpack.c.h.b16 %v2969
    %v3088 = vunpack.c.l.b16 %v2970
    %v3089 = vunpack.c.h.b16 %v2970
    %v3090 = vunpack.c.l.b16 %v2971
    %v3091 = vunpack.c.h.b16 %v2971
    %v3092 = vunpack.c.l.b16 %v2972
    %v3093 = vunpack.c.h.b16 %v2972
    %v3094 = vunpack.c.l.b16 %v2973
    %v3095 = vunpack.c.h.b16 %v2973
    %v3096 = vunpack.c.l.b16 %v2974
    %v3097 = vunpack.c.h.b16 %v2974
    %v3098 = vpack.c.b16 %v3054, %v3052
    %v3099 = vpack.c.b16 %v3055, %v3053
    %v3100 = vpack.c.b16 %v3058, %v3056
    %v3101 = vpack.c.b16 %v3059, %v3057
    %v3102 = vpack.c.b16 %v3062, %v3060
    %v3103 = vpack.c.b16 %v3063, %v3061
    %v3104 = vpack.c.b16 %v3066, %v3064
    %v3105 = vpack.c.b16 %v3067, %v3065
    %v3106 = vpack.c.b16 %v3070, %v3068
    %v3107 = vpack.c.b16 %v3071, %v3069
    %v3108 = vpack.c.b16 %v3074, %v3072
    %v3109 = vpack.c.b16 %v3075, %v3073
    %v3110 = vpack.c.b16 %v3078, %v3076
    %v3111 = vpack.c.b16 %v3079, %v3077
    %v3112 = vpack.c.b16 %v3082, %v3080
    %v3113 = vpack.c.b16 %v3083, %v3081
    %v3114 = vpack.c.b16 %v3086, %v3084
    %v3115 = vpack.c.b16 %v3087, %v3085
    %v3116 = vpack.c.b16 %v3090, %v3088
    %v3117 = vpack.c.b16 %v3091, %v3089
    %v3118 = vpack.c.b16 %v3094, %v3092
    %v3119 = vpack.c.b16 %v3095, %v3093
    %v3120 = vpack.c.b16 %v3096, %v3096
    %v3121 = vpack.c.b16 %v3097, %v3097
    %v3145 = vsel %vm2553, %v2996, 0
    %v3148 = vsel %vm2553, %v3000, 0
    %v3151 = vsel %vm2553, %v3004, 0
    %v3154 = vsel %vm2553, %v3008, 0
    %v3157 = vsel %vm2553, %v3012, 0
    %v3160 = vsel %vm2553, %v3016, 0
    %v3163 = vsel %vm2553, %v3020, 0
    %v3166 = vsel %vm2553, %v3019, 0
    %v3169 = vand.u32 %v3120, %v2581
    %v3172 = vand.u32 %v3121, %v2581
    %3174 = vmatprep.subr.bf16.mxu0 %v3099
    %3175 = vmatpush1.bf16.msra.mxu0 %v3098
    %3176 = vmatprep.subr.bf16.mxu0 %v3101
    %3177 = vmatpush1.bf16.msra.mxu0 %v3100
    %3178 = vmatprep.subr.bf16.mxu0 %v3103
    %3179 = vmatpush1.bf16.msra.mxu0 %v3102
    %3180 = vmatprep.subr.bf16.mxu0 %v3105
    %3181 = vmatpush1.bf16.msra.mxu0 %v3104
    %3182 = vmatprep.subr.bf16.mxu0 %v3107
    %3183 = vmatpush1.bf16.msra.mxu0 %v3106
    %3184 = vmatprep.subr.bf16.mxu0 %v3109
    %3185 = vmatpush1.bf16.msra.mxu0 %v3108
    %3186 = vmatprep.subr.bf16.mxu0 %v3111
    %3187 = vmatpush1.bf16.msra.mxu0 %v3110
    %3188 = vmatprep.subr.bf16.mxu0 %v3113
    %3189 = vmatpush1.bf16.msra.mxu0 %v3112
    %3190 = vmatprep.subr.bf16.mxu0 %v3115
    %3191 = vmatpush1.bf16.msra.mxu0 %v3114
    %3192 = vmatprep.subr.bf16.mxu0 %v3117
    %3193 = vmatpush1.bf16.msra.mxu0 %v3116
    %3194 = vmatprep.subr.bf16.mxu0 %v3119
    %3195 = vmatpush1.bf16.msra.mxu0 %v3118
    %3196 = vmatprep.subr.bf16.mxu0 %v3172
    %3197 = vmatpush1.bf16.msra.mxu0 %v3169
    %3198 = vmatprep.subr.bf16.mxu0 0
    %3199 = vmatpush1.bf16.msra.mxu0 0
    %3200 = vmatprep.subr.bf16.mxu0 0
    %3201 = vmatpush1.bf16.msra.mxu0 0
    %3202 = vmatprep.subr.bf16.mxu0 0
    %3203 = vmatpush1.bf16.msra.mxu0 0
    %3204 = vmatprep.subr.bf16.mxu0 0
    %3205 = vmatpush1.bf16.msra.mxu0 0
    %3206 = vmatprep.mubr.bf16.mxu0 %v3145
    %3207 = vmatmul.mubr.bf16.gmra.mrb[0].mxu0 %v2993
    %v3208 = vpop.f32.mrb[0].mxu0
    %v3209 = vadd.f32 0.0, %v3208
    %v3210 = vpop.f32.mrb[0].mxu0
    %v3211 = vadd.f32 0.0, %v3210
    %v3212 = vpop.f32.mrb[0].mxu0
    %v3213 = vadd.f32 0.0, %v3212
    %v3214 = vpop.f32.mrb[0].mxu0
    %v3215 = vadd.f32 0.0, %v3214
    %3216 = vmatprep.mubr.bf16.mxu0 %v3148
    %3217 = vmatmul.mubr.bf16.gmra.mrb[0].mxu0 %v2998
    %v3218 = vpop.f32.mrb[0].mxu0
    %v3219 = vadd.f32 0.0, %v3218
    %v3220 = vpop.f32.mrb[0].mxu0
    %v3221 = vadd.f32 0.0, %v3220
    %v3222 = vpop.f32.mrb[0].mxu0
    %v3223 = vadd.f32 0.0, %v3222
    %v3224 = vpop.f32.mrb[0].mxu0
    %v3225 = vadd.f32 0.0, %v3224
    %3226 = vmatprep.mubr.bf16.mxu0 %v3151
    %3227 = vmatmul.mubr.bf16.gmra.mrb[0].mxu0 %v3002
    %v3228 = vpop.f32.mrb[0].mxu0
    %v3229 = vadd.f32 0.0, %v3228
    %v3230 = vpop.f32.mrb[0].mxu0
    %v3231 = vadd.f32 0.0, %v3230
    %v3232 = vpop.f32.mrb[0].mxu0
    %v3233 = vadd.f32 0.0, %v3232
    %v3234 = vpop.f32.mrb[0].mxu0
    %v3235 = vadd.f32 0.0, %v3234
    %3236 = vmatprep.mubr.bf16.mxu0 %v3154
    %3237 = vmatmul.mubr.bf16.gmra.mrb[0].mxu0 %v3006
    %v3238 = vpop.f32.mrb[0].mxu0
    %v3239 = vadd.f32 0.0, %v3238
    %v3240 = vpop.f32.mrb[0].mxu0
    %v3241 = vadd.f32 0.0, %v3240
    %v3242 = vpop.f32.mrb[0].mxu0
    %v3243 = vadd.f32 0.0, %v3242
    %v3244 = vpop.f32.mrb[0].mxu0
    %v3245 = vadd.f32 0.0, %v3244
    %3246 = vmatprep.mubr.bf16.mxu0 %v3157
    %3247 = vmatmul.mubr.bf16.gmra.mrb[0].mxu0 %v3010
    %v3248 = vpop.f32.mrb[0].mxu0
    %v3249 = vadd.f32 0.0, %v3248
    %v3250 = vpop.f32.mrb[0].mxu0
    %v3251 = vadd.f32 0.0, %v3250
    %v3252 = vpop.f32.mrb[0].mxu0
    %v3253 = vadd.f32 0.0, %v3252
    %v3254 = vpop.f32.mrb[0].mxu0
    %v3255 = vadd.f32 0.0, %v3254
    %3256 = vmatprep.mubr.bf16.mxu0 %v3160
    %3257 = vmatmul.mubr.bf16.gmra.mrb[0].mxu0 %v3014
    %v3258 = vpop.f32.mrb[0].mxu0
    %v3259 = vadd.f32 0.0, %v3258
    %v3260 = vpop.f32.mrb[0].mxu0
    %v3261 = vadd.f32 0.0, %v3260
    %v3262 = vpop.f32.mrb[0].mxu0
    %v3263 = vadd.f32 0.0, %v3262
    %v3264 = vpop.f32.mrb[0].mxu0
    %v3265 = vadd.f32 0.0, %v3264
    %3266 = vmatprep.mubr.bf16.mxu0 %v3163
    %3267 = vmatmul.mubr.bf16.gmra.mrb[0].mxu0 %v3018
    %v3268 = vpop.f32.mrb[0].mxu0
    %v3269 = vadd.f32 0.0, %v3268
    %v3270 = vpop.f32.mrb[0].mxu0
    %v3271 = vadd.f32 0.0, %v3270
    %v3272 = vpop.f32.mrb[0].mxu0
    %v3273 = vadd.f32 0.0, %v3272
    %v3274 = vpop.f32.mrb[0].mxu0
    %v3275 = vadd.f32 0.0, %v3274
    %3276 = vmatprep.mubr.bf16.mxu0 %v3166
    %3277 = vmatmul.mubr.bf16.gmra.mrb[0].mxu0 %v3017
    %v3278 = vpop.f32.mrb[0].mxu0
    %v3279 = vadd.f32 0.0, %v3278
    %v3280 = vpop.f32.mrb[0].mxu0
    %v3281 = vadd.f32 0.0, %v3280
    %v3282 = vpop.f32.mrb[0].mxu0
    %v3283 = vadd.f32 0.0, %v3282
    %v3284 = vpop.f32.mrb[0].mxu0
    %v3285 = vadd.f32 0.0, %v3284
    %3286 = vdwg.mxu0
    %v3287 = vadd.f32 %v2873, %v3209
    %v3288 = vadd.f32 %v2875, %v3211
    %v3289 = vadd.f32 %v2877, %v3213
    %v3290 = vadd.f32 %v2879, %v3215
    %v3291 = vadd.f32 %v2883, %v3219
    %v3292 = vadd.f32 %v2885, %v3221
    %v3293 = vadd.f32 %v2887, %v3223
    %v3294 = vadd.f32 %v2889, %v3225
    %v3295 = vadd.f32 %v2893, %v3229
    %v3296 = vadd.f32 %v2895, %v3231
    %v3297 = vadd.f32 %v2897, %v3233
    %v3298 = vadd.f32 %v2899, %v3235
    %v3299 = vadd.f32 %v2903, %v3239
    %v3300 = vadd.f32 %v2905, %v3241
    %v3301 = vadd.f32 %v2907, %v3243
    %v3302 = vadd.f32 %v2909, %v3245
    %v3303 = vadd.f32 %v2913, %v3249
    %v3304 = vadd.f32 %v2915, %v3251
    %v3305 = vadd.f32 %v2917, %v3253
    %v3306 = vadd.f32 %v2919, %v3255
    %v3307 = vadd.f32 %v2923, %v3259
    %v3308 = vadd.f32 %v2925, %v3261
    %v3309 = vadd.f32 %v2927, %v3263
    %v3310 = vadd.f32 %v2929, %v3265
    %v3311 = vadd.f32 %v2933, %v3269
    %v3312 = vadd.f32 %v2935, %v3271
    %v3313 = vadd.f32 %v2937, %v3273
    %v3314 = vadd.f32 %v2939, %v3275
    %v3315 = vadd.f32 %v2943, %v3279
    %v3316 = vadd.f32 %v2945, %v3281
    %v3317 = vadd.f32 %v2947, %v3283
    %v3318 = vadd.f32 %v2949, %v3285
    %v3319 = vld [vmem:[#allocation4] sm:$0x3]
    %v3321 = vlaneseq
    %v3322 = vshrl.u32 %v3321, 7
    %v3323 = vsub.s32 0, %v3322
    %v3324 = vrot.slane %v3319, %v3323
    %v3325 = vlaneseq
    %v3326 = vshrl.u32 %v3325, 7
    %v3327 = vsub.s32 1, %v3326
    %v3328 = vrot.slane %v3319, %v3327
    %v3331 = vadd.f32 %v3287, %v3324
    %v3332 = vadd.f32 %v3288, %v3328
    %v3333 = vadd.f32 %v3289, %v3324
    %v3334 = vadd.f32 %v3290, %v3328
    %v3335 = vadd.f32 %v3291, %v3324
    %v3336 = vadd.f32 %v3292, %v3328
    %v3337 = vadd.f32 %v3293, %v3324
    %v3338 = vadd.f32 %v3294, %v3328
    %v3339 = vadd.f32 %v3295, %v3324
    %v3340 = vadd.f32 %v3296, %v3328
    %v3341 = vadd.f32 %v3297, %v3324
    %v3342 = vadd.f32 %v3298, %v3328
    %v3343 = vadd.f32 %v3299, %v3324
    %v3344 = vadd.f32 %v3300, %v3328
    %v3345 = vadd.f32 %v3301, %v3324
    %v3346 = vadd.f32 %v3302, %v3328
    %v3347 = vadd.f32 %v3303, %v3324
    %v3348 = vadd.f32 %v3304, %v3328
    %v3349 = vadd.f32 %v3305, %v3324
    %v3350 = vadd.f32 %v3306, %v3328
    %v3351 = vadd.f32 %v3307, %v3324
    %v3352 = vadd.f32 %v3308, %v3328
    %v3353 = vadd.f32 %v3309, %v3324
    %v3354 = vadd.f32 %v3310, %v3328
    %v3355 = vadd.f32 %v3311, %v3324
    %v3356 = vadd.f32 %v3312, %v3328
    %v3357 = vadd.f32 %v3313, %v3324
    %v3358 = vadd.f32 %v3314, %v3328
    %v3359 = vadd.f32 %v3315, %v3324
    %v3360 = vadd.f32 %v3316, %v3328
    %v3361 = vadd.f32 %v3317, %v3324
    %v3362 = vadd.f32 %v3318, %v3328
    %v3363 = vmax.f32 %v3331, 0.0
    %v3364 = vmax.f32 %v3332, 0.0
    %v3365 = vmax.f32 %v3333, 0.0
    %v3366 = vmax.f32 %v3334, 0.0
    %v3367 = vmax.f32 %v3335, 0.0
    %v3368 = vmax.f32 %v3336, 0.0
    %v3369 = vmax.f32 %v3337, 0.0
    %v3370 = vmax.f32 %v3338, 0.0
    %v3371 = vmax.f32 %v3339, 0.0
    %v3372 = vmax.f32 %v3340, 0.0
    %v3373 = vmax.f32 %v3341, 0.0
    %v3374 = vmax.f32 %v3342, 0.0
    %v3375 = vmax.f32 %v3343, 0.0
    %v3376 = vmax.f32 %v3344, 0.0
    %v3377 = vmax.f32 %v3345, 0.0
    %v3378 = vmax.f32 %v3346, 0.0
    %v3379 = vmax.f32 %v3347, 0.0
    %v3380 = vmax.f32 %v3348, 0.0
    %v3381 = vmax.f32 %v3349, 0.0
    %v3382 = vmax.f32 %v3350, 0.0
    %v3383 = vmax.f32 %v3351, 0.0
    %v3384 = vmax.f32 %v3352, 0.0
    %v3385 = vmax.f32 %v3353, 0.0
    %v3386 = vmax.f32 %v3354, 0.0
    %v3387 = vmax.f32 %v3355, 0.0
    %v3388 = vmax.f32 %v3356, 0.0
    %v3389 = vmax.f32 %v3357, 0.0
    %v3390 = vmax.f32 %v3358, 0.0
    %v3391 = vmax.f32 %v3359, 0.0
    %v3392 = vmax.f32 %v3360, 0.0
    %v3393 = vmax.f32 %v3361, 0.0
    %v3394 = vmax.f32 %v3362, 0.0
    %v3427 = vrot.slane %v3363, 1
    %v3428 = vrot.slane %v3365, 1
    %v3429 = vsel %vm1366, %v3427, %v3428
    %v3430 = vrot.slane %v3364, 1
    %v3431 = vrot.slane %v3366, 1
    %v3432 = vsel %vm1366, %v3430, %v3431
    %v3433 = vrot.slane %v3367, 1
    %v3434 = vsel %vm1366, %v3428, %v3433
    %v3435 = vrot.slane %v3368, 1
    %v3436 = vsel %vm1366, %v3431, %v3435
    %v3437 = vrot.slane %v3369, 1
    %v3438 = vsel %vm1366, %v3433, %v3437
    %v3439 = vrot.slane %v3370, 1
    %v3440 = vsel %vm1366, %v3435, %v3439
    %v3441 = vrot.slane %v3371, 1
    %v3442 = vsel %vm1366, %v3437, %v3441
    %v3443 = vrot.slane %v3372, 1
    %v3444 = vsel %vm1366, %v3439, %v3443
    %v3445 = vrot.slane %v3373, 1
    %v3446 = vsel %vm1366, %v3441, %v3445
    %v3447 = vrot.slane %v3374, 1
    %v3448 = vsel %vm1366, %v3443, %v3447
    %v3449 = vrot.slane %v3375, 1
    %v3450 = vsel %vm1366, %v3445, %v3449
    %v3451 = vrot.slane %v3376, 1
    %v3452 = vsel %vm1366, %v3447, %v3451
    %v3453 = vrot.slane %v3377, 1
    %v3454 = vsel %vm1366, %v3449, %v3453
    %v3455 = vrot.slane %v3378, 1
    %v3456 = vsel %vm1366, %v3451, %v3455
    %v3457 = vrot.slane %v3379, 1
    %v3458 = vsel %vm1366, %v3453, %v3457
    %v3459 = vrot.slane %v3380, 1
    %v3460 = vsel %vm1366, %v3455, %v3459
    %v3461 = vrot.slane %v3381, 1
    %v3462 = vsel %vm1366, %v3457, %v3461
    %v3463 = vrot.slane %v3382, 1
    %v3464 = vsel %vm1366, %v3459, %v3463
    %v3465 = vrot.slane %v3383, 1
    %v3466 = vsel %vm1366, %v3461, %v3465
    %v3467 = vrot.slane %v3384, 1
    %v3468 = vsel %vm1366, %v3463, %v3467
    %v3469 = vrot.slane %v3385, 1
    %v3470 = vsel %vm1366, %v3465, %v3469
    %v3471 = vrot.slane %v3386, 1
    %v3472 = vsel %vm1366, %v3467, %v3471
    %v3473 = vrot.slane %v3387, 1
    %v3474 = vsel %vm1366, %v3469, %v3473
    %v3475 = vrot.slane %v3388, 1
    %v3476 = vsel %vm1366, %v3471, %v3475
    %v3477 = vrot.slane %v3389, 1
    %v3478 = vsel %vm1366, %v3473, %v3477
    %v3479 = vrot.slane %v3390, 1
    %v3480 = vsel %vm1366, %v3475, %v3479
    %v3481 = vrot.slane %v3391, 1
    %v3482 = vsel %vm1366, %v3477, %v3481
    %v3483 = vrot.slane %v3392, 1
    %v3484 = vsel %vm1366, %v3479, %v3483
    %v3485 = vrot.slane %v3393, 1
    %v3486 = vsel %vm1366, %v3481, %v3485
    %v3487 = vrot.slane %v3394, 1
    %v3488 = vsel %vm1366, %v3483, %v3487
    %v3521 = vmax.f32 %v3363, %v3429
    %v3522 = vmax.f32 %v3364, %v3432
    %v3523 = vmax.f32 %v3365, %v3434
    %v3524 = vmax.f32 %v3366, %v3436
    %v3525 = vmax.f32 %v3367, %v3438
    %v3526 = vmax.f32 %v3368, %v3440
    %v3527 = vmax.f32 %v3369, %v3442
    %v3528 = vmax.f32 %v3370, %v3444
    %v3529 = vmax.f32 %v3371, %v3446
    %v3530 = vmax.f32 %v3372, %v3448
    %v3531 = vmax.f32 %v3373, %v3450
    %v3532 = vmax.f32 %v3374, %v3452
    %v3533 = vmax.f32 %v3375, %v3454
    %v3534 = vmax.f32 %v3376, %v3456
    %v3535 = vmax.f32 %v3377, %v3458
    %v3536 = vmax.f32 %v3378, %v3460
    %v3537 = vmax.f32 %v3379, %v3462
    %v3538 = vmax.f32 %v3380, %v3464
    %v3539 = vmax.f32 %v3381, %v3466
    %v3540 = vmax.f32 %v3382, %v3468
    %v3541 = vmax.f32 %v3383, %v3470
    %v3542 = vmax.f32 %v3384, %v3472
    %v3543 = vmax.f32 %v3385, %v3474
    %v3544 = vmax.f32 %v3386, %v3476
    %v3545 = vmax.f32 %v3387, %v3478
    %v3546 = vmax.f32 %v3388, %v3480
    %v3547 = vmax.f32 %v3389, %v3482
    %v3548 = vmax.f32 %v3390, %v3484
    %v3549 = vmax.f32 %v3391, %v3486
    %v3550 = vmax.f32 %v3392, %v3488
    %v3551 = vmax.f32 %v3393, %v3485
    %v3552 = vmax.f32 %v3394, %v3487
    %3585 = vrot.lane.b32.xlu0 %v3521, 127
    %v3586 = vpop.permute.xlu0 %3585
    %3587 = vrot.lane.b32.xlu0 %v3522, 127
    %v3588 = vpop.permute.xlu0 %3587
    %3589 = vrot.lane.b32.xlu0 %v3523, 127
    %v3590 = vpop.permute.xlu0 %3589
    %3591 = vrot.lane.b32.xlu0 %v3524, 127
    %v3592 = vpop.permute.xlu0 %3591
    %3593 = vrot.lane.b32.xlu0 %v3525, 127
    %v3594 = vpop.permute.xlu0 %3593
    %3595 = vrot.lane.b32.xlu0 %v3526, 127
    %v3596 = vpop.permute.xlu0 %3595
    %3597 = vrot.lane.b32.xlu0 %v3527, 127
    %v3598 = vpop.permute.xlu0 %3597
    %3599 = vrot.lane.b32.xlu0 %v3528, 127
    %v3600 = vpop.permute.xlu0 %3599
    %3601 = vrot.lane.b32.xlu0 %v3529, 127
    %v3602 = vpop.permute.xlu0 %3601
    %3603 = vrot.lane.b32.xlu0 %v3530, 127
    %v3604 = vpop.permute.xlu0 %3603
    %3605 = vrot.lane.b32.xlu0 %v3531, 127
    %v3606 = vpop.permute.xlu0 %3605
    %3607 = vrot.lane.b32.xlu0 %v3532, 127
    %v3608 = vpop.permute.xlu0 %3607
    %3609 = vrot.lane.b32.xlu0 %v3533, 127
    %v3610 = vpop.permute.xlu0 %3609
    %3611 = vrot.lane.b32.xlu0 %v3534, 127
    %v3612 = vpop.permute.xlu0 %3611
    %3613 = vrot.lane.b32.xlu0 %v3535, 127
    %v3614 = vpop.permute.xlu0 %3613
    %3615 = vrot.lane.b32.xlu0 %v3536, 127
    %v3616 = vpop.permute.xlu0 %3615
    %3617 = vrot.lane.b32.xlu0 %v3537, 127
    %v3618 = vpop.permute.xlu0 %3617
    %3619 = vrot.lane.b32.xlu0 %v3538, 127
    %v3620 = vpop.permute.xlu0 %3619
    %3621 = vrot.lane.b32.xlu0 %v3539, 127
    %v3622 = vpop.permute.xlu0 %3621
    %3623 = vrot.lane.b32.xlu0 %v3540, 127
    %v3624 = vpop.permute.xlu0 %3623
    %3625 = vrot.lane.b32.xlu0 %v3541, 127
    %v3626 = vpop.permute.xlu0 %3625
    %3627 = vrot.lane.b32.xlu0 %v3542, 127
    %v3628 = vpop.permute.xlu0 %3627
    %3629 = vrot.lane.b32.xlu0 %v3543, 127
    %v3630 = vpop.permute.xlu0 %3629
    %3631 = vrot.lane.b32.xlu0 %v3544, 127
    %v3632 = vpop.permute.xlu0 %3631
    %3633 = vrot.lane.b32.xlu0 %v3545, 127
    %v3634 = vpop.permute.xlu0 %3633
    %3635 = vrot.lane.b32.xlu0 %v3546, 127
    %v3636 = vpop.permute.xlu0 %3635
    %3637 = vrot.lane.b32.xlu0 %v3547, 127
    %v3638 = vpop.permute.xlu0 %3637
    %3639 = vrot.lane.b32.xlu0 %v3548, 127
    %v3640 = vpop.permute.xlu0 %3639
    %3641 = vrot.lane.b32.xlu0 %v3549, 127
    %v3642 = vpop.permute.xlu0 %3641
    %3643 = vrot.lane.b32.xlu0 %v3550, 127
    %v3644 = vpop.permute.xlu0 %3643
    %3645 = vrot.lane.b32.xlu0 %v3551, 127
    %v3646 = vpop.permute.xlu0 %3645
    %3647 = vrot.lane.b32.xlu0 %v3552, 127
    %v3648 = vpop.permute.xlu0 %3647
    %v3649 = vsel %vm1813, %v3586, %v3588
    %v3650 = vsel %vm1813, %v3590, %v3592
    %v3651 = vsel %vm1813, %v3594, %v3596
    %v3652 = vsel %vm1813, %v3598, %v3600
    %v3653 = vsel %vm1813, %v3602, %v3604
    %v3654 = vsel %vm1813, %v3606, %v3608
    %v3655 = vsel %vm1813, %v3610, %v3612
    %v3656 = vsel %vm1813, %v3614, %v3616
    %v3657 = vsel %vm1813, %v3618, %v3620
    %v3658 = vsel %vm1813, %v3622, %v3624
    %v3659 = vsel %vm1813, %v3626, %v3628
    %v3660 = vsel %vm1813, %v3630, %v3632
    %v3661 = vsel %vm1813, %v3634, %v3636
    %v3662 = vsel %vm1813, %v3638, %v3640
    %v3663 = vsel %vm1813, %v3642, %v3644
    %v3664 = vsel %vm1813, %v3646, %v3648
    %v3697 = vmax.f32 %v3521, %v3649
    %v3698 = vmax.f32 %v3522, %v3588
    %v3699 = vmax.f32 %v3523, %v3650
    %v3700 = vmax.f32 %v3524, %v3592
    %v3701 = vmax.f32 %v3525, %v3651
    %v3702 = vmax.f32 %v3526, %v3596
    %v3703 = vmax.f32 %v3527, %v3652
    %v3704 = vmax.f32 %v3528, %v3600
    %v3705 = vmax.f32 %v3529, %v3653
    %v3706 = vmax.f32 %v3530, %v3604
    %v3707 = vmax.f32 %v3531, %v3654
    %v3708 = vmax.f32 %v3532, %v3608
    %v3709 = vmax.f32 %v3533, %v3655
    %v3710 = vmax.f32 %v3534, %v3612
    %v3711 = vmax.f32 %v3535, %v3656
    %v3712 = vmax.f32 %v3536, %v3616
    %v3713 = vmax.f32 %v3537, %v3657
    %v3714 = vmax.f32 %v3538, %v3620
    %v3715 = vmax.f32 %v3539, %v3658
    %v3716 = vmax.f32 %v3540, %v3624
    %v3717 = vmax.f32 %v3541, %v3659
    %v3718 = vmax.f32 %v3542, %v3628
    %v3719 = vmax.f32 %v3543, %v3660
    %v3720 = vmax.f32 %v3544, %v3632
    %v3721 = vmax.f32 %v3545, %v3661
    %v3722 = vmax.f32 %v3546, %v3636
    %v3723 = vmax.f32 %v3547, %v3662
    %v3724 = vmax.f32 %v3548, %v3640
    %v3725 = vmax.f32 %v3549, %v3663
    %v3726 = vmax.f32 %v3550, %v3644
    %v3727 = vmax.f32 %v3551, %v3664
    %v3728 = vmax.f32 %v3552, %v3648
    %v3729 = vld [vmem:[#allocation6] sm:$0xf]
    %v3730 = vld [vmem:[#allocation6 + $0x4] sm:$0xf]
    %v3731 = vld [vmem:[#allocation6 + $0x8] sm:$0xf]
    %v3732 = vld [vmem:[#allocation6 + $0xc] sm:$0xf]
    %v3733 = vld [vmem:[#allocation6 + $0x10] sm:$0xf]
    %v3734 = vld [vmem:[#allocation6 + $0x14] sm:$0xf]
    %v3735 = vpack.c.bf16 %v3699, %v3697
    %v3736 = vpack.c.bf16 %v3700, %v3698
    %v3737 = vpack.c.bf16 %v3703, %v3701
    %v3738 = vpack.c.bf16 %v3704, %v3702
    %v3739 = vpack.c.bf16 %v3707, %v3705
    %v3740 = vpack.c.bf16 %v3708, %v3706
    %v3741 = vpack.c.bf16 %v3711, %v3709
    %v3742 = vpack.c.bf16 %v3712, %v3710
    %v3743 = vpack.c.bf16 %v3715, %v3713
    %v3744 = vpack.c.bf16 %v3716, %v3714
    %v3745 = vpack.c.bf16 %v3719, %v3717
    %v3746 = vpack.c.bf16 %v3720, %v3718
    %v3747 = vpack.c.bf16 %v3723, %v3721
    %v3748 = vpack.c.bf16 %v3724, %v3722
    %v3749 = vpack.c.bf16 %v3727, %v3725
    %v3750 = vpack.c.bf16 %v3728, %v3726
    %v3757 = vunpack.c.l.b16 %v3729
    %v3758 = vunpack.c.l.b16 %v3730
    %v3759 = vunpack.c.l.b16 %v3731
    %v3760 = vunpack.c.l.b16 %v3732
    %v3761 = vunpack.c.l.b16 %v3733
    %v3762 = vunpack.c.l.b16 %v3734
    %v3763 = vpack.c.b16 %v3758, %v3757
    %v3764 = vpack.c.b16 %v3760, %v3759
    %v3765 = vpack.c.b16 %v3762, %v3761
    %v3767 = vsel %vm2094, %v3763, 0
    %v3770 = vsel %vm2094, %v3764, 0
    %v3773 = vsel %vm2094, %v3765, 0
    %v3776 = vand.u32 %v3749, %v2121
    %v3779 = vand.u32 %v3750, %v2121
    %3781 = vmatprep.subr.bf16.mxu0 %v3736
    %3782 = vmatpush1.bf16.msra.mxu0 %v3735
    %3783 = vmatprep.subr.bf16.mxu0 %v3738
    %3784 = vmatpush1.bf16.msra.mxu0 %v3737
    %3785 = vmatprep.subr.bf16.mxu0 %v3740
    %3786 = vmatpush1.bf16.msra.mxu0 %v3739
    %3787 = vmatprep.subr.bf16.mxu0 %v3742
    %3788 = vmatpush1.bf16.msra.mxu0 %v3741
    %3789 = vmatprep.subr.bf16.mxu0 %v3744
    %3790 = vmatpush1.bf16.msra.mxu0 %v3743
    %3791 = vmatprep.subr.bf16.mxu0 %v3746
    %3792 = vmatpush1.bf16.msra.mxu0 %v3745
    %3793 = vmatprep.subr.bf16.mxu0 %v3748
    %3794 = vmatpush1.bf16.msra.mxu0 %v3747
    %3795 = vmatprep.subr.bf16.mxu0 %v3779
    %3796 = vmatpush1.bf16.msra.mxu0 %v3776
    %3797 = vmatprep.subr.bf16.mxu0 0
    %3798 = vmatpush1.bf16.msra.mxu0 0
    %3799 = vmatprep.subr.bf16.mxu0 0
    %3800 = vmatpush1.bf16.msra.mxu0 0
    %3801 = vmatprep.subr.bf16.mxu0 0
    %3802 = vmatpush1.bf16.msra.mxu0 0
    %3803 = vmatprep.subr.bf16.mxu0 0
    %3804 = vmatpush1.bf16.msra.mxu0 0
    %3805 = vmatprep.subr.bf16.mxu0 0
    %3806 = vmatpush1.bf16.msra.mxu0 0
    %3807 = vmatprep.subr.bf16.mxu0 0
    %3808 = vmatpush1.bf16.msra.mxu0 0
    %3809 = vmatprep.subr.bf16.mxu0 0
    %3810 = vmatpush1.bf16.msra.mxu0 0
    %3811 = vmatprep.subr.bf16.mxu0 0
    %3812 = vmatpush1.bf16.msra.mxu0 0
    %3813 = vmatprep.mubr.bf16.mxu0 0
    %3814 = vmatmul.mubr.bf16.gmra.mrb[0].mxu0 %v3767
    %v3815 = vpop.f32.mrb[0].mxu0
    %v3816 = vadd.f32 0.0, %v3815
    %v3817 = vpop.f32.mrb[0].mxu0
    %v3818 = vadd.f32 0.0, %v3817
    %v3819 = vpop.f32.mrb[0].mxu0
    %v3820 = vadd.f32 0.0, %v3819
    %v3821 = vpop.f32.mrb[0].mxu0
    %v3822 = vadd.f32 0.0, %v3821
    %3823 = vmatprep.mubr.bf16.mxu0 0
    %3824 = vmatmul.mubr.bf16.gmra.mrb[0].mxu0 %v3770
    %v3825 = vpop.f32.mrb[0].mxu0
    %v3826 = vadd.f32 0.0, %v3825
    %v3827 = vpop.f32.mrb[0].mxu0
    %v3828 = vadd.f32 0.0, %v3827
    %v3829 = vpop.f32.mrb[0].mxu0
    %v3830 = vadd.f32 0.0, %v3829
    %v3831 = vpop.f32.mrb[0].mxu0
    %v3832 = vadd.f32 0.0, %v3831
    %3833 = vmatprep.mubr.bf16.mxu0 0
    %3834 = vmatmul.mubr.bf16.gmra.mrb[0].mxu0 %v3773
    %v3835 = vpop.f32.mrb[0].mxu0
    %v3836 = vadd.f32 0.0, %v3835
    %v3837 = vpop.f32.mrb[0].mxu0
    %v3838 = vadd.f32 0.0, %v3837
    %v3839 = vpop.f32.mrb[0].mxu0
    %v3840 = vadd.f32 0.0, %v3839
    %v3841 = vpop.f32.mrb[0].mxu0
    %v3842 = vadd.f32 0.0, %v3841
    %3843 = vdwg.mxu0
    %v3844 = vld [vmem:[#allocation7] sm:$0xf]
    %v3845 = vld [vmem:[#allocation7 + $0x4] sm:$0xf]
    %v3846 = vld [vmem:[#allocation7 + $0x8] sm:$0xf]
    %v3847 = vld [vmem:[#allocation7 + $0xc] sm:$0xf]
    %v3848 = vld [vmem:[#allocation7 + $0x10] sm:$0xf]
    %v3849 = vld [vmem:[#allocation7 + $0x14] sm:$0xf]
    %v3850 = vld [vmem:[#allocation7 + $0x18] sm:$0xf]
    %v3851 = vld [vmem:[#allocation7 + $0x1c] sm:$0xf]
    %v3852 = vld [vmem:[#allocation7 + $0x20] sm:$0xf]
    %v3853 = vld [vmem:[#allocation7 + $0x24] sm:$0xf]
    %v3854 = vld [vmem:[#allocation7 + $0x28] sm:$0xf]
    %v3855 = vld [vmem:[#allocation7 + $0x2c] sm:$0xf]
    %v3856 = vld [vmem:[#allocation7 + $0x30] sm:$0xf]
    %v3857 = vld [vmem:[#allocation7 + $0x34] sm:$0xf]
    %v3858 = vld [vmem:[#allocation7 + $0x38] sm:$0xf]
    %v3859 = vld [vmem:[#allocation7 + $0x3c] sm:$0xf]
    %v3860 = vld [vmem:[#allocation7 + $0x40] sm:$0xf]
    %v3861 = vld [vmem:[#allocation7 + $0x44] sm:$0xf]
    %v3862 = vld [vmem:[#allocation7 + $0x48] sm:$0xf]
    %v3863 = vld [vmem:[#allocation7 + $0x4c] sm:$0xf]
    %v3864 = vld [vmem:[#allocation7 + $0x50] sm:$0xf]
    %v3865 = vld [vmem:[#allocation7 + $0x54] sm:$0xf]
    %v3866 = vld [vmem:[#allocation7 + $0x58] sm:$0xf]
    %v3867 = vld [vmem:[#allocation7 + $0x5c] sm:$0xf]
    %v3868 = vld [vmem:[#allocation7 + $0x60] sm:$0xf]
    %v3869 = vld [vmem:[#allocation7 + $0x64] sm:$0xf]
    %v3870 = vpack.c.bf16 %v3816, %v3816
    %v3871 = vpack.c.bf16 %v3818, %v3818
    %s3872 = scalar_lea.vmem [#allocation7], 104
    %v3873 = vld [vmem:[%s3872] sm:$0xf]
    %v3874 = vld [vmem:[%s3872 + $0x4] sm:$0xf]
    %v3875 = vld [vmem:[%s3872 + $0x8] sm:$0xf]
    %v3876 = vld [vmem:[%s3872 + $0xc] sm:$0xf]
    %v3877 = vld [vmem:[%s3872 + $0x10] sm:$0xf]
    %v3878 = vld [vmem:[%s3872 + $0x14] sm:$0xf]
    %v3879 = vld [vmem:[%s3872 + $0x18] sm:$0xf]
    %v3880 = vld [vmem:[%s3872 + $0x1c] sm:$0xf]
    %v3881 = vld [vmem:[%s3872 + $0x20] sm:$0xf]
    %v3882 = vld [vmem:[%s3872 + $0x24] sm:$0xf]
    %v3883 = vld [vmem:[%s3872 + $0x28] sm:$0xf]
    %v3884 = vld [vmem:[%s3872 + $0x2c] sm:$0xf]
    %v3885 = vld [vmem:[%s3872 + $0x30] sm:$0xf]
    %v3886 = vld [vmem:[%s3872 + $0x34] sm:$0xf]
    %v3887 = vld [vmem:[%s3872 + $0x38] sm:$0xf]
    %v3888 = vld [vmem:[%s3872 + $0x3c] sm:$0xf]
    %v3889 = vld [vmem:[%s3872 + $0x40] sm:$0xf]
    %v3890 = vld [vmem:[%s3872 + $0x44] sm:$0xf]
    %v3891 = vld [vmem:[%s3872 + $0x48] sm:$0xf]
    %v3892 = vld [vmem:[%s3872 + $0x4c] sm:$0xf]
    %v3893 = vld [vmem:[%s3872 + $0x50] sm:$0xf]
    %v3894 = vld [vmem:[%s3872 + $0x54] sm:$0xf]
    %v3895 = vld [vmem:[%s3872 + $0x58] sm:$0xf]
    %v3896 = vld [vmem:[%s3872 + $0x5c] sm:$0xf]
    %v3897 = vld [vmem:[%s3872 + $0x60] sm:$0xf]
    %v3898 = vld [vmem:[%s3872 + $0x64] sm:$0xf]
    %v3899 = vpack.c.bf16 %v3820, %v3820
    %v3900 = vpack.c.bf16 %v3822, %v3822
    %v3927 = vunpack.c.l.b16 %v3873
    %v3928 = vunpack.c.l.b16 %v3874
    %v3929 = vunpack.c.l.b16 %v3875
    %v3930 = vunpack.c.l.b16 %v3876
    %v3931 = vunpack.c.l.b16 %v3877
    %v3932 = vunpack.c.l.b16 %v3878
    %v3933 = vunpack.c.l.b16 %v3879
    %v3934 = vunpack.c.l.b16 %v3880
    %v3935 = vunpack.c.l.b16 %v3881
    %v3936 = vunpack.c.l.b16 %v3882
    %v3937 = vunpack.c.l.b16 %v3883
    %v3938 = vunpack.c.l.b16 %v3884
    %v3939 = vunpack.c.l.b16 %v3885
    %v3940 = vunpack.c.l.b16 %v3886
    %v3941 = vunpack.c.l.b16 %v3887
    %v3942 = vunpack.c.l.b16 %v3888
    %v3943 = vunpack.c.l.b16 %v3889
    %v3944 = vunpack.c.l.b16 %v3890
    %v3945 = vunpack.c.l.b16 %v3891
    %v3946 = vunpack.c.l.b16 %v3892
    %v3947 = vunpack.c.l.b16 %v3893
    %v3948 = vunpack.c.l.b16 %v3894
    %v3949 = vunpack.c.l.b16 %v3895
    %v3950 = vunpack.c.l.b16 %v3896
    %v3951 = vunpack.c.l.b16 %v3897
    %v3952 = vunpack.c.l.b16 %v3898
    %v3953 = vpack.c.b16 %v3928, %v3927
    %v3954 = vpack.c.b16 %v3930, %v3929
    %v3955 = vpack.c.b16 %v3932, %v3931
    %v3956 = vpack.c.b16 %v3934, %v3933
    %v3957 = vpack.c.b16 %v3936, %v3935
    %v3958 = vpack.c.b16 %v3938, %v3937
    %v3959 = vpack.c.b16 %v3940, %v3939
    %v3960 = vpack.c.b16 %v3942, %v3941
    %v3961 = vpack.c.b16 %v3944, %v3943
    %v3962 = vpack.c.b16 %v3946, %v3945
    %v3963 = vpack.c.b16 %v3948, %v3947
    %v3964 = vpack.c.b16 %v3950, %v3949
    %v3965 = vpack.c.b16 %v3952, %v3951
    %vm3978 = vcmask 646144
    %v3980 = vsel %vm3978, %v3900, 0
    %vm3982 = vcmask 1047552
    %v3983 = vsel %vm1366, 4294967295, 65535
    %v3984 = vsel %vm3982, %v3983, 0
    %v3986 = vand.u32 %v3965, %v3984
    %3988 = vmatprep.subr.bf16.mxu0 0
    %3989 = vmatpush1.bf16.msra.mxu0 %v3953
    %3990 = vmatprep.subr.bf16.mxu0 0
    %3991 = vmatpush1.bf16.msra.mxu0 %v3954
    %3992 = vmatprep.subr.bf16.mxu0 0
    %3993 = vmatpush1.bf16.msra.mxu0 %v3955
    %3994 = vmatprep.subr.bf16.mxu0 0
    %3995 = vmatpush1.bf16.msra.mxu0 %v3956
    %3996 = vmatprep.subr.bf16.mxu0 0
    %3997 = vmatpush1.bf16.msra.mxu0 %v3957
    %3998 = vmatprep.subr.bf16.mxu0 0
    %3999 = vmatpush1.bf16.msra.mxu0 %v3958
    %4000 = vmatprep.subr.bf16.mxu0 0
    %4001 = vmatpush1.bf16.msra.mxu0 %v3959
    %4002 = vmatprep.subr.bf16.mxu0 0
    %4003 = vmatpush1.bf16.msra.mxu0 %v3960
    %4004 = vmatprep.subr.bf16.mxu0 0
    %4005 = vmatpush1.bf16.msra.mxu0 %v3961
    %4006 = vmatprep.subr.bf16.mxu0 0
    %4007 = vmatpush1.bf16.msra.mxu0 %v3962
    %4008 = vmatprep.subr.bf16.mxu0 0
    %4009 = vmatpush1.bf16.msra.mxu0 %v3963
    %4010 = vmatprep.subr.bf16.mxu0 0
    %4011 = vmatpush1.bf16.msra.mxu0 %v3964
    %4012 = vmatprep.subr.bf16.mxu0 0
    %4013 = vmatpush1.bf16.msra.mxu0 %v3986
    %4014 = vmatprep.subr.bf16.mxu0 0
    %4015 = vmatpush1.bf16.msra.mxu0 0
    %4016 = vmatprep.subr.bf16.mxu0 0
    %4017 = vmatpush1.bf16.msra.mxu0 0
    %4018 = vmatprep.subr.bf16.mxu0 0
    %4019 = vmatpush1.bf16.msra.mxu0 0
    %4020 = vmatprep.mubr.bf16.mxu0 %v3980
    %4021 = vmatmul.mubr.bf16.gmra.mrb[0].mxu0 %v3899
    %v4022 = vpop.f32.mrb[0].mxu0
    %v4023 = vadd.f32 0.0, %v4022
    %v4024 = vpop.f32.mrb[0].mxu0
    %v4025 = vpop.f32.mrb[0].mxu0
    %v4026 = vpop.f32.mrb[0].mxu0
    %4027 = vdwg.mxu0
    %v4054 = vunpack.c.l.b16 %v3844
    %v4055 = vunpack.c.l.b16 %v3845
    %v4056 = vunpack.c.l.b16 %v3846
    %v4057 = vunpack.c.l.b16 %v3847
    %v4058 = vunpack.c.l.b16 %v3848
    %v4059 = vunpack.c.l.b16 %v3849
    %v4060 = vunpack.c.l.b16 %v3850
    %v4061 = vunpack.c.l.b16 %v3851
    %v4062 = vunpack.c.l.b16 %v3852
    %v4063 = vunpack.c.l.b16 %v3853
    %v4064 = vunpack.c.l.b16 %v3854
    %v4065 = vunpack.c.l.b16 %v3855
    %v4066 = vunpack.c.l.b16 %v3856
    %v4067 = vunpack.c.l.b16 %v3857
    %v4068 = vunpack.c.l.b16 %v3858
    %v4069 = vunpack.c.l.b16 %v3859
    %v4070 = vunpack.c.l.b16 %v3860
    %v4071 = vunpack.c.l.b16 %v3861
    %v4072 = vunpack.c.l.b16 %v3862
    %v4073 = vunpack.c.l.b16 %v3863
    %v4074 = vunpack.c.l.b16 %v3864
    %v4075 = vunpack.c.l.b16 %v3865
    %v4076 = vunpack.c.l.b16 %v3866
    %v4077 = vunpack.c.l.b16 %v3867
    %v4078 = vunpack.c.l.b16 %v3868
    %v4079 = vunpack.c.l.b16 %v3869
    %v4080 = vpack.c.b16 %v4055, %v4054
    %v4081 = vpack.c.b16 %v4057, %v4056
    %v4082 = vpack.c.b16 %v4059, %v4058
    %v4083 = vpack.c.b16 %v4061, %v4060
    %v4084 = vpack.c.b16 %v4063, %v4062
    %v4085 = vpack.c.b16 %v4065, %v4064
    %v4086 = vpack.c.b16 %v4067, %v4066
    %v4087 = vpack.c.b16 %v4069, %v4068
    %v4088 = vpack.c.b16 %v4071, %v4070
    %v4089 = vpack.c.b16 %v4073, %v4072
    %v4090 = vpack.c.b16 %v4075, %v4074
    %v4091 = vpack.c.b16 %v4077, %v4076
    %v4092 = vpack.c.b16 %v4079, %v4078
    %v4106 = vsel %vm3978, %v3871, 0
    %v4109 = vand.u32 %v4092, %v3984
    %4111 = vmatprep.subr.bf16.mxu0 0
    %4112 = vmatpush1.bf16.msra.mxu0 %v4080
    %4113 = vmatprep.subr.bf16.mxu0 0
    %4114 = vmatpush1.bf16.msra.mxu0 %v4081
    %4115 = vmatprep.subr.bf16.mxu0 0
    %4116 = vmatpush1.bf16.msra.mxu0 %v4082
    %4117 = vmatprep.subr.bf16.mxu0 0
    %4118 = vmatpush1.bf16.msra.mxu0 %v4083
    %4119 = vmatprep.subr.bf16.mxu0 0
    %4120 = vmatpush1.bf16.msra.mxu0 %v4084
    %4121 = vmatprep.subr.bf16.mxu0 0
    %4122 = vmatpush1.bf16.msra.mxu0 %v4085
    %4123 = vmatprep.subr.bf16.mxu0 0
    %4124 = vmatpush1.bf16.msra.mxu0 %v4086
    %4125 = vmatprep.subr.bf16.mxu0 0
    %4126 = vmatpush1.bf16.msra.mxu0 %v4087
    %4127 = vmatprep.subr.bf16.mxu0 0
    %4128 = vmatpush1.bf16.msra.mxu0 %v4088
    %4129 = vmatprep.subr.bf16.mxu0 0
    %4130 = vmatpush1.bf16.msra.mxu0 %v4089
    %4131 = vmatprep.subr.bf16.mxu0 0
    %4132 = vmatpush1.bf16.msra.mxu0 %v4090
    %4133 = vmatprep.subr.bf16.mxu0 0
    %4134 = vmatpush1.bf16.msra.mxu0 %v4091
    %4135 = vmatprep.subr.bf16.mxu0 0
    %4136 = vmatpush1.bf16.msra.mxu0 %v4109
    %4137 = vmatprep.subr.bf16.mxu0 0
    %4138 = vmatpush1.bf16.msra.mxu0 0
    %4139 = vmatprep.subr.bf16.mxu0 0
    %4140 = vmatpush1.bf16.msra.mxu0 0
    %4141 = vmatprep.subr.bf16.mxu0 0
    %4142 = vmatpush1.bf16.msra.mxu0 0
    %4143 = vmatprep.mubr.bf16.mxu0 %v4106
    %4144 = vmatmul.mubr.bf16.gmra.mrb[0].mxu0 %v3870
    %v4145 = vpop.f32.mrb[0].mxu0
    %v4146 = vadd.f32 %v4023, %v4145
    %v4147 = vpop.f32.mrb[0].mxu0
    %v4148 = vpop.f32.mrb[0].mxu0
    %v4149 = vpop.f32.mrb[0].mxu0
    %4150 = vdwg.mxu0
    %s4151 = scalar_lea.vmem [#allocation7], 208
    %v4152 = vld [vmem:[%s4151] sm:$0xf]
    %v4153 = vld [vmem:[%s4151 + $0x4] sm:$0xf]
    %v4154 = vld [vmem:[%s4151 + $0x8] sm:$0xf]
    %v4155 = vld [vmem:[%s4151 + $0xc] sm:$0xf]
    %v4156 = vld [vmem:[%s4151 + $0x10] sm:$0xf]
    %v4157 = vld [vmem:[%s4151 + $0x14] sm:$0xf]
    %v4158 = vld [vmem:[%s4151 + $0x18] sm:$0xf]
    %v4159 = vld [vmem:[%s4151 + $0x1c] sm:$0xf]
    %v4160 = vld [vmem:[%s4151 + $0x20] sm:$0xf]
    %v4161 = vld [vmem:[%s4151 + $0x24] sm:$0xf]
    %v4162 = vld [vmem:[%s4151 + $0x28] sm:$0xf]
    %v4163 = vld [vmem:[%s4151 + $0x2c] sm:$0xf]
    %v4164 = vld [vmem:[%s4151 + $0x30] sm:$0xf]
    %v4165 = vld [vmem:[%s4151 + $0x34] sm:$0xf]
    %v4166 = vld [vmem:[%s4151 + $0x38] sm:$0xf]
    %v4167 = vld [vmem:[%s4151 + $0x3c] sm:$0xf]
    %v4168 = vld [vmem:[%s4151 + $0x40] sm:$0xf]
    %v4169 = vld [vmem:[%s4151 + $0x44] sm:$0xf]
    %v4170 = vld [vmem:[%s4151 + $0x48] sm:$0xf]
    %v4171 = vld [vmem:[%s4151 + $0x4c] sm:$0xf]
    %v4172 = vld [vmem:[%s4151 + $0x50] sm:$0xf]
    %v4173 = vld [vmem:[%s4151 + $0x54] sm:$0xf]
    %v4174 = vld [vmem:[%s4151 + $0x58] sm:$0xf]
    %v4175 = vld [vmem:[%s4151 + $0x5c] sm:$0xf]
    %v4176 = vld [vmem:[%s4151 + $0x60] sm:$0xf]
    %v4177 = vld [vmem:[%s4151 + $0x64] sm:$0xf]
    %v4178 = vpack.c.bf16 %v3826, %v3826
    %v4179 = vpack.c.bf16 %v3828, %v3828
    %v4206 = vunpack.c.l.b16 %v4152
    %v4207 = vunpack.c.l.b16 %v4153
    %v4208 = vunpack.c.l.b16 %v4154
    %v4209 = vunpack.c.l.b16 %v4155
    %v4210 = vunpack.c.l.b16 %v4156
    %v4211 = vunpack.c.l.b16 %v4157
    %v4212 = vunpack.c.l.b16 %v4158
    %v4213 = vunpack.c.l.b16 %v4159
    %v4214 = vunpack.c.l.b16 %v4160
    %v4215 = vunpack.c.l.b16 %v4161
    %v4216 = vunpack.c.l.b16 %v4162
    %v4217 = vunpack.c.l.b16 %v4163
    %v4218 = vunpack.c.l.b16 %v4164
    %v4219 = vunpack.c.l.b16 %v4165
    %v4220 = vunpack.c.l.b16 %v4166
    %v4221 = vunpack.c.l.b16 %v4167
    %v4222 = vunpack.c.l.b16 %v4168
    %v4223 = vunpack.c.l.b16 %v4169
    %v4224 = vunpack.c.l.b16 %v4170
    %v4225 = vunpack.c.l.b16 %v4171
    %v4226 = vunpack.c.l.b16 %v4172
    %v4227 = vunpack.c.l.b16 %v4173
    %v4228 = vunpack.c.l.b16 %v4174
    %v4229 = vunpack.c.l.b16 %v4175
    %v4230 = vunpack.c.l.b16 %v4176
    %v4231 = vunpack.c.l.b16 %v4177
    %v4232 = vpack.c.b16 %v4207, %v4206
    %v4233 = vpack.c.b16 %v4209, %v4208
    %v4234 = vpack.c.b16 %v4211, %v4210
    %v4235 = vpack.c.b16 %v4213, %v4212
    %v4236 = vpack.c.b16 %v4215, %v4214
    %v4237 = vpack.c.b16 %v4217, %v4216
    %v4238 = vpack.c.b16 %v4219, %v4218
    %v4239 = vpack.c.b16 %v4221, %v4220
    %v4240 = vpack.c.b16 %v4223, %v4222
    %v4241 = vpack.c.b16 %v4225, %v4224
    %v4242 = vpack.c.b16 %v4227, %v4226
    %v4243 = vpack.c.b16 %v4229, %v4228
    %v4244 = vpack.c.b16 %v4231, %v4230
    %v4258 = vsel %vm3978, %v4179, 0
    %v4261 = vand.u32 %v4244, %v3984
    %4263 = vmatprep.subr.bf16.mxu0 0
    %4264 = vmatpush1.bf16.msra.mxu0 %v4232
    %4265 = vmatprep.subr.bf16.mxu0 0
    %4266 = vmatpush1.bf16.msra.mxu0 %v4233
    %4267 = vmatprep.subr.bf16.mxu0 0
    %4268 = vmatpush1.bf16.msra.mxu0 %v4234
    %4269 = vmatprep.subr.bf16.mxu0 0
    %4270 = vmatpush1.bf16.msra.mxu0 %v4235
    %4271 = vmatprep.subr.bf16.mxu0 0
    %4272 = vmatpush1.bf16.msra.mxu0 %v4236
    %4273 = vmatprep.subr.bf16.mxu0 0
    %4274 = vmatpush1.bf16.msra.mxu0 %v4237
    %4275 = vmatprep.subr.bf16.mxu0 0
    %4276 = vmatpush1.bf16.msra.mxu0 %v4238
    %4277 = vmatprep.subr.bf16.mxu0 0
    %4278 = vmatpush1.bf16.msra.mxu0 %v4239
    %4279 = vmatprep.subr.bf16.mxu0 0
    %4280 = vmatpush1.bf16.msra.mxu0 %v4240
    %4281 = vmatprep.subr.bf16.mxu0 0
    %4282 = vmatpush1.bf16.msra.mxu0 %v4241
    %4283 = vmatprep.subr.bf16.mxu0 0
    %4284 = vmatpush1.bf16.msra.mxu0 %v4242
    %4285 = vmatprep.subr.bf16.mxu0 0
    %4286 = vmatpush1.bf16.msra.mxu0 %v4243
    %4287 = vmatprep.subr.bf16.mxu0 0
    %4288 = vmatpush1.bf16.msra.mxu0 %v4261
    %4289 = vmatprep.subr.bf16.mxu0 0
    %4290 = vmatpush1.bf16.msra.mxu0 0
    %4291 = vmatprep.subr.bf16.mxu0 0
    %4292 = vmatpush1.bf16.msra.mxu0 0
    %4293 = vmatprep.subr.bf16.mxu0 0
    %4294 = vmatpush1.bf16.msra.mxu0 0
    %4295 = vmatprep.mubr.bf16.mxu0 %v4258
    %4296 = vmatmul.mubr.bf16.gmra.mrb[0].mxu0 %v4178
    %v4297 = vpop.f32.mrb[0].mxu0
    %v4298 = vadd.f32 0.0, %v4297
    %v4299 = vpop.f32.mrb[0].mxu0
    %v4300 = vpop.f32.mrb[0].mxu0
    %v4301 = vpop.f32.mrb[0].mxu0
    %4302 = vdwg.mxu0
    %v4303 = vadd.f32 %v4146, %v4298
    %s4304 = scalar_lea.vmem [#allocation7], 312
    %v4305 = vld [vmem:[%s4304] sm:$0xf]
    %v4306 = vld [vmem:[%s4304 + $0x4] sm:$0xf]
    %v4307 = vld [vmem:[%s4304 + $0x8] sm:$0xf]
    %v4308 = vld [vmem:[%s4304 + $0xc] sm:$0xf]
    %v4309 = vld [vmem:[%s4304 + $0x10] sm:$0xf]
    %v4310 = vld [vmem:[%s4304 + $0x14] sm:$0xf]
    %v4311 = vld [vmem:[%s4304 + $0x18] sm:$0xf]
    %v4312 = vld [vmem:[%s4304 + $0x1c] sm:$0xf]
    %v4313 = vld [vmem:[%s4304 + $0x20] sm:$0xf]
    %v4314 = vld [vmem:[%s4304 + $0x24] sm:$0xf]
    %v4315 = vld [vmem:[%s4304 + $0x28] sm:$0xf]
    %v4316 = vld [vmem:[%s4304 + $0x2c] sm:$0xf]
    %v4317 = vld [vmem:[%s4304 + $0x30] sm:$0xf]
    %v4318 = vld [vmem:[%s4304 + $0x34] sm:$0xf]
    %v4319 = vld [vmem:[%s4304 + $0x38] sm:$0xf]
    %v4320 = vld [vmem:[%s4304 + $0x3c] sm:$0xf]
    %v4321 = vld [vmem:[%s4304 + $0x40] sm:$0xf]
    %v4322 = vld [vmem:[%s4304 + $0x44] sm:$0xf]
    %v4323 = vld [vmem:[%s4304 + $0x48] sm:$0xf]
    %v4324 = vld [vmem:[%s4304 + $0x4c] sm:$0xf]
    %v4325 = vld [vmem:[%s4304 + $0x50] sm:$0xf]
    %v4326 = vld [vmem:[%s4304 + $0x54] sm:$0xf]
    %v4327 = vld [vmem:[%s4304 + $0x58] sm:$0xf]
    %v4328 = vld [vmem:[%s4304 + $0x5c] sm:$0xf]
    %v4329 = vld [vmem:[%s4304 + $0x60] sm:$0xf]
    %v4330 = vld [vmem:[%s4304 + $0x64] sm:$0xf]
    %v4331 = vpack.c.bf16 %v3830, %v3830
    %v4332 = vpack.c.bf16 %v3832, %v3832
    %v4359 = vunpack.c.l.b16 %v4305
    %v4360 = vunpack.c.l.b16 %v4306
    %v4361 = vunpack.c.l.b16 %v4307
    %v4362 = vunpack.c.l.b16 %v4308
    %v4363 = vunpack.c.l.b16 %v4309
    %v4364 = vunpack.c.l.b16 %v4310
    %v4365 = vunpack.c.l.b16 %v4311
    %v4366 = vunpack.c.l.b16 %v4312
    %v4367 = vunpack.c.l.b16 %v4313
    %v4368 = vunpack.c.l.b16 %v4314
    %v4369 = vunpack.c.l.b16 %v4315
    %v4370 = vunpack.c.l.b16 %v4316
    %v4371 = vunpack.c.l.b16 %v4317
    %v4372 = vunpack.c.l.b16 %v4318
    %v4373 = vunpack.c.l.b16 %v4319
    %v4374 = vunpack.c.l.b16 %v4320
    %v4375 = vunpack.c.l.b16 %v4321
    %v4376 = vunpack.c.l.b16 %v4322
    %v4377 = vunpack.c.l.b16 %v4323
    %v4378 = vunpack.c.l.b16 %v4324
    %v4379 = vunpack.c.l.b16 %v4325
    %v4380 = vunpack.c.l.b16 %v4326
    %v4381 = vunpack.c.l.b16 %v4327
    %v4382 = vunpack.c.l.b16 %v4328
    %v4383 = vunpack.c.l.b16 %v4329
    %v4384 = vunpack.c.l.b16 %v4330
    %v4385 = vpack.c.b16 %v4360, %v4359
    %v4386 = vpack.c.b16 %v4362, %v4361
    %v4387 = vpack.c.b16 %v4364, %v4363
    %v4388 = vpack.c.b16 %v4366, %v4365
    %v4389 = vpack.c.b16 %v4368, %v4367
    %v4390 = vpack.c.b16 %v4370, %v4369
    %v4391 = vpack.c.b16 %v4372, %v4371
    %v4392 = vpack.c.b16 %v4374, %v4373
    %v4393 = vpack.c.b16 %v4376, %v4375
    %v4394 = vpack.c.b16 %v4378, %v4377
    %v4395 = vpack.c.b16 %v4380, %v4379
    %v4396 = vpack.c.b16 %v4382, %v4381
    %v4397 = vpack.c.b16 %v4384, %v4383
    %v4411 = vsel %vm3978, %v4332, 0
    %v4414 = vand.u32 %v4397, %v3984
    %4416 = vmatprep.subr.bf16.mxu0 0
    %4417 = vmatpush1.bf16.msra.mxu0 %v4385
    %4418 = vmatprep.subr.bf16.mxu0 0
    %4419 = vmatpush1.bf16.msra.mxu0 %v4386
    %4420 = vmatprep.subr.bf16.mxu0 0
    %4421 = vmatpush1.bf16.msra.mxu0 %v4387
    %4422 = vmatprep.subr.bf16.mxu0 0
    %4423 = vmatpush1.bf16.msra.mxu0 %v4388
    %4424 = vmatprep.subr.bf16.mxu0 0
    %4425 = vmatpush1.bf16.msra.mxu0 %v4389
    %4426 = vmatprep.subr.bf16.mxu0 0
    %4427 = vmatpush1.bf16.msra.mxu0 %v4390
    %4428 = vmatprep.subr.bf16.mxu0 0
    %4429 = vmatpush1.bf16.msra.mxu0 %v4391
    %4430 = vmatprep.subr.bf16.mxu0 0
    %4431 = vmatpush1.bf16.msra.mxu0 %v4392
    %4432 = vmatprep.subr.bf16.mxu0 0
    %4433 = vmatpush1.bf16.msra.mxu0 %v4393
    %4434 = vmatprep.subr.bf16.mxu0 0
    %4435 = vmatpush1.bf16.msra.mxu0 %v4394
    %4436 = vmatprep.subr.bf16.mxu0 0
    %4437 = vmatpush1.bf16.msra.mxu0 %v4395
    %4438 = vmatprep.subr.bf16.mxu0 0
    %4439 = vmatpush1.bf16.msra.mxu0 %v4396
    %4440 = vmatprep.subr.bf16.mxu0 0
    %4441 = vmatpush1.bf16.msra.mxu0 %v4414
    %4442 = vmatprep.subr.bf16.mxu0 0
    %4443 = vmatpush1.bf16.msra.mxu0 0
    %4444 = vmatprep.subr.bf16.mxu0 0
    %4445 = vmatpush1.bf16.msra.mxu0 0
    %4446 = vmatprep.subr.bf16.mxu0 0
    %4447 = vmatpush1.bf16.msra.mxu0 0
    %4448 = vmatprep.mubr.bf16.mxu0 %v4411
    %4449 = vmatmul.mubr.bf16.gmra.mrb[0].mxu0 %v4331
    %v4450 = vpop.f32.mrb[0].mxu0
    %v4451 = vadd.f32 0.0, %v4450
    %v4452 = vpop.f32.mrb[0].mxu0
    %v4453 = vpop.f32.mrb[0].mxu0
    %v4454 = vpop.f32.mrb[0].mxu0
    %4455 = vdwg.mxu0
    %v4456 = vadd.f32 %v4303, %v4451
    %s4457 = scalar_lea.vmem [#allocation7], 416
    %v4458 = vld [vmem:[%s4457] sm:$0xf]
    %v4459 = vld [vmem:[%s4457 + $0x4] sm:$0xf]
    %v4460 = vld [vmem:[%s4457 + $0x8] sm:$0xf]
    %v4461 = vld [vmem:[%s4457 + $0xc] sm:$0xf]
    %v4462 = vld [vmem:[%s4457 + $0x10] sm:$0xf]
    %v4463 = vld [vmem:[%s4457 + $0x14] sm:$0xf]
    %v4464 = vld [vmem:[%s4457 + $0x18] sm:$0xf]
    %v4465 = vld [vmem:[%s4457 + $0x1c] sm:$0xf]
    %v4466 = vld [vmem:[%s4457 + $0x20] sm:$0xf]
    %v4467 = vld [vmem:[%s4457 + $0x24] sm:$0xf]
    %v4468 = vld [vmem:[%s4457 + $0x28] sm:$0xf]
    %v4469 = vld [vmem:[%s4457 + $0x2c] sm:$0xf]
    %v4470 = vld [vmem:[%s4457 + $0x30] sm:$0xf]
    %v4471 = vld [vmem:[%s4457 + $0x34] sm:$0xf]
    %v4472 = vld [vmem:[%s4457 + $0x38] sm:$0xf]
    %v4473 = vld [vmem:[%s4457 + $0x3c] sm:$0xf]
    %v4474 = vld [vmem:[%s4457 + $0x40] sm:$0xf]
    %v4475 = vld [vmem:[%s4457 + $0x44] sm:$0xf]
    %v4476 = vld [vmem:[%s4457 + $0x48] sm:$0xf]
    %v4477 = vld [vmem:[%s4457 + $0x4c] sm:$0xf]
    %v4478 = vld [vmem:[%s4457 + $0x50] sm:$0xf]
    %v4479 = vld [vmem:[%s4457 + $0x54] sm:$0xf]
    %v4480 = vld [vmem:[%s4457 + $0x58] sm:$0xf]
    %v4481 = vld [vmem:[%s4457 + $0x5c] sm:$0xf]
    %v4482 = vld [vmem:[%s4457 + $0x60] sm:$0xf]
    %v4483 = vld [vmem:[%s4457 + $0x64] sm:$0xf]
    %v4484 = vpack.c.bf16 %v3836, %v3836
    %v4485 = vpack.c.bf16 %v3838, %v3838
    %v4512 = vunpack.c.l.b16 %v4458
    %v4513 = vunpack.c.l.b16 %v4459
    %v4514 = vunpack.c.l.b16 %v4460
    %v4515 = vunpack.c.l.b16 %v4461
    %v4516 = vunpack.c.l.b16 %v4462
    %v4517 = vunpack.c.l.b16 %v4463
    %v4518 = vunpack.c.l.b16 %v4464
    %v4519 = vunpack.c.l.b16 %v4465
    %v4520 = vunpack.c.l.b16 %v4466
    %v4521 = vunpack.c.l.b16 %v4467
    %v4522 = vunpack.c.l.b16 %v4468
    %v4523 = vunpack.c.l.b16 %v4469
    %v4524 = vunpack.c.l.b16 %v4470
    %v4525 = vunpack.c.l.b16 %v4471
    %v4526 = vunpack.c.l.b16 %v4472
    %v4527 = vunpack.c.l.b16 %v4473
    %v4528 = vunpack.c.l.b16 %v4474
    %v4529 = vunpack.c.l.b16 %v4475
    %v4530 = vunpack.c.l.b16 %v4476
    %v4531 = vunpack.c.l.b16 %v4477
    %v4532 = vunpack.c.l.b16 %v4478
    %v4533 = vunpack.c.l.b16 %v4479
    %v4534 = vunpack.c.l.b16 %v4480
    %v4535 = vunpack.c.l.b16 %v4481
    %v4536 = vunpack.c.l.b16 %v4482
    %v4537 = vunpack.c.l.b16 %v4483
    %v4538 = vpack.c.b16 %v4513, %v4512
    %v4539 = vpack.c.b16 %v4515, %v4514
    %v4540 = vpack.c.b16 %v4517, %v4516
    %v4541 = vpack.c.b16 %v4519, %v4518
    %v4542 = vpack.c.b16 %v4521, %v4520
    %v4543 = vpack.c.b16 %v4523, %v4522
    %v4544 = vpack.c.b16 %v4525, %v4524
    %v4545 = vpack.c.b16 %v4527, %v4526
    %v4546 = vpack.c.b16 %v4529, %v4528
    %v4547 = vpack.c.b16 %v4531, %v4530
    %v4548 = vpack.c.b16 %v4533, %v4532
    %v4549 = vpack.c.b16 %v4535, %v4534
    %v4550 = vpack.c.b16 %v4537, %v4536
    %v4564 = vsel %vm3978, %v4485, 0
    %v4567 = vand.u32 %v4550, %v3984
    %4569 = vmatprep.subr.bf16.mxu0 0
    %4570 = vmatpush1.bf16.msra.mxu0 %v4538
    %4571 = vmatprep.subr.bf16.mxu0 0
    %4572 = vmatpush1.bf16.msra.mxu0 %v4539
    %4573 = vmatprep.subr.bf16.mxu0 0
    %4574 = vmatpush1.bf16.msra.mxu0 %v4540
    %4575 = vmatprep.subr.bf16.mxu0 0
    %4576 = vmatpush1.bf16.msra.mxu0 %v4541
    %4577 = vmatprep.subr.bf16.mxu0 0
    %4578 = vmatpush1.bf16.msra.mxu0 %v4542
    %4579 = vmatprep.subr.bf16.mxu0 0
    %4580 = vmatpush1.bf16.msra.mxu0 %v4543
    %4581 = vmatprep.subr.bf16.mxu0 0
    %4582 = vmatpush1.bf16.msra.mxu0 %v4544
    %4583 = vmatprep.subr.bf16.mxu0 0
    %4584 = vmatpush1.bf16.msra.mxu0 %v4545
    %4585 = vmatprep.subr.bf16.mxu0 0
    %4586 = vmatpush1.bf16.msra.mxu0 %v4546
    %4587 = vmatprep.subr.bf16.mxu0 0
    %4588 = vmatpush1.bf16.msra.mxu0 %v4547
    %4589 = vmatprep.subr.bf16.mxu0 0
    %4590 = vmatpush1.bf16.msra.mxu0 %v4548
    %4591 = vmatprep.subr.bf16.mxu0 0
    %4592 = vmatpush1.bf16.msra.mxu0 %v4549
    %4593 = vmatprep.subr.bf16.mxu0 0
    %4594 = vmatpush1.bf16.msra.mxu0 %v4567
    %4595 = vmatprep.subr.bf16.mxu0 0
    %4596 = vmatpush1.bf16.msra.mxu0 0
    %4597 = vmatprep.subr.bf16.mxu0 0
    %4598 = vmatpush1.bf16.msra.mxu0 0
    %4599 = vmatprep.subr.bf16.mxu0 0
    %4600 = vmatpush1.bf16.msra.mxu0 0
    %4601 = vmatprep.mubr.bf16.mxu0 %v4564
    %4602 = vmatmul.mubr.bf16.gmra.mrb[0].mxu0 %v4484
    %v4603 = vpop.f32.mrb[0].mxu0
    %v4604 = vadd.f32 0.0, %v4603
    %v4605 = vpop.f32.mrb[0].mxu0
    %v4606 = vpop.f32.mrb[0].mxu0
    %v4607 = vpop.f32.mrb[0].mxu0
    %4608 = vdwg.mxu0
    %v4609 = vadd.f32 %v4456, %v4604
    %s4610 = scalar_lea.vmem [#allocation7], 520
    %v4611 = vld [vmem:[%s4610] sm:$0xf]
    %v4612 = vld [vmem:[%s4610 + $0x4] sm:$0xf]
    %v4613 = vld [vmem:[%s4610 + $0x8] sm:$0xf]
    %v4614 = vld [vmem:[%s4610 + $0xc] sm:$0xf]
    %v4615 = vld [vmem:[%s4610 + $0x10] sm:$0xf]
    %v4616 = vld [vmem:[%s4610 + $0x14] sm:$0xf]
    %v4617 = vld [vmem:[%s4610 + $0x18] sm:$0xf]
    %v4618 = vld [vmem:[%s4610 + $0x1c] sm:$0xf]
    %v4619 = vld [vmem:[%s4610 + $0x20] sm:$0xf]
    %v4620 = vld [vmem:[%s4610 + $0x24] sm:$0xf]
    %v4621 = vld [vmem:[%s4610 + $0x28] sm:$0xf]
    %v4622 = vld [vmem:[%s4610 + $0x2c] sm:$0xf]
    %v4623 = vld [vmem:[%s4610 + $0x30] sm:$0xf]
    %v4624 = vld [vmem:[%s4610 + $0x34] sm:$0xf]
    %v4625 = vld [vmem:[%s4610 + $0x38] sm:$0xf]
    %v4626 = vld [vmem:[%s4610 + $0x3c] sm:$0xf]
    %v4627 = vld [vmem:[%s4610 + $0x40] sm:$0xf]
    %v4628 = vld [vmem:[%s4610 + $0x44] sm:$0xf]
    %v4629 = vld [vmem:[%s4610 + $0x48] sm:$0xf]
    %v4630 = vld [vmem:[%s4610 + $0x4c] sm:$0xf]
    %v4631 = vld [vmem:[%s4610 + $0x50] sm:$0xf]
    %v4632 = vld [vmem:[%s4610 + $0x54] sm:$0xf]
    %v4633 = vld [vmem:[%s4610 + $0x58] sm:$0xf]
    %v4634 = vld [vmem:[%s4610 + $0x5c] sm:$0xf]
    %v4635 = vld [vmem:[%s4610 + $0x60] sm:$0xf]
    %v4636 = vld [vmem:[%s4610 + $0x64] sm:$0xf]
    %v4637 = vpack.c.bf16 %v3840, %v3840
    %v4638 = vpack.c.bf16 %v3842, %v3842
    %v4665 = vunpack.c.l.b16 %v4611
    %v4666 = vunpack.c.l.b16 %v4612
    %v4667 = vunpack.c.l.b16 %v4613
    %v4668 = vunpack.c.l.b16 %v4614
    %v4669 = vunpack.c.l.b16 %v4615
    %v4670 = vunpack.c.l.b16 %v4616
    %v4671 = vunpack.c.l.b16 %v4617
    %v4672 = vunpack.c.l.b16 %v4618
    %v4673 = vunpack.c.l.b16 %v4619
    %v4674 = vunpack.c.l.b16 %v4620
    %v4675 = vunpack.c.l.b16 %v4621
    %v4676 = vunpack.c.l.b16 %v4622
    %v4677 = vunpack.c.l.b16 %v4623
    %v4678 = vunpack.c.l.b16 %v4624
    %v4679 = vunpack.c.l.b16 %v4625
    %v4680 = vunpack.c.l.b16 %v4626
    %v4681 = vunpack.c.l.b16 %v4627
    %v4682 = vunpack.c.l.b16 %v4628
    %v4683 = vunpack.c.l.b16 %v4629
    %v4684 = vunpack.c.l.b16 %v4630
    %v4685 = vunpack.c.l.b16 %v4631
    %v4686 = vunpack.c.l.b16 %v4632
    %v4687 = vunpack.c.l.b16 %v4633
    %v4688 = vunpack.c.l.b16 %v4634
    %v4689 = vunpack.c.l.b16 %v4635
    %v4690 = vunpack.c.l.b16 %v4636
    %v4691 = vpack.c.b16 %v4666, %v4665
    %v4692 = vpack.c.b16 %v4668, %v4667
    %v4693 = vpack.c.b16 %v4670, %v4669
    %v4694 = vpack.c.b16 %v4672, %v4671
    %v4695 = vpack.c.b16 %v4674, %v4673
    %v4696 = vpack.c.b16 %v4676, %v4675
    %v4697 = vpack.c.b16 %v4678, %v4677
    %v4698 = vpack.c.b16 %v4680, %v4679
    %v4699 = vpack.c.b16 %v4682, %v4681
    %v4700 = vpack.c.b16 %v4684, %v4683
    %v4701 = vpack.c.b16 %v4686, %v4685
    %v4702 = vpack.c.b16 %v4688, %v4687
    %v4703 = vpack.c.b16 %v4690, %v4689
    %v4717 = vsel %vm3978, %v4638, 0
    %v4720 = vand.u32 %v4703, %v3984
    %4722 = vmatprep.subr.bf16.mxu0 0
    %4723 = vmatpush1.bf16.msra.mxu0 %v4691
    %4724 = vmatprep.subr.bf16.mxu0 0
    %4725 = vmatpush1.bf16.msra.mxu0 %v4692
    %4726 = vmatprep.subr.bf16.mxu0 0
    %4727 = vmatpush1.bf16.msra.mxu0 %v4693
    %4728 = vmatprep.subr.bf16.mxu0 0
    %4729 = vmatpush1.bf16.msra.mxu0 %v4694
    %4730 = vmatprep.subr.bf16.mxu0 0
    %4731 = vmatpush1.bf16.msra.mxu0 %v4695
    %4732 = vmatprep.subr.bf16.mxu0 0
    %4733 = vmatpush1.bf16.msra.mxu0 %v4696
    %4734 = vmatprep.subr.bf16.mxu0 0
    %4735 = vmatpush1.bf16.msra.mxu0 %v4697
    %4736 = vmatprep.subr.bf16.mxu0 0
    %4737 = vmatpush1.bf16.msra.mxu0 %v4698
    %4738 = vmatprep.subr.bf16.mxu0 0
    %4739 = vmatpush1.bf16.msra.mxu0 %v4699
    %4740 = vmatprep.subr.bf16.mxu0 0
    %4741 = vmatpush1.bf16.msra.mxu0 %v4700
    %4742 = vmatprep.subr.bf16.mxu0 0
    %4743 = vmatpush1.bf16.msra.mxu0 %v4701
    %4744 = vmatprep.subr.bf16.mxu0 0
    %4745 = vmatpush1.bf16.msra.mxu0 %v4702
    %4746 = vmatprep.subr.bf16.mxu0 0
    %4747 = vmatpush1.bf16.msra.mxu0 %v4720
    %4748 = vmatprep.subr.bf16.mxu0 0
    %4749 = vmatpush1.bf16.msra.mxu0 0
    %4750 = vmatprep.subr.bf16.mxu0 0
    %4751 = vmatpush1.bf16.msra.mxu0 0
    %4752 = vmatprep.subr.bf16.mxu0 0
    %4753 = vmatpush1.bf16.msra.mxu0 0
    %4754 = vmatprep.mubr.bf16.mxu0 %v4717
    %4755 = vmatmul.mubr.bf16.gmra.mrb[0].mxu0 %v4637
    %v4756 = vpop.f32.mrb[0].mxu0
    %v4757 = vadd.f32 0.0, %v4756
    %v4758 = vpop.f32.mrb[0].mxu0
    %v4759 = vpop.f32.mrb[0].mxu0
    %v4760 = vpop.f32.mrb[0].mxu0
    %4761 = vdwg.mxu0
    %v4762 = vadd.f32 %v4609, %v4757
    %v4763 = vld [vmem:[%s8] sm:$0x1]
    %v4765 = vlaneseq
    %v4766 = vshrl.u32 %v4765, 7
    %v4767 = vsub.s32 0, %v4766
    %v4768 = vrot.slane %v4763, %v4767
    %v4770 = vadd.f32 %v4762, %v4768
    %v4771 = vmax.f32 %v4770, 0.0
    %v4772 = vld [vmem:[%s9] sm:$0xf]
    %v4773 = vld [vmem:[%s9 + $0x4] sm:$0xf]
    %v4774 = vld [vmem:[%s9 + $0x8] sm:$0xf]
    %v4775 = vld [vmem:[%s9 + $0xc] sm:$0xf]
    %v4776 = vld [vmem:[%s9 + $0x10] sm:$0xf]
    %v4777 = vld [vmem:[%s9 + $0x14] sm:$0xf]
    %v4778 = vld [vmem:[%s9 + $0x18] sm:$0xf]
    %v4779 = vld [vmem:[%s9 + $0x1c] sm:$0xf]
    %v4780 = vld [vmem:[%s9 + $0x20] sm:$0xf]
    %v4781 = vld [vmem:[%s9 + $0x24] sm:$0xf]
    %v4782 = vld [vmem:[%s9 + $0x28] sm:$0xf]
    %v4783 = vld [vmem:[%s9 + $0x2c] sm:$0xf]
    %v4784 = vld [vmem:[%s9 + $0x30] sm:$0xf]
    %v4785 = vld [vmem:[%s9 + $0x34] sm:$0xf]
    %v4786 = vld [vmem:[%s9 + $0x38] sm:$0xf]
    %v4787 = vld [vmem:[%s9 + $0x3c] sm:$0xf]
    %v4788 = vpack.c.bf16 %v4771, %v4771
    %v4805 = vunpack.c.l.b16 %v4772
    %v4806 = vunpack.c.l.b16 %v4773
    %v4807 = vunpack.c.l.b16 %v4774
    %v4808 = vunpack.c.l.b16 %v4775
    %v4809 = vunpack.c.l.b16 %v4776
    %v4810 = vunpack.c.l.b16 %v4777
    %v4811 = vunpack.c.l.b16 %v4778
    %v4812 = vunpack.c.l.b16 %v4779
    %v4813 = vunpack.c.l.b16 %v4780
    %v4814 = vunpack.c.l.b16 %v4781
    %v4815 = vunpack.c.l.b16 %v4782
    %v4816 = vunpack.c.l.b16 %v4783
    %v4817 = vunpack.c.l.b16 %v4784
    %v4818 = vunpack.c.l.b16 %v4785
    %v4819 = vunpack.c.l.b16 %v4786
    %v4820 = vunpack.c.l.b16 %v4787
    %v4821 = vpack.c.b16 %v4806, %v4805
    %v4822 = vpack.c.b16 %v4808, %v4807
    %v4823 = vpack.c.b16 %v4810, %v4809
    %v4824 = vpack.c.b16 %v4812, %v4811
    %v4825 = vpack.c.b16 %v4814, %v4813
    %v4826 = vpack.c.b16 %v4816, %v4815
    %v4827 = vpack.c.b16 %v4818, %v4817
    %v4828 = vpack.c.b16 %v4820, %v4819
    %4837 = vmatprep.subr.bf16.mxu0 0
    %4838 = vmatpush1.bf16.msra.mxu0 %v4821
    %4839 = vmatprep.subr.bf16.mxu0 0
    %4840 = vmatpush1.bf16.msra.mxu0 %v4822
    %4841 = vmatprep.subr.bf16.mxu0 0
    %4842 = vmatpush1.bf16.msra.mxu0 %v4823
    %4843 = vmatprep.subr.bf16.mxu0 0
    %4844 = vmatpush1.bf16.msra.mxu0 %v4824
    %4845 = vmatprep.subr.bf16.mxu0 0
    %4846 = vmatpush1.bf16.msra.mxu0 %v4825
    %4847 = vmatprep.subr.bf16.mxu0 0
    %4848 = vmatpush1.bf16.msra.mxu0 %v4826
    %4849 = vmatprep.subr.bf16.mxu0 0
    %4850 = vmatpush1.bf16.msra.mxu0 %v4827
    %4851 = vmatprep.subr.bf16.mxu0 0
    %4852 = vmatpush1.bf16.msra.mxu0 %v4828
    %4853 = vmatprep.subr.bf16.mxu0 0
    %4854 = vmatpush1.bf16.msra.mxu0 0
    %4855 = vmatprep.subr.bf16.mxu0 0
    %4856 = vmatpush1.bf16.msra.mxu0 0
    %4857 = vmatprep.subr.bf16.mxu0 0
    %4858 = vmatpush1.bf16.msra.mxu0 0
    %4859 = vmatprep.subr.bf16.mxu0 0
    %4860 = vmatpush1.bf16.msra.mxu0 0
    %4861 = vmatprep.subr.bf16.mxu0 0
    %4862 = vmatpush1.bf16.msra.mxu0 0
    %4863 = vmatprep.subr.bf16.mxu0 0
    %4864 = vmatpush1.bf16.msra.mxu0 0
    %4865 = vmatprep.subr.bf16.mxu0 0
    %4866 = vmatpush1.bf16.msra.mxu0 0
    %4867 = vmatprep.subr.bf16.mxu0 0
    %4868 = vmatpush1.bf16.msra.mxu0 0
    %4869 = vmatprep.mubr.bf16.mxu0 0
    %4870 = vmatmul.mubr.bf16.gmra.mrb[0].mxu0 %v4788
    %v4871 = vpop.f32.mrb[0].mxu0
    %v4872 = vadd.f32 0.0, %v4871
    %v4873 = vpop.f32.mrb[0].mxu0
    %v4874 = vpop.f32.mrb[0].mxu0
    %v4875 = vpop.f32.mrb[0].mxu0
    %4876 = vdwg.mxu0
    %v4877 = vmax.f32 %v4872, 0.0
    %v4878 = vld [vmem:[%s10] sm:$0xf]
    %v4879 = vld [vmem:[%s10 + $0x4] sm:$0xf]
    %v4880 = vld [vmem:[%s10 + $0x8] sm:$0xf]
    %v4881 = vld [vmem:[%s10 + $0xc] sm:$0xf]
    %v4882 = vld [vmem:[%s10 + $0x10] sm:$0xf]
    %v4883 = vld [vmem:[%s10 + $0x14] sm:$0xf]
    %v4884 = vld [vmem:[%s10 + $0x18] sm:$0xf]
    %v4885 = vld [vmem:[%s10 + $0x1c] sm:$0xf]
    %v4886 = vld [vmem:[%s10 + $0x20] sm:$0xf]
    %v4887 = vld [vmem:[%s10 + $0x24] sm:$0xf]
    %v4888 = vld [vmem:[%s10 + $0x28] sm:$0xf]
    %v4889 = vld [vmem:[%s10 + $0x2c] sm:$0xf]
    %v4890 = vld [vmem:[%s10 + $0x30] sm:$0xf]
    %v4891 = vld [vmem:[%s10 + $0x34] sm:$0xf]
    %v4892 = vld [vmem:[%s10 + $0x38] sm:$0xf]
    %v4893 = vld [vmem:[%s10 + $0x3c] sm:$0xf]
    %v4894 = vpack.c.bf16 %v4877, %v4877
    %v4911 = vunpack.c.l.b16 %v4878
    %v4912 = vunpack.c.l.b16 %v4879
    %v4913 = vunpack.c.l.b16 %v4880
    %v4914 = vunpack.c.l.b16 %v4881
    %v4915 = vunpack.c.l.b16 %v4882
    %v4916 = vunpack.c.l.b16 %v4883
    %v4917 = vunpack.c.l.b16 %v4884
    %v4918 = vunpack.c.l.b16 %v4885
    %v4919 = vunpack.c.l.b16 %v4886
    %v4920 = vunpack.c.l.b16 %v4887
    %v4921 = vunpack.c.l.b16 %v4888
    %v4922 = vunpack.c.l.b16 %v4889
    %v4923 = vunpack.c.l.b16 %v4890
    %v4924 = vunpack.c.l.b16 %v4891
    %v4925 = vunpack.c.l.b16 %v4892
    %v4926 = vunpack.c.l.b16 %v4893
    %v4927 = vpack.c.b16 %v4912, %v4911
    %v4928 = vpack.c.b16 %v4914, %v4913
    %v4929 = vpack.c.b16 %v4916, %v4915
    %v4930 = vpack.c.b16 %v4918, %v4917
    %v4931 = vpack.c.b16 %v4920, %v4919
    %v4932 = vpack.c.b16 %v4922, %v4921
    %v4933 = vpack.c.b16 %v4924, %v4923
    %v4934 = vpack.c.b16 %v4926, %v4925
    %4943 = vmatprep.subr.bf16.mxu0 0
    %4944 = vmatpush1.bf16.msra.mxu0 %v4927
    %4945 = vmatprep.subr.bf16.mxu0 0
    %4946 = vmatpush1.bf16.msra.mxu0 %v4928
    %4947 = vmatprep.subr.bf16.mxu0 0
    %4948 = vmatpush1.bf16.msra.mxu0 %v4929
    %4949 = vmatprep.subr.bf16.mxu0 0
    %4950 = vmatpush1.bf16.msra.mxu0 %v4930
    %4951 = vmatprep.subr.bf16.mxu0 0
    %4952 = vmatpush1.bf16.msra.mxu0 %v4931
    %4953 = vmatprep.subr.bf16.mxu0 0
    %4954 = vmatpush1.bf16.msra.mxu0 %v4932
    %4955 = vmatprep.subr.bf16.mxu0 0
    %4956 = vmatpush1.bf16.msra.mxu0 %v4933
    %4957 = vmatprep.subr.bf16.mxu0 0
    %4958 = vmatpush1.bf16.msra.mxu0 %v4934
    %4959 = vmatprep.subr.bf16.mxu0 0
    %4960 = vmatpush1.bf16.msra.mxu0 0
    %4961 = vmatprep.subr.bf16.mxu0 0
    %4962 = vmatpush1.bf16.msra.mxu0 0
    %4963 = vmatprep.subr.bf16.mxu0 0
    %4964 = vmatpush1.bf16.msra.mxu0 0
    %4965 = vmatprep.subr.bf16.mxu0 0
    %4966 = vmatpush1.bf16.msra.mxu0 0
    %4967 = vmatprep.subr.bf16.mxu0 0
    %4968 = vmatpush1.bf16.msra.mxu0 0
    %4969 = vmatprep.subr.bf16.mxu0 0
    %4970 = vmatpush1.bf16.msra.mxu0 0
    %4971 = vmatprep.subr.bf16.mxu0 0
    %4972 = vmatpush1.bf16.msra.mxu0 0
    %4973 = vmatprep.subr.bf16.mxu0 0
    %4974 = vmatpush1.bf16.msra.mxu0 0
    %4975 = vmatprep.mubr.bf16.mxu0 0
    %4976 = vmatmul.mubr.bf16.gmra.mrb[0].mxu0 %v4894
    %v4977 = vpop.f32.mrb[0].mxu0
    %v4978 = vadd.f32 0.0, %v4977
    %v4979 = vpop.f32.mrb[0].mxu0
    %v4980 = vpop.f32.mrb[0].mxu0
    %v4981 = vpop.f32.mrb[0].mxu0
    %4982 = vdwg.mxu0
    %4983 = vst [vmem:[%s11] sm:$0xff] %v4978
    // Predicated region
    $region62: #{net_forward.1} parent=1 // pred_check
      _
    $region63: #{net_forward.1} parent=1 // pred_check_branch
      %4985 = sbr.rel (0) target = $region65
    $region64: #{net_forward.1} parent=1 // pred_region
      _
    $region65: #{net_forward.1} parent=1 // pred_fallthru
      _
    // Predicated region
    $region66: #{net_forward.1} parent=1 // pred_check
      _
    $region67: #{net_forward.1} parent=1 // pred_check_branch
      %4987 = sbr.rel (0) target = $region69
    $region68: #{net_forward.1} parent=1 // pred_region
      _
    $region69: #{net_forward.1} parent=1 // pred_fallthru
      _
    %4988 = vsyncpa [#allocation3], 1
    %4989 = vsyncpa [#allocation5], 1
    %4990 = vsyncpa [#allocation8], 1

</llo_original>
